<compile_context>
chip_gen: v5e
topology: v5e:2x2
jax: 0.10.0
libtpu: 0.0.40
codegen_flags: <defaults>
</compile_context>

<pallas_src>
import functools

import jax
import jax.numpy as jnp
from jax.experimental import pallas as pl
from jax.experimental.pallas import tpu as pltpu


def _fused_stack_kernel(x_ref, mask_ref,
                        w0_ref, b0_ref, w1_ref, b1_ref,
                        w2_ref, b2_ref, w3_ref, b3_ref,
                        o_ref, *, H, layer_dims, pmax):
    """Runs the full 4-layer conv stack for one block of (batch, ri) images.

    x_ref:    (Cin, L)       input; L = bb*D*H, image-major / row-major lanes
    mask_ref: (T, L)         per-tap validity masks, T = (2*pmax+1)**2; row
                             (dy+pmax)*(2*pmax+1)+(dx+pmax) is 1.0 where the
                             shifted read stays inside the same (D, H) image
    w*_ref:   (Co, K*K*Ci)   per-tap (Co, Ci) blocks packed along lanes
    b*_ref:   (Co, 1)        biases
    o_ref:    (Cout, L)      output
    """
    L = x_ref.shape[1]
    nko = 2 * pmax + 1
    P = pmax * H + pmax                       # guard band >= max |lane shift|

    act = x_ref[...].astype(jnp.float32)      # (Cin, L)
    masks = mask_ref[...]                     # (T, L), loaded once

    w_refs = (w0_ref, w1_ref, w2_ref, w3_ref)
    b_refs = (b0_ref, b1_ref, b2_ref, b3_ref)

    for li, (k, ci, co) in enumerate(layer_dims):
        p = (k - 1) // 2
        # Guard-padded activations along the flat lane axis: taps that would
        # index past either end read exact zeros; reads that stay inside the
        # array but straddle a row/image boundary are killed by the mask.
        zpad = jnp.zeros((ci, P), jnp.float32)
        actp = jnp.concatenate([zpad, act, zpad], axis=1)   # (ci, 2P + L)

        cols = []
        for ky in range(k):
            for kx in range(k):
                dy, dx = ky - p, kx - p
                s = dy * H + dx                              # static lane shift
                t = (dy + pmax) * nko + (dx + pmax)
                win = actp[:, P + s:P + s + L]               # (ci, L)
                cols.append(win * masks[t:t + 1, :])
        # im2col patch: one big MXU contraction per layer.
        patch = jnp.concatenate(cols, axis=0)                # (k*k*ci, L)
        act = jnp.dot(w_refs[li][...], patch,
                      preferred_element_type=jnp.float32) + b_refs[li][...]

    o_ref[...] = act.astype(o_ref.dtype)


def _choose_block_images(NB, DH, layer_dims, pmax, bytes_budget=24 << 20):
    """Pick how many (batch, ri) images each grid step processes."""
    kkci = max(k * k * ci for (k, ci, _) in layer_dims)
    cmax = max(max(ci, co) for (_, ci, co) in layer_dims)
    nmask = (2 * pmax + 1) ** 2
    cin, cout = layer_dims[0][1], layer_dims[-1][2]

    def est(bb):
        L = bb * DH
        # double-buffered in/out blocks + masks + im2col patch + activations
        return 4 * L * (2 * (cin + cout) + nmask + kkci + 3 * cmax)

    if est(NB) <= bytes_budget:
        return NB
    for bb in range(NB - 1, 0, -1):
        if NB % bb == 0 and (bb * DH) % 128 == 0 and est(bb) <= bytes_budget:
            return bb
    return NB


def stacked_convs_fused(x_cl, packed_params, *, D, H, NB, layer_dims):
    """x_cl: (Cin, NB*D*H) float32.  Returns (Cout, NB*D*H)."""
    C, S = x_cl.shape
    DH = D * H
    assert S == NB * DH
    assert len(layer_dims) == 4, "module is a fixed 4-layer stack"
    pmax = max((k - 1) // 2 for (k, _, _) in layer_dims)
    cout = layer_dims[-1][2]

    bb = _choose_block_images(NB, DH, layer_dims, pmax)
    Lb = bb * DH
    grid = (NB // bb,)

    # Host-built per-tap validity masks (periodic per image -> tile bb copies).
    nko = 2 * pmax + 1
    dd = jnp.arange(DH, dtype=jnp.int32) // H
    hh = jnp.arange(DH, dtype=jnp.int32) % H
    rows = []
    for dy in range(-pmax, pmax + 1):
        for dx in range(-pmax, pmax + 1):
            rows.append((dd + dy >= 0) & (dd + dy < D) &
                        (hh + dx >= 0) & (hh + dx < H))
    masks = jnp.stack(rows, 0).astype(jnp.float32)           # (T, DH)
    masks = jnp.tile(masks, (1, bb))                          # (T, Lb)

    in_specs = [pl.BlockSpec((C, Lb), lambda i: (0, i)),
                pl.BlockSpec(masks.shape, lambda i: (0, 0))]
    operands = [x_cl, masks]
    for (w_p, b_p) in packed_params:
        in_specs.append(pl.BlockSpec(w_p.shape, lambda i: (0, 0)))
        in_specs.append(pl.BlockSpec(b_p.shape, lambda i: (0, 0)))
        operands.extend([w_p, b_p])

    kern = functools.partial(_fused_stack_kernel, H=H,
                             layer_dims=tuple(layer_dims), pmax=pmax)
    return pl.pallas_call(
        kern,
        out_shape=jax.ShapeDtypeStruct((cout, S), x_cl.dtype),
        grid=grid,
        in_specs=in_specs,
        out_specs=pl.BlockSpec((cout, Lb), lambda i: (0, i)),
        compiler_params=pltpu.CompilerParams(
            dimension_semantics=("parallel",)),
    )(*operands)


def init_stacked_convs_params(key, in_ch, out_ch, dtype=jnp.float32):
    """Deterministic synthetic weights for the 4 conv layers.

    Layer kernel sizes / channels mirror stacked_convs_block_ri.__init__:
      (3,3,1) in->in, (5,5,1) in->in, (5,5,1) in->in, (3,3,1) in->out.
    Weights are stored as (K, K, Cin, Cout); the trailing size-1 kernel dim of
    the Conv3d is dropped (it is an identity along the ri axis).
    """
    specs = [(3, in_ch, in_ch), (5, in_ch, in_ch),
             (5, in_ch, in_ch), (3, in_ch, out_ch)]
    params = []
    for i, (k, ci, co) in enumerate(specs):
        kw_key, b_key = jax.random.split(jax.random.fold_in(key, i))
        fan_in = ci * k * k
        scale = 1.0 / jnp.sqrt(jnp.asarray(fan_in, dtype))
        w = jax.random.uniform(kw_key, (k, k, ci, co), dtype, -scale, scale)
        b = jax.random.uniform(b_key, (co,), dtype, -scale, scale)
        params.append((w, b))
    return params


def _pack_params(params):
    """(K,K,Ci,Co) weights -> (Co, K*K*Ci) per-tap packing; (Co,) bias -> (Co,1)."""
    packed, layer_dims = [], []
    for (w, b) in params:
        k, _k2, ci, co = w.shape
        layer_dims.append((k, ci, co))
        w_p = jnp.transpose(w, (3, 0, 1, 2)).reshape(co, k * k * ci)
        packed.append((w_p.astype(jnp.float32),
                       b.reshape(co, 1).astype(jnp.float32)))
    return packed, layer_dims


def stacked_convs_block_ri_forward(x, params):
    """x: (N, C, D, H, W_ri) in PyTorch NCDHW order.  Returns same layout."""
    N, C, D, H, Wri = x.shape
    packed, layer_dims = _pack_params(params)
    NB = N * Wri
    # Fold batch and the real/imag axis together; channels go to sublanes and
    # everything else is lane-flattened (image-major, row-major within image).
    y = jnp.transpose(x, (1, 0, 4, 2, 3)).reshape(C, NB * D * H)
    y = stacked_convs_fused(y.astype(jnp.float32), packed,
                            D=D, H=H, NB=NB, layer_dims=layer_dims)
    cout = layer_dims[-1][2]
    y = y.reshape(cout, N, Wri, D, H)
    return jnp.transpose(y, (1, 0, 3, 4, 2)).astype(x.dtype)


def _reference_forward(x, params):
    """Plain-JAX reference (lax conv) for a correctness cross-check."""
    N, C, D, H, Wri = x.shape
    y = jnp.transpose(x, (0, 4, 2, 3, 1)).reshape(N * Wri, D, H, C)
    for (w, b) in params:
        y = jax.lax.conv_general_dilated(
            y, w, window_strides=(1, 1), padding="SAME",
            dimension_numbers=("NHWC", "HWIO", "NHWC")) + b
    cout = params[-1][0].shape[-1]
    y = y.reshape(N, Wri, D, H, cout)
    return jnp.transpose(y, (0, 4, 2, 3, 1))


if __name__ == "__main__":
    # Small shapes consistent with the module: NCDHW with W_ri = 2 (real/imag).
    N, Cin, Cout, D, H, Wri = 2, 4, 8, 16, 16, 2
    key = jax.random.PRNGKey(0)
    x_key, p_key = jax.random.split(key)
    x = jax.random.normal(x_key, (N, Cin, D, H, Wri), jnp.float32)

    params = init_stacked_convs_params(p_key, Cin, Cout)

    fwd = jax.jit(stacked_convs_block_ri_forward)
    out = jax.block_until_ready(fwd(x, params))

    ref = _reference_forward(x, params)
    assert out.shape == (N, Cout, D, H, Wri), out.shape
    assert jnp.allclose(out, ref, rtol=1e-3, atol=1e-3), "mismatch vs reference"

    # TODO(synk): apply_BN / apply_activation branches are unused at the
    # module's default constructor args and are not implemented here.
    print("KERNEL_OK")
</pallas_src>

<mosaic_0001>
module attributes {stable_mosaic.version = 11 : i64} {
  func.func @_fused_stack_kernel(%arg0: i32, %arg1: memref<4x1024xf32, #tpu.memory_space<vmem>>, %arg2: memref<25x1024xf32, #tpu.memory_space<vmem>>, %arg3: memref<4x36xf32, #tpu.memory_space<vmem>>, %arg4: memref<4x1xf32, #tpu.memory_space<vmem>>, %arg5: memref<4x100xf32, #tpu.memory_space<vmem>>, %arg6: memref<4x1xf32, #tpu.memory_space<vmem>>, %arg7: memref<4x100xf32, #tpu.memory_space<vmem>>, %arg8: memref<4x1xf32, #tpu.memory_space<vmem>>, %arg9: memref<8x36xf32, #tpu.memory_space<vmem>>, %arg10: memref<8x1xf32, #tpu.memory_space<vmem>>, %arg11: memref<8x1024xf32, #tpu.memory_space<vmem>>) attributes {dimension_semantics = [#tpu.dimension_semantics<parallel>], iteration_bounds = array<i64: 1>, scalar_prefetch = 0 : i64, scratch_operands = 0 : i64, tpu.core_type = #tpu.core_type<tc>, window_params = [{transform_indices = @transform_0, window_bounds = array<i64: 4, 1024>}, {pipeline_mode = #tpu.pipeline_mode<synchronous>, transform_indices = @transform_1, window_bounds = array<i64: 25, 1024>}, {pipeline_mode = #tpu.pipeline_mode<synchronous>, transform_indices = @transform_2, window_bounds = array<i64: 4, 36>}, {pipeline_mode = #tpu.pipeline_mode<synchronous>, transform_indices = @transform_3, window_bounds = array<i64: 4, 1>}, {pipeline_mode = #tpu.pipeline_mode<synchronous>, transform_indices = @transform_4, window_bounds = array<i64: 4, 100>}, {pipeline_mode = #tpu.pipeline_mode<synchronous>, transform_indices = @transform_5, window_bounds = array<i64: 4, 1>}, {pipeline_mode = #tpu.pipeline_mode<synchronous>, transform_indices = @transform_6, window_bounds = array<i64: 4, 100>}, {pipeline_mode = #tpu.pipeline_mode<synchronous>, transform_indices = @transform_7, window_bounds = array<i64: 4, 1>}, {pipeline_mode = #tpu.pipeline_mode<synchronous>, transform_indices = @transform_8, window_bounds = array<i64: 8, 36>}, {pipeline_mode = #tpu.pipeline_mode<synchronous>, transform_indices = @transform_9, window_bounds = array<i64: 8, 1>}, {transform_indices = @transform_10, window_bounds = array<i64: 8, 1024>}]} {
    %c0 = arith.constant 0 : index
    %c0_0 = arith.constant 0 : index
    %0 = vector.load %arg1[%c0, %c0_0] : memref<4x1024xf32, #tpu.memory_space<vmem>>, vector<4x1024xf32>
    %c0_1 = arith.constant 0 : index
    %c0_2 = arith.constant 0 : index
    %1 = vector.load %arg2[%c0_1, %c0_2] : memref<25x1024xf32, #tpu.memory_space<vmem>>, vector<25x1024xf32>
    %cst = arith.constant 0.000000e+00 : f32
    %2 = vector.broadcast %cst : f32 to vector<4x34xf32>
    %3 = tpu.concatenate %2, %0, %2 in 1 : vector<4x34xf32>, vector<4x1024xf32>, vector<4x34xf32> -> vector<4x1092xf32>
    %4 = vector.extract_strided_slice %3 {offsets = [0, 17], sizes = [4, 1024], strides = [1, 1]} : vector<4x1092xf32> to vector<4x1024xf32>
    %5 = vector.extract_strided_slice %1 {offsets = [6, 0], sizes = [1, 1024], strides = [1, 1]} : vector<25x1024xf32> to vector<1x1024xf32>
    %6 = vector.broadcast %5 : vector<1x1024xf32> to vector<4x1024xf32>
    %7 = arith.mulf %4, %6 : vector<4x1024xf32>
    %8 = vector.extract_strided_slice %3 {offsets = [0, 18], sizes = [4, 1024], strides = [1, 1]} : vector<4x1092xf32> to vector<4x1024xf32>
    %9 = vector.extract_strided_slice %1 {offsets = [7, 0], sizes = [1, 1024], strides = [1, 1]} : vector<25x1024xf32> to vector<1x1024xf32>
    %10 = vector.broadcast %9 : vector<1x1024xf32> to vector<4x1024xf32>
    %11 = arith.mulf %8, %10 : vector<4x1024xf32>
    %12 = vector.extract_strided_slice %3 {offsets = [0, 19], sizes = [4, 1024], strides = [1, 1]} : vector<4x1092xf32> to vector<4x1024xf32>
    %13 = vector.extract_strided_slice %1 {offsets = [8, 0], sizes = [1, 1024], strides = [1, 1]} : vector<25x1024xf32> to vector<1x1024xf32>
    %14 = vector.broadcast %13 : vector<1x1024xf32> to vector<4x1024xf32>
    %15 = arith.mulf %12, %14 : vector<4x1024xf32>
    %16 = vector.extract_strided_slice %3 {offsets = [0, 33], sizes = [4, 1024], strides = [1, 1]} : vector<4x1092xf32> to vector<4x1024xf32>
    %17 = vector.extract_strided_slice %1 {offsets = [11, 0], sizes = [1, 1024], strides = [1, 1]} : vector<25x1024xf32> to vector<1x1024xf32>
    %18 = vector.broadcast %17 : vector<1x1024xf32> to vector<4x1024xf32>
    %19 = arith.mulf %16, %18 : vector<4x1024xf32>
    %20 = vector.extract_strided_slice %3 {offsets = [0, 34], sizes = [4, 1024], strides = [1, 1]} : vector<4x1092xf32> to vector<4x1024xf32>
    %21 = vector.extract_strided_slice %1 {offsets = [12, 0], sizes = [1, 1024], strides = [1, 1]} : vector<25x1024xf32> to vector<1x1024xf32>
    %22 = vector.broadcast %21 : vector<1x1024xf32> to vector<4x1024xf32>
    %23 = arith.mulf %20, %22 : vector<4x1024xf32>
    %24 = vector.extract_strided_slice %3 {offsets = [0, 35], sizes = [4, 1024], strides = [1, 1]} : vector<4x1092xf32> to vector<4x1024xf32>
    %25 = vector.extract_strided_slice %1 {offsets = [13, 0], sizes = [1, 1024], strides = [1, 1]} : vector<25x1024xf32> to vector<1x1024xf32>
    %26 = vector.broadcast %25 : vector<1x1024xf32> to vector<4x1024xf32>
    %27 = arith.mulf %24, %26 : vector<4x1024xf32>
    %28 = vector.extract_strided_slice %3 {offsets = [0, 49], sizes = [4, 1024], strides = [1, 1]} : vector<4x1092xf32> to vector<4x1024xf32>
    %29 = vector.extract_strided_slice %1 {offsets = [16, 0], sizes = [1, 1024], strides = [1, 1]} : vector<25x1024xf32> to vector<1x1024xf32>
    %30 = vector.broadcast %29 : vector<1x1024xf32> to vector<4x1024xf32>
    %31 = arith.mulf %28, %30 : vector<4x1024xf32>
    %32 = vector.extract_strided_slice %3 {offsets = [0, 50], sizes = [4, 1024], strides = [1, 1]} : vector<4x1092xf32> to vector<4x1024xf32>
    %33 = vector.extract_strided_slice %1 {offsets = [17, 0], sizes = [1, 1024], strides = [1, 1]} : vector<25x1024xf32> to vector<1x1024xf32>
    %34 = vector.broadcast %33 : vector<1x1024xf32> to vector<4x1024xf32>
    %35 = arith.mulf %32, %34 : vector<4x1024xf32>
    %36 = vector.extract_strided_slice %3 {offsets = [0, 51], sizes = [4, 1024], strides = [1, 1]} : vector<4x1092xf32> to vector<4x1024xf32>
    %37 = vector.extract_strided_slice %1 {offsets = [18, 0], sizes = [1, 1024], strides = [1, 1]} : vector<25x1024xf32> to vector<1x1024xf32>
    %38 = vector.broadcast %37 : vector<1x1024xf32> to vector<4x1024xf32>
    %39 = arith.mulf %36, %38 : vector<4x1024xf32>
    %40 = tpu.concatenate %7, %11, %15, %19, %23, %27, %31, %35, %39 in 0 : vector<4x1024xf32>, vector<4x1024xf32>, vector<4x1024xf32>, vector<4x1024xf32>, vector<4x1024xf32>, vector<4x1024xf32>, vector<4x1024xf32>, vector<4x1024xf32>, vector<4x1024xf32> -> vector<36x1024xf32>
    %c0_3 = arith.constant 0 : index
    %c0_4 = arith.constant 0 : index
    %41 = vector.load %arg3[%c0_3, %c0_4] : memref<4x36xf32, #tpu.memory_space<vmem>>, vector<4x36xf32>
    %cst_5 = arith.constant dense<0.000000e+00> : vector<4x1024xf32>
    %42 = tpu.matmul %41, %40, %cst_5 {dimension_numbers = #tpu.dot_dimension_numbers<[1], [0], [0], [1], [0, 0, 1, 1], [], []>} : vector<4x36xf32>, vector<36x1024xf32>, vector<4x1024xf32> -> vector<4x1024xf32>
    %c0_6 = arith.constant 0 : index
    %c0_7 = arith.constant 0 : index
    %43 = vector.load %arg4[%c0_6, %c0_7] : memref<4x1xf32, #tpu.memory_space<vmem>>, vector<4x1xf32>
    %44 = vector.broadcast %43 : vector<4x1xf32> to vector<4x1024xf32>
    %45 = arith.addf %42, %44 : vector<4x1024xf32>
    %cst_8 = arith.constant 0.000000e+00 : f32
    %46 = vector.broadcast %cst_8 : f32 to vector<4x34xf32>
    %47 = tpu.concatenate %46, %45, %46 in 1 : vector<4x34xf32>, vector<4x1024xf32>, vector<4x34xf32> -> vector<4x1092xf32>
    %48 = vector.extract_strided_slice %47 {offsets = [0, 0], sizes = [4, 1024], strides = [1, 1]} : vector<4x1092xf32> to vector<4x1024xf32>
    %49 = vector.extract_strided_slice %1 {offsets = [0, 0], sizes = [1, 1024], strides = [1, 1]} : vector<25x1024xf32> to vector<1x1024xf32>
    %50 = vector.broadcast %49 : vector<1x1024xf32> to vector<4x1024xf32>
    %51 = arith.mulf %48, %50 : vector<4x1024xf32>
    %52 = vector.extract_strided_slice %47 {offsets = [0, 1], sizes = [4, 1024], strides = [1, 1]} : vector<4x1092xf32> to vector<4x1024xf32>
    %53 = vector.extract_strided_slice %1 {offsets = [1, 0], sizes = [1, 1024], strides = [1, 1]} : vector<25x1024xf32> to vector<1x1024xf32>
    %54 = vector.broadcast %53 : vector<1x1024xf32> to vector<4x1024xf32>
    %55 = arith.mulf %52, %54 : vector<4x1024xf32>
    %56 = vector.extract_strided_slice %47 {offsets = [0, 2], sizes = [4, 1024], strides = [1, 1]} : vector<4x1092xf32> to vector<4x1024xf32>
    %57 = vector.extract_strided_slice %1 {offsets = [2, 0], sizes = [1, 1024], strides = [1, 1]} : vector<25x1024xf32> to vector<1x1024xf32>
    %58 = vector.broadcast %57 : vector<1x1024xf32> to vector<4x1024xf32>
    %59 = arith.mulf %56, %58 : vector<4x1024xf32>
    %60 = vector.extract_strided_slice %47 {offsets = [0, 3], sizes = [4, 1024], strides = [1, 1]} : vector<4x1092xf32> to vector<4x1024xf32>
    %61 = vector.extract_strided_slice %1 {offsets = [3, 0], sizes = [1, 1024], strides = [1, 1]} : vector<25x1024xf32> to vector<1x1024xf32>
    %62 = vector.broadcast %61 : vector<1x1024xf32> to vector<4x1024xf32>
    %63 = arith.mulf %60, %62 : vector<4x1024xf32>
    %64 = vector.extract_strided_slice %47 {offsets = [0, 4], sizes = [4, 1024], strides = [1, 1]} : vector<4x1092xf32> to vector<4x1024xf32>
    %65 = vector.extract_strided_slice %1 {offsets = [4, 0], sizes = [1, 1024], strides = [1, 1]} : vector<25x1024xf32> to vector<1x1024xf32>
    %66 = vector.broadcast %65 : vector<1x1024xf32> to vector<4x1024xf32>
    %67 = arith.mulf %64, %66 : vector<4x1024xf32>
    %68 = vector.extract_strided_slice %47 {offsets = [0, 16], sizes = [4, 1024], strides = [1, 1]} : vector<4x1092xf32> to vector<4x1024xf32>
    %69 = vector.extract_strided_slice %1 {offsets = [5, 0], sizes = [1, 1024], strides = [1, 1]} : vector<25x1024xf32> to vector<1x1024xf32>
    %70 = vector.broadcast %69 : vector<1x1024xf32> to vector<4x1024xf32>
    %71 = arith.mulf %68, %70 : vector<4x1024xf32>
    %72 = vector.extract_strided_slice %47 {offsets = [0, 17], sizes = [4, 1024], strides = [1, 1]} : vector<4x1092xf32> to vector<4x1024xf32>
    %73 = vector.extract_strided_slice %1 {offsets = [6, 0], sizes = [1, 1024], strides = [1, 1]} : vector<25x1024xf32> to vector<1x1024xf32>
    %74 = vector.broadcast %73 : vector<1x1024xf32> to vector<4x1024xf32>
    %75 = arith.mulf %72, %74 : vector<4x1024xf32>
    %76 = vector.extract_strided_slice %47 {offsets = [0, 18], sizes = [4, 1024], strides = [1, 1]} : vector<4x1092xf32> to vector<4x1024xf32>
    %77 = vector.extract_strided_slice %1 {offsets = [7, 0], sizes = [1, 1024], strides = [1, 1]} : vector<25x1024xf32> to vector<1x1024xf32>
    %78 = vector.broadcast %77 : vector<1x1024xf32> to vector<4x1024xf32>
    %79 = arith.mulf %76, %78 : vector<4x1024xf32>
    %80 = vector.extract_strided_slice %47 {offsets = [0, 19], sizes = [4, 1024], strides = [1, 1]} : vector<4x1092xf32> to vector<4x1024xf32>
    %81 = vector.extract_strided_slice %1 {offsets = [8, 0], sizes = [1, 1024], strides = [1, 1]} : vector<25x1024xf32> to vector<1x1024xf32>
    %82 = vector.broadcast %81 : vector<1x1024xf32> to vector<4x1024xf32>
    %83 = arith.mulf %80, %82 : vector<4x1024xf32>
    %84 = vector.extract_strided_slice %47 {offsets = [0, 20], sizes = [4, 1024], strides = [1, 1]} : vector<4x1092xf32> to vector<4x1024xf32>
    %85 = vector.extract_strided_slice %1 {offsets = [9, 0], sizes = [1, 1024], strides = [1, 1]} : vector<25x1024xf32> to vector<1x1024xf32>
    %86 = vector.broadcast %85 : vector<1x1024xf32> to vector<4x1024xf32>
    %87 = arith.mulf %84, %86 : vector<4x1024xf32>
    %88 = vector.extract_strided_slice %47 {offsets = [0, 32], sizes = [4, 1024], strides = [1, 1]} : vector<4x1092xf32> to vector<4x1024xf32>
    %89 = vector.extract_strided_slice %1 {offsets = [10, 0], sizes = [1, 1024], strides = [1, 1]} : vector<25x1024xf32> to vector<1x1024xf32>
    %90 = vector.broadcast %89 : vector<1x1024xf32> to vector<4x1024xf32>
    %91 = arith.mulf %88, %90 : vector<4x1024xf32>
    %92 = vector.extract_strided_slice %47 {offsets = [0, 33], sizes = [4, 1024], strides = [1, 1]} : vector<4x1092xf32> to vector<4x1024xf32>
    %93 = vector.extract_strided_slice %1 {offsets = [11, 0], sizes = [1, 1024], strides = [1, 1]} : vector<25x1024xf32> to vector<1x1024xf32>
    %94 = vector.broadcast %93 : vector<1x1024xf32> to vector<4x1024xf32>
    %95 = arith.mulf %92, %94 : vector<4x1024xf32>
    %96 = vector.extract_strided_slice %47 {offsets = [0, 34], sizes = [4, 1024], strides = [1, 1]} : vector<4x1092xf32> to vector<4x1024xf32>
    %97 = vector.extract_strided_slice %1 {offsets = [12, 0], sizes = [1, 1024], strides = [1, 1]} : vector<25x1024xf32> to vector<1x1024xf32>
    %98 = vector.broadcast %97 : vector<1x1024xf32> to vector<4x1024xf32>
    %99 = arith.mulf %96, %98 : vector<4x1024xf32>
    %100 = vector.extract_strided_slice %47 {offsets = [0, 35], sizes = [4, 1024], strides = [1, 1]} : vector<4x1092xf32> to vector<4x1024xf32>
    %101 = vector.extract_strided_slice %1 {offsets = [13, 0], sizes = [1, 1024], strides = [1, 1]} : vector<25x1024xf32> to vector<1x1024xf32>
    %102 = vector.broadcast %101 : vector<1x1024xf32> to vector<4x1024xf32>
    %103 = arith.mulf %100, %102 : vector<4x1024xf32>
    %104 = vector.extract_strided_slice %47 {offsets = [0, 36], sizes = [4, 1024], strides = [1, 1]} : vector<4x1092xf32> to vector<4x1024xf32>
    %105 = vector.extract_strided_slice %1 {offsets = [14, 0], sizes = [1, 1024], strides = [1, 1]} : vector<25x1024xf32> to vector<1x1024xf32>
    %106 = vector.broadcast %105 : vector<1x1024xf32> to vector<4x1024xf32>
    %107 = arith.mulf %104, %106 : vector<4x1024xf32>
    %108 = vector.extract_strided_slice %47 {offsets = [0, 48], sizes = [4, 1024], strides = [1, 1]} : vector<4x1092xf32> to vector<4x1024xf32>
    %109 = vector.extract_strided_slice %1 {offsets = [15, 0], sizes = [1, 1024], strides = [1, 1]} : vector<25x1024xf32> to vector<1x1024xf32>
    %110 = vector.broadcast %109 : vector<1x1024xf32> to vector<4x1024xf32>
    %111 = arith.mulf %108, %110 : vector<4x1024xf32>
    %112 = vector.extract_strided_slice %47 {offsets = [0, 49], sizes = [4, 1024], strides = [1, 1]} : vector<4x1092xf32> to vector<4x1024xf32>
    %113 = vector.extract_strided_slice %1 {offsets = [16, 0], sizes = [1, 1024], strides = [1, 1]} : vector<25x1024xf32> to vector<1x1024xf32>
    %114 = vector.broadcast %113 : vector<1x1024xf32> to vector<4x1024xf32>
    %115 = arith.mulf %112, %114 : vector<4x1024xf32>
    %116 = vector.extract_strided_slice %47 {offsets = [0, 50], sizes = [4, 1024], strides = [1, 1]} : vector<4x1092xf32> to vector<4x1024xf32>
    %117 = vector.extract_strided_slice %1 {offsets = [17, 0], sizes = [1, 1024], strides = [1, 1]} : vector<25x1024xf32> to vector<1x1024xf32>
    %118 = vector.broadcast %117 : vector<1x1024xf32> to vector<4x1024xf32>
    %119 = arith.mulf %116, %118 : vector<4x1024xf32>
    %120 = vector.extract_strided_slice %47 {offsets = [0, 51], sizes = [4, 1024], strides = [1, 1]} : vector<4x1092xf32> to vector<4x1024xf32>
    %121 = vector.extract_strided_slice %1 {offsets = [18, 0], sizes = [1, 1024], strides = [1, 1]} : vector<25x1024xf32> to vector<1x1024xf32>
    %122 = vector.broadcast %121 : vector<1x1024xf32> to vector<4x1024xf32>
    %123 = arith.mulf %120, %122 : vector<4x1024xf32>
    %124 = vector.extract_strided_slice %47 {offsets = [0, 52], sizes = [4, 1024], strides = [1, 1]} : vector<4x1092xf32> to vector<4x1024xf32>
    %125 = vector.extract_strided_slice %1 {offsets = [19, 0], sizes = [1, 1024], strides = [1, 1]} : vector<25x1024xf32> to vector<1x1024xf32>
    %126 = vector.broadcast %125 : vector<1x1024xf32> to vector<4x1024xf32>
    %127 = arith.mulf %124, %126 : vector<4x1024xf32>
    %128 = vector.extract_strided_slice %47 {offsets = [0, 64], sizes = [4, 1024], strides = [1, 1]} : vector<4x1092xf32> to vector<4x1024xf32>
    %129 = vector.extract_strided_slice %1 {offsets = [20, 0], sizes = [1, 1024], strides = [1, 1]} : vector<25x1024xf32> to vector<1x1024xf32>
    %130 = vector.broadcast %129 : vector<1x1024xf32> to vector<4x1024xf32>
    %131 = arith.mulf %128, %130 : vector<4x1024xf32>
    %132 = vector.extract_strided_slice %47 {offsets = [0, 65], sizes = [4, 1024], strides = [1, 1]} : vector<4x1092xf32> to vector<4x1024xf32>
    %133 = vector.extract_strided_slice %1 {offsets = [21, 0], sizes = [1, 1024], strides = [1, 1]} : vector<25x1024xf32> to vector<1x1024xf32>
    %134 = vector.broadcast %133 : vector<1x1024xf32> to vector<4x1024xf32>
    %135 = arith.mulf %132, %134 : vector<4x1024xf32>
    %136 = vector.extract_strided_slice %47 {offsets = [0, 66], sizes = [4, 1024], strides = [1, 1]} : vector<4x1092xf32> to vector<4x1024xf32>
    %137 = vector.extract_strided_slice %1 {offsets = [22, 0], sizes = [1, 1024], strides = [1, 1]} : vector<25x1024xf32> to vector<1x1024xf32>
    %138 = vector.broadcast %137 : vector<1x1024xf32> to vector<4x1024xf32>
    %139 = arith.mulf %136, %138 : vector<4x1024xf32>
    %140 = vector.extract_strided_slice %47 {offsets = [0, 67], sizes = [4, 1024], strides = [1, 1]} : vector<4x1092xf32> to vector<4x1024xf32>
    %141 = vector.extract_strided_slice %1 {offsets = [23, 0], sizes = [1, 1024], strides = [1, 1]} : vector<25x1024xf32> to vector<1x1024xf32>
    %142 = vector.broadcast %141 : vector<1x1024xf32> to vector<4x1024xf32>
    %143 = arith.mulf %140, %142 : vector<4x1024xf32>
    %144 = vector.extract_strided_slice %47 {offsets = [0, 68], sizes = [4, 1024], strides = [1, 1]} : vector<4x1092xf32> to vector<4x1024xf32>
    %145 = vector.extract_strided_slice %1 {offsets = [24, 0], sizes = [1, 1024], strides = [1, 1]} : vector<25x1024xf32> to vector<1x1024xf32>
    %146 = vector.broadcast %145 : vector<1x1024xf32> to vector<4x1024xf32>
    %147 = arith.mulf %144, %146 : vector<4x1024xf32>
    %148 = tpu.concatenate %51, %55, %59, %63, %67, %71, %75, %79, %83, %87, %91, %95, %99, %103, %107, %111 in 0 : vector<4x1024xf32>, vector<4x1024xf32>, vector<4x1024xf32>, vector<4x1024xf32>, vector<4x1024xf32>, vector<4x1024xf32>, vector<4x1024xf32>, vector<4x1024xf32>, vector<4x1024xf32>, vector<4x1024xf32>, vector<4x1024xf32>, vector<4x1024xf32>, vector<4x1024xf32>, vector<4x1024xf32>, vector<4x1024xf32>, vector<4x1024xf32> -> vector<64x1024xf32>
    %149 = tpu.concatenate %115, %119, %123, %127, %131, %135, %139, %143, %147 in 0 : vector<4x1024xf32>, vector<4x1024xf32>, vector<4x1024xf32>, vector<4x1024xf32>, vector<4x1024xf32>, vector<4x1024xf32>, vector<4x1024xf32>, vector<4x1024xf32>, vector<4x1024xf32> -> vector<36x1024xf32>
    %150 = tpu.concatenate %148, %149 in 0 : vector<64x1024xf32>, vector<36x1024xf32> -> vector<100x1024xf32>
    %c0_9 = arith.constant 0 : index
    %c0_10 = arith.constant 0 : index
    %151 = vector.load %arg5[%c0_9, %c0_10] : memref<4x100xf32, #tpu.memory_space<vmem>>, vector<4x100xf32>
    %cst_11 = arith.constant dense<0.000000e+00> : vector<4x1024xf32>
    %152 = tpu.matmul %151, %150, %cst_11 {dimension_numbers = #tpu.dot_dimension_numbers<[1], [0], [0], [1], [0, 0, 1, 1], [], []>} : vector<4x100xf32>, vector<100x1024xf32>, vector<4x1024xf32> -> vector<4x1024xf32>
    %c0_12 = arith.constant 0 : index
    %c0_13 = arith.constant 0 : index
    %153 = vector.load %arg6[%c0_12, %c0_13] : memref<4x1xf32, #tpu.memory_space<vmem>>, vector<4x1xf32>
    %154 = vector.broadcast %153 : vector<4x1xf32> to vector<4x1024xf32>
    %155 = arith.addf %152, %154 : vector<4x1024xf32>
    %cst_14 = arith.constant 0.000000e+00 : f32
    %156 = vector.broadcast %cst_14 : f32 to vector<4x34xf32>
    %157 = tpu.concatenate %156, %155, %156 in 1 : vector<4x34xf32>, vector<4x1024xf32>, vector<4x34xf32> -> vector<4x1092xf32>
    %158 = vector.extract_strided_slice %157 {offsets = [0, 0], sizes = [4, 1024], strides = [1, 1]} : vector<4x1092xf32> to vector<4x1024xf32>
    %159 = vector.extract_strided_slice %1 {offsets = [0, 0], sizes = [1, 1024], strides = [1, 1]} : vector<25x1024xf32> to vector<1x1024xf32>
    %160 = vector.broadcast %159 : vector<1x1024xf32> to vector<4x1024xf32>
    %161 = arith.mulf %158, %160 : vector<4x1024xf32>
    %162 = vector.extract_strided_slice %157 {offsets = [0, 1], sizes = [4, 1024], strides = [1, 1]} : vector<4x1092xf32> to vector<4x1024xf32>
    %163 = vector.extract_strided_slice %1 {offsets = [1, 0], sizes = [1, 1024], strides = [1, 1]} : vector<25x1024xf32> to vector<1x1024xf32>
    %164 = vector.broadcast %163 : vector<1x1024xf32> to vector<4x1024xf32>
    %165 = arith.mulf %162, %164 : vector<4x1024xf32>
    %166 = vector.extract_strided_slice %157 {offsets = [0, 2], sizes = [4, 1024], strides = [1, 1]} : vector<4x1092xf32> to vector<4x1024xf32>
    %167 = vector.extract_strided_slice %1 {offsets = [2, 0], sizes = [1, 1024], strides = [1, 1]} : vector<25x1024xf32> to vector<1x1024xf32>
    %168 = vector.broadcast %167 : vector<1x1024xf32> to vector<4x1024xf32>
    %169 = arith.mulf %166, %168 : vector<4x1024xf32>
    %170 = vector.extract_strided_slice %157 {offsets = [0, 3], sizes = [4, 1024], strides = [1, 1]} : vector<4x1092xf32> to vector<4x1024xf32>
    %171 = vector.extract_strided_slice %1 {offsets = [3, 0], sizes = [1, 1024], strides = [1, 1]} : vector<25x1024xf32> to vector<1x1024xf32>
    %172 = vector.broadcast %171 : vector<1x1024xf32> to vector<4x1024xf32>
    %173 = arith.mulf %170, %172 : vector<4x1024xf32>
    %174 = vector.extract_strided_slice %157 {offsets = [0, 4], sizes = [4, 1024], strides = [1, 1]} : vector<4x1092xf32> to vector<4x1024xf32>
    %175 = vector.extract_strided_slice %1 {offsets = [4, 0], sizes = [1, 1024], strides = [1, 1]} : vector<25x1024xf32> to vector<1x1024xf32>
    %176 = vector.broadcast %175 : vector<1x1024xf32> to vector<4x1024xf32>
    %177 = arith.mulf %174, %176 : vector<4x1024xf32>
    %178 = vector.extract_strided_slice %157 {offsets = [0, 16], sizes = [4, 1024], strides = [1, 1]} : vector<4x1092xf32> to vector<4x1024xf32>
    %179 = vector.extract_strided_slice %1 {offsets = [5, 0], sizes = [1, 1024], strides = [1, 1]} : vector<25x1024xf32> to vector<1x1024xf32>
    %180 = vector.broadcast %179 : vector<1x1024xf32> to vector<4x1024xf32>
    %181 = arith.mulf %178, %180 : vector<4x1024xf32>
    %182 = vector.extract_strided_slice %157 {offsets = [0, 17], sizes = [4, 1024], strides = [1, 1]} : vector<4x1092xf32> to vector<4x1024xf32>
    %183 = vector.extract_strided_slice %1 {offsets = [6, 0], sizes = [1, 1024], strides = [1, 1]} : vector<25x1024xf32> to vector<1x1024xf32>
    %184 = vector.broadcast %183 : vector<1x1024xf32> to vector<4x1024xf32>
    %185 = arith.mulf %182, %184 : vector<4x1024xf32>
    %186 = vector.extract_strided_slice %157 {offsets = [0, 18], sizes = [4, 1024], strides = [1, 1]} : vector<4x1092xf32> to vector<4x1024xf32>
    %187 = vector.extract_strided_slice %1 {offsets = [7, 0], sizes = [1, 1024], strides = [1, 1]} : vector<25x1024xf32> to vector<1x1024xf32>
    %188 = vector.broadcast %187 : vector<1x1024xf32> to vector<4x1024xf32>
    %189 = arith.mulf %186, %188 : vector<4x1024xf32>
    %190 = vector.extract_strided_slice %157 {offsets = [0, 19], sizes = [4, 1024], strides = [1, 1]} : vector<4x1092xf32> to vector<4x1024xf32>
    %191 = vector.extract_strided_slice %1 {offsets = [8, 0], sizes = [1, 1024], strides = [1, 1]} : vector<25x1024xf32> to vector<1x1024xf32>
    %192 = vector.broadcast %191 : vector<1x1024xf32> to vector<4x1024xf32>
    %193 = arith.mulf %190, %192 : vector<4x1024xf32>
    %194 = vector.extract_strided_slice %157 {offsets = [0, 20], sizes = [4, 1024], strides = [1, 1]} : vector<4x1092xf32> to vector<4x1024xf32>
    %195 = vector.extract_strided_slice %1 {offsets = [9, 0], sizes = [1, 1024], strides = [1, 1]} : vector<25x1024xf32> to vector<1x1024xf32>
    %196 = vector.broadcast %195 : vector<1x1024xf32> to vector<4x1024xf32>
    %197 = arith.mulf %194, %196 : vector<4x1024xf32>
    %198 = vector.extract_strided_slice %157 {offsets = [0, 32], sizes = [4, 1024], strides = [1, 1]} : vector<4x1092xf32> to vector<4x1024xf32>
    %199 = vector.extract_strided_slice %1 {offsets = [10, 0], sizes = [1, 1024], strides = [1, 1]} : vector<25x1024xf32> to vector<1x1024xf32>
    %200 = vector.broadcast %199 : vector<1x1024xf32> to vector<4x1024xf32>
    %201 = arith.mulf %198, %200 : vector<4x1024xf32>
    %202 = vector.extract_strided_slice %157 {offsets = [0, 33], sizes = [4, 1024], strides = [1, 1]} : vector<4x1092xf32> to vector<4x1024xf32>
    %203 = vector.extract_strided_slice %1 {offsets = [11, 0], sizes = [1, 1024], strides = [1, 1]} : vector<25x1024xf32> to vector<1x1024xf32>
    %204 = vector.broadcast %203 : vector<1x1024xf32> to vector<4x1024xf32>
    %205 = arith.mulf %202, %204 : vector<4x1024xf32>
    %206 = vector.extract_strided_slice %157 {offsets = [0, 34], sizes = [4, 1024], strides = [1, 1]} : vector<4x1092xf32> to vector<4x1024xf32>
    %207 = vector.extract_strided_slice %1 {offsets = [12, 0], sizes = [1, 1024], strides = [1, 1]} : vector<25x1024xf32> to vector<1x1024xf32>
    %208 = vector.broadcast %207 : vector<1x1024xf32> to vector<4x1024xf32>
    %209 = arith.mulf %206, %208 : vector<4x1024xf32>
    %210 = vector.extract_strided_slice %157 {offsets = [0, 35], sizes = [4, 1024], strides = [1, 1]} : vector<4x1092xf32> to vector<4x1024xf32>
    %211 = vector.extract_strided_slice %1 {offsets = [13, 0], sizes = [1, 1024], strides = [1, 1]} : vector<25x1024xf32> to vector<1x1024xf32>
    %212 = vector.broadcast %211 : vector<1x1024xf32> to vector<4x1024xf32>
    %213 = arith.mulf %210, %212 : vector<4x1024xf32>
    %214 = vector.extract_strided_slice %157 {offsets = [0, 36], sizes = [4, 1024], strides = [1, 1]} : vector<4x1092xf32> to vector<4x1024xf32>
    %215 = vector.extract_strided_slice %1 {offsets = [14, 0], sizes = [1, 1024], strides = [1, 1]} : vector<25x1024xf32> to vector<1x1024xf32>
    %216 = vector.broadcast %215 : vector<1x1024xf32> to vector<4x1024xf32>
    %217 = arith.mulf %214, %216 : vector<4x1024xf32>
    %218 = vector.extract_strided_slice %157 {offsets = [0, 48], sizes = [4, 1024], strides = [1, 1]} : vector<4x1092xf32> to vector<4x1024xf32>
    %219 = vector.extract_strided_slice %1 {offsets = [15, 0], sizes = [1, 1024], strides = [1, 1]} : vector<25x1024xf32> to vector<1x1024xf32>
    %220 = vector.broadcast %219 : vector<1x1024xf32> to vector<4x1024xf32>
    %221 = arith.mulf %218, %220 : vector<4x1024xf32>
    %222 = vector.extract_strided_slice %157 {offsets = [0, 49], sizes = [4, 1024], strides = [1, 1]} : vector<4x1092xf32> to vector<4x1024xf32>
    %223 = vector.extract_strided_slice %1 {offsets = [16, 0], sizes = [1, 1024], strides = [1, 1]} : vector<25x1024xf32> to vector<1x1024xf32>
    %224 = vector.broadcast %223 : vector<1x1024xf32> to vector<4x1024xf32>
    %225 = arith.mulf %222, %224 : vector<4x1024xf32>
    %226 = vector.extract_strided_slice %157 {offsets = [0, 50], sizes = [4, 1024], strides = [1, 1]} : vector<4x1092xf32> to vector<4x1024xf32>
    %227 = vector.extract_strided_slice %1 {offsets = [17, 0], sizes = [1, 1024], strides = [1, 1]} : vector<25x1024xf32> to vector<1x1024xf32>
    %228 = vector.broadcast %227 : vector<1x1024xf32> to vector<4x1024xf32>
    %229 = arith.mulf %226, %228 : vector<4x1024xf32>
    %230 = vector.extract_strided_slice %157 {offsets = [0, 51], sizes = [4, 1024], strides = [1, 1]} : vector<4x1092xf32> to vector<4x1024xf32>
    %231 = vector.extract_strided_slice %1 {offsets = [18, 0], sizes = [1, 1024], strides = [1, 1]} : vector<25x1024xf32> to vector<1x1024xf32>
    %232 = vector.broadcast %231 : vector<1x1024xf32> to vector<4x1024xf32>
    %233 = arith.mulf %230, %232 : vector<4x1024xf32>
    %234 = vector.extract_strided_slice %157 {offsets = [0, 52], sizes = [4, 1024], strides = [1, 1]} : vector<4x1092xf32> to vector<4x1024xf32>
    %235 = vector.extract_strided_slice %1 {offsets = [19, 0], sizes = [1, 1024], strides = [1, 1]} : vector<25x1024xf32> to vector<1x1024xf32>
    %236 = vector.broadcast %235 : vector<1x1024xf32> to vector<4x1024xf32>
    %237 = arith.mulf %234, %236 : vector<4x1024xf32>
    %238 = vector.extract_strided_slice %157 {offsets = [0, 64], sizes = [4, 1024], strides = [1, 1]} : vector<4x1092xf32> to vector<4x1024xf32>
    %239 = vector.extract_strided_slice %1 {offsets = [20, 0], sizes = [1, 1024], strides = [1, 1]} : vector<25x1024xf32> to vector<1x1024xf32>
    %240 = vector.broadcast %239 : vector<1x1024xf32> to vector<4x1024xf32>
    %241 = arith.mulf %238, %240 : vector<4x1024xf32>
    %242 = vector.extract_strided_slice %157 {offsets = [0, 65], sizes = [4, 1024], strides = [1, 1]} : vector<4x1092xf32> to vector<4x1024xf32>
    %243 = vector.extract_strided_slice %1 {offsets = [21, 0], sizes = [1, 1024], strides = [1, 1]} : vector<25x1024xf32> to vector<1x1024xf32>
    %244 = vector.broadcast %243 : vector<1x1024xf32> to vector<4x1024xf32>
    %245 = arith.mulf %242, %244 : vector<4x1024xf32>
    %246 = vector.extract_strided_slice %157 {offsets = [0, 66], sizes = [4, 1024], strides = [1, 1]} : vector<4x1092xf32> to vector<4x1024xf32>
    %247 = vector.extract_strided_slice %1 {offsets = [22, 0], sizes = [1, 1024], strides = [1, 1]} : vector<25x1024xf32> to vector<1x1024xf32>
    %248 = vector.broadcast %247 : vector<1x1024xf32> to vector<4x1024xf32>
    %249 = arith.mulf %246, %248 : vector<4x1024xf32>
    %250 = vector.extract_strided_slice %157 {offsets = [0, 67], sizes = [4, 1024], strides = [1, 1]} : vector<4x1092xf32> to vector<4x1024xf32>
    %251 = vector.extract_strided_slice %1 {offsets = [23, 0], sizes = [1, 1024], strides = [1, 1]} : vector<25x1024xf32> to vector<1x1024xf32>
    %252 = vector.broadcast %251 : vector<1x1024xf32> to vector<4x1024xf32>
    %253 = arith.mulf %250, %252 : vector<4x1024xf32>
    %254 = vector.extract_strided_slice %157 {offsets = [0, 68], sizes = [4, 1024], strides = [1, 1]} : vector<4x1092xf32> to vector<4x1024xf32>
    %255 = vector.extract_strided_slice %1 {offsets = [24, 0], sizes = [1, 1024], strides = [1, 1]} : vector<25x1024xf32> to vector<1x1024xf32>
    %256 = vector.broadcast %255 : vector<1x1024xf32> to vector<4x1024xf32>
    %257 = arith.mulf %254, %256 : vector<4x1024xf32>
    %258 = tpu.concatenate %161, %165, %169, %173, %177, %181, %185, %189, %193, %197, %201, %205, %209, %213, %217, %221 in 0 : vector<4x1024xf32>, vector<4x1024xf32>, vector<4x1024xf32>, vector<4x1024xf32>, vector<4x1024xf32>, vector<4x1024xf32>, vector<4x1024xf32>, vector<4x1024xf32>, vector<4x1024xf32>, vector<4x1024xf32>, vector<4x1024xf32>, vector<4x1024xf32>, vector<4x1024xf32>, vector<4x1024xf32>, vector<4x1024xf32>, vector<4x1024xf32> -> vector<64x1024xf32>
    %259 = tpu.concatenate %225, %229, %233, %237, %241, %245, %249, %253, %257 in 0 : vector<4x1024xf32>, vector<4x1024xf32>, vector<4x1024xf32>, vector<4x1024xf32>, vector<4x1024xf32>, vector<4x1024xf32>, vector<4x1024xf32>, vector<4x1024xf32>, vector<4x1024xf32> -> vector<36x1024xf32>
    %260 = tpu.concatenate %258, %259 in 0 : vector<64x1024xf32>, vector<36x1024xf32> -> vector<100x1024xf32>
    %c0_15 = arith.constant 0 : index
    %c0_16 = arith.constant 0 : index
    %261 = vector.load %arg7[%c0_15, %c0_16] : memref<4x100xf32, #tpu.memory_space<vmem>>, vector<4x100xf32>
    %cst_17 = arith.constant dense<0.000000e+00> : vector<4x1024xf32>
    %262 = tpu.matmul %261, %260, %cst_17 {dimension_numbers = #tpu.dot_dimension_numbers<[1], [0], [0], [1], [0, 0, 1, 1], [], []>} : vector<4x100xf32>, vector<100x1024xf32>, vector<4x1024xf32> -> vector<4x1024xf32>
    %c0_18 = arith.constant 0 : index
    %c0_19 = arith.constant 0 : index
    %263 = vector.load %arg8[%c0_18, %c0_19] : memref<4x1xf32, #tpu.memory_space<vmem>>, vector<4x1xf32>
    %264 = vector.broadcast %263 : vector<4x1xf32> to vector<4x1024xf32>
    %265 = arith.addf %262, %264 : vector<4x1024xf32>
    %cst_20 = arith.constant 0.000000e+00 : f32
    %266 = vector.broadcast %cst_20 : f32 to vector<4x34xf32>
    %267 = tpu.concatenate %266, %265, %266 in 1 : vector<4x34xf32>, vector<4x1024xf32>, vector<4x34xf32> -> vector<4x1092xf32>
    %268 = vector.extract_strided_slice %267 {offsets = [0, 17], sizes = [4, 1024], strides = [1, 1]} : vector<4x1092xf32> to vector<4x1024xf32>
    %269 = vector.extract_strided_slice %1 {offsets = [6, 0], sizes = [1, 1024], strides = [1, 1]} : vector<25x1024xf32> to vector<1x1024xf32>
    %270 = vector.broadcast %269 : vector<1x1024xf32> to vector<4x1024xf32>
    %271 = arith.mulf %268, %270 : vector<4x1024xf32>
    %272 = vector.extract_strided_slice %267 {offsets = [0, 18], sizes = [4, 1024], strides = [1, 1]} : vector<4x1092xf32> to vector<4x1024xf32>
    %273 = vector.extract_strided_slice %1 {offsets = [7, 0], sizes = [1, 1024], strides = [1, 1]} : vector<25x1024xf32> to vector<1x1024xf32>
    %274 = vector.broadcast %273 : vector<1x1024xf32> to vector<4x1024xf32>
    %275 = arith.mulf %272, %274 : vector<4x1024xf32>
    %276 = vector.extract_strided_slice %267 {offsets = [0, 19], sizes = [4, 1024], strides = [1, 1]} : vector<4x1092xf32> to vector<4x1024xf32>
    %277 = vector.extract_strided_slice %1 {offsets = [8, 0], sizes = [1, 1024], strides = [1, 1]} : vector<25x1024xf32> to vector<1x1024xf32>
    %278 = vector.broadcast %277 : vector<1x1024xf32> to vector<4x1024xf32>
    %279 = arith.mulf %276, %278 : vector<4x1024xf32>
    %280 = vector.extract_strided_slice %267 {offsets = [0, 33], sizes = [4, 1024], strides = [1, 1]} : vector<4x1092xf32> to vector<4x1024xf32>
    %281 = vector.extract_strided_slice %1 {offsets = [11, 0], sizes = [1, 1024], strides = [1, 1]} : vector<25x1024xf32> to vector<1x1024xf32>
    %282 = vector.broadcast %281 : vector<1x1024xf32> to vector<4x1024xf32>
    %283 = arith.mulf %280, %282 : vector<4x1024xf32>
    %284 = vector.extract_strided_slice %267 {offsets = [0, 34], sizes = [4, 1024], strides = [1, 1]} : vector<4x1092xf32> to vector<4x1024xf32>
    %285 = vector.extract_strided_slice %1 {offsets = [12, 0], sizes = [1, 1024], strides = [1, 1]} : vector<25x1024xf32> to vector<1x1024xf32>
    %286 = vector.broadcast %285 : vector<1x1024xf32> to vector<4x1024xf32>
    %287 = arith.mulf %284, %286 : vector<4x1024xf32>
    %288 = vector.extract_strided_slice %267 {offsets = [0, 35], sizes = [4, 1024], strides = [1, 1]} : vector<4x1092xf32> to vector<4x1024xf32>
    %289 = vector.extract_strided_slice %1 {offsets = [13, 0], sizes = [1, 1024], strides = [1, 1]} : vector<25x1024xf32> to vector<1x1024xf32>
    %290 = vector.broadcast %289 : vector<1x1024xf32> to vector<4x1024xf32>
    %291 = arith.mulf %288, %290 : vector<4x1024xf32>
    %292 = vector.extract_strided_slice %267 {offsets = [0, 49], sizes = [4, 1024], strides = [1, 1]} : vector<4x1092xf32> to vector<4x1024xf32>
    %293 = vector.extract_strided_slice %1 {offsets = [16, 0], sizes = [1, 1024], strides = [1, 1]} : vector<25x1024xf32> to vector<1x1024xf32>
    %294 = vector.broadcast %293 : vector<1x1024xf32> to vector<4x1024xf32>
    %295 = arith.mulf %292, %294 : vector<4x1024xf32>
    %296 = vector.extract_strided_slice %267 {offsets = [0, 50], sizes = [4, 1024], strides = [1, 1]} : vector<4x1092xf32> to vector<4x1024xf32>
    %297 = vector.extract_strided_slice %1 {offsets = [17, 0], sizes = [1, 1024], strides = [1, 1]} : vector<25x1024xf32> to vector<1x1024xf32>
    %298 = vector.broadcast %297 : vector<1x1024xf32> to vector<4x1024xf32>
    %299 = arith.mulf %296, %298 : vector<4x1024xf32>
    %300 = vector.extract_strided_slice %267 {offsets = [0, 51], sizes = [4, 1024], strides = [1, 1]} : vector<4x1092xf32> to vector<4x1024xf32>
    %301 = vector.extract_strided_slice %1 {offsets = [18, 0], sizes = [1, 1024], strides = [1, 1]} : vector<25x1024xf32> to vector<1x1024xf32>
    %302 = vector.broadcast %301 : vector<1x1024xf32> to vector<4x1024xf32>
    %303 = arith.mulf %300, %302 : vector<4x1024xf32>
    %304 = tpu.concatenate %271, %275, %279, %283, %287, %291, %295, %299, %303 in 0 : vector<4x1024xf32>, vector<4x1024xf32>, vector<4x1024xf32>, vector<4x1024xf32>, vector<4x1024xf32>, vector<4x1024xf32>, vector<4x1024xf32>, vector<4x1024xf32>, vector<4x1024xf32> -> vector<36x1024xf32>
    %c0_21 = arith.constant 0 : index
    %c0_22 = arith.constant 0 : index
    %305 = vector.load %arg9[%c0_21, %c0_22] : memref<8x36xf32, #tpu.memory_space<vmem>>, vector<8x36xf32>
    %cst_23 = arith.constant dense<0.000000e+00> : vector<8x1024xf32>
    %306 = tpu.matmul %305, %304, %cst_23 {dimension_numbers = #tpu.dot_dimension_numbers<[1], [0], [0], [1], [0, 0, 1, 1], [], []>} : vector<8x36xf32>, vector<36x1024xf32>, vector<8x1024xf32> -> vector<8x1024xf32>
    %c0_24 = arith.constant 0 : index
    %c0_25 = arith.constant 0 : index
    %307 = vector.load %arg10[%c0_24, %c0_25] : memref<8x1xf32, #tpu.memory_space<vmem>>, vector<8x1xf32>
    %308 = vector.broadcast %307 : vector<8x1xf32> to vector<8x1024xf32>
    %309 = arith.addf %306, %308 : vector<8x1024xf32>
    %c0_26 = arith.constant 0 : index
    %c0_27 = arith.constant 0 : index
    %310 = vector.load %arg11[%c0_26, %c0_27] : memref<8x1024xf32, #tpu.memory_space<vmem>>, vector<8x1024xf32>
    tpu.vector_store %arg11[%c0_26, %c0_27], %309 {strides = array<i32>} : memref<8x1024xf32, #tpu.memory_space<vmem>>, vector<8x1024xf32>,
    return
  }
  func.func @transform_0(%arg0: i32) -> (i32, i32) {
    %c0_i32 = arith.constant 0 : i32
    %c0_i32_0 = arith.constant 0 : i32
    return %c0_i32, %arg0 : i32, i32
  }
  func.func @transform_1(%arg0: i32) -> (i32, i32) {
    %c0_i32 = arith.constant 0 : i32
    %c0_i32_0 = arith.constant 0 : i32
    %c0_i32_1 = arith.constant 0 : i32
    return %c0_i32, %c0_i32_0 : i32, i32
  }
  func.func @transform_2(%arg0: i32) -> (i32, i32) {
    %c0_i32 = arith.constant 0 : i32
    %c0_i32_0 = arith.constant 0 : i32
    %c0_i32_1 = arith.constant 0 : i32
    return %c0_i32, %c0_i32_0 : i32, i32
  }
  func.func @transform_3(%arg0: i32) -> (i32, i32) {
    %c0_i32 = arith.constant 0 : i32
    %c0_i32_0 = arith.constant 0 : i32
    %c0_i32_1 = arith.constant 0 : i32
    return %c0_i32, %c0_i32_0 : i32, i32
  }
  func.func @transform_4(%arg0: i32) -> (i32, i32) {
    %c0_i32 = arith.constant 0 : i32
    %c0_i32_0 = arith.constant 0 : i32
    %c0_i32_1 = arith.constant 0 : i32
    return %c0_i32, %c0_i32_0 : i32, i32
  }
  func.func @transform_5(%arg0: i32) -> (i32, i32) {
    %c0_i32 = arith.constant 0 : i32
    %c0_i32_0 = arith.constant 0 : i32
    %c0_i32_1 = arith.constant 0 : i32
    return %c0_i32, %c0_i32_0 : i32, i32
  }
  func.func @transform_6(%arg0: i32) -> (i32, i32) {
    %c0_i32 = arith.constant 0 : i32
    %c0_i32_0 = arith.constant 0 : i32
    %c0_i32_1 = arith.constant 0 : i32
    return %c0_i32, %c0_i32_0 : i32, i32
  }
  func.func @transform_7(%arg0: i32) -> (i32, i32) {
    %c0_i32 = arith.constant 0 : i32
    %c0_i32_0 = arith.constant 0 : i32
    %c0_i32_1 = arith.constant 0 : i32
    return %c0_i32, %c0_i32_0 : i32, i32
  }
  func.func @transform_8(%arg0: i32) -> (i32, i32) {
    %c0_i32 = arith.constant 0 : i32
    %c0_i32_0 = arith.constant 0 : i32
    %c0_i32_1 = arith.constant 0 : i32
    return %c0_i32, %c0_i32_0 : i32, i32
  }
  func.func @transform_9(%arg0: i32) -> (i32, i32) {
    %c0_i32 = arith.constant 0 : i32
    %c0_i32_0 = arith.constant 0 : i32
    %c0_i32_1 = arith.constant 0 : i32
    return %c0_i32, %c0_i32_0 : i32, i32
  }
  func.func @transform_10(%arg0: i32) -> (i32, i32) {
    %c0_i32 = arith.constant 0 : i32
    %c0_i32_0 = arith.constant 0 : i32
    return %c0_i32, %arg0 : i32, i32
  }
}

</mosaic_0001>

<llo_original>
// kernel: stacked_convs_block_ri_forward.1
$region0: #{stacked_convs_block_ri_forward.1}
  #allocation0 [shape = 'u32[]', space=smem, size = 0x4, offset = 0x4, fixed_abs, tag = 'smem constant byte address 0x4 - core index']
  #allocation1 [shape = 'u32[72,128]{1,0:T(1,128)}', space=vmem, size = 0x9000, scoped, tag = 'internal scratch']
  %s0 = inlined_call_operand.vmem [shape: f32[4,1024], index: 0, kind: input, shape index: {}]
  %s1 = inlined_call_operand.vmem [shape: f32[25,1024], index: 1, kind: input, shape index: {}]
  %s2 = inlined_call_operand.vmem [shape: f32[4,36], index: 2, kind: input, shape index: {}]
  %s3 = inlined_call_operand.vmem [shape: f32[4,1], index: 3, kind: input, shape index: {}]
  %s4 = inlined_call_operand.vmem [shape: f32[4,100], index: 4, kind: input, shape index: {}]
  %s5 = inlined_call_operand.vmem [shape: f32[4,1], index: 5, kind: input, shape index: {}]
  %s6 = inlined_call_operand.vmem [shape: f32[4,100], index: 6, kind: input, shape index: {}]
  %s7 = inlined_call_operand.vmem [shape: f32[4,1], index: 7, kind: input, shape index: {}]
  %s8 = inlined_call_operand.vmem [shape: f32[8,36], index: 8, kind: input, shape index: {}]
  %s9 = inlined_call_operand.vmem [shape: f32[8,1], index: 9, kind: input, shape index: {}]
  %s10 = inlined_call_operand.vmem [shape: f32[8,1024], index: 10, kind: output, shape index: {}]
  %s11 = sld [smem:[#allocation0]]
  $region50: #{stacked_convs_block_ri_forward.1} parent=0
    _
  %s13 = ssub.s32 1, %s11
  %s14 = scalar_select 0, %s13, %s11
  // Predicated region
  $region2: #{stacked_convs_block_ri_forward.1} parent=0 // pred_check
    _
  $region3: #{stacked_convs_block_ri_forward.1} parent=0 // pred_check_branch
    %16 = sbr.rel (0) target = $region5
  $region4: #{stacked_convs_block_ri_forward.1} parent=0 // pred_region
    _
  $region5: #{stacked_convs_block_ri_forward.1} parent=0 // pred_fallthru
    _
  // Predicated region
  $region6: #{stacked_convs_block_ri_forward.1} parent=0 // pred_check
    _
  $region7: #{stacked_convs_block_ri_forward.1} parent=0 // pred_check_branch
    %18 = sbr.rel (0) target = $region9
  $region8: #{stacked_convs_block_ri_forward.1} parent=0 // pred_region
    _
  $region9: #{stacked_convs_block_ri_forward.1} parent=0 // pred_fallthru
    _
  // Predicated region
  $region10: #{stacked_convs_block_ri_forward.1} parent=0 // pred_check
    _
  $region11: #{stacked_convs_block_ri_forward.1} parent=0 // pred_check_branch
    %20 = sbr.rel (0) target = $region13
  $region12: #{stacked_convs_block_ri_forward.1} parent=0 // pred_region
    _
  $region13: #{stacked_convs_block_ri_forward.1} parent=0 // pred_fallthru
    _
  // Predicated region
  $region14: #{stacked_convs_block_ri_forward.1} parent=0 // pred_check
    _
  $region15: #{stacked_convs_block_ri_forward.1} parent=0 // pred_check_branch
    %22 = sbr.rel (0) target = $region17
  $region16: #{stacked_convs_block_ri_forward.1} parent=0 // pred_region
    _
  $region17: #{stacked_convs_block_ri_forward.1} parent=0 // pred_fallthru
    _
  // Predicated region
  $region18: #{stacked_convs_block_ri_forward.1} parent=0 // pred_check
    _
  $region19: #{stacked_convs_block_ri_forward.1} parent=0 // pred_check_branch
    %24 = sbr.rel (0) target = $region21
  $region20: #{stacked_convs_block_ri_forward.1} parent=0 // pred_region
    _
  $region21: #{stacked_convs_block_ri_forward.1} parent=0 // pred_fallthru
    _
  // Predicated region
  $region22: #{stacked_convs_block_ri_forward.1} parent=0 // pred_check
    _
  $region23: #{stacked_convs_block_ri_forward.1} parent=0 // pred_check_branch
    %26 = sbr.rel (0) target = $region25
  $region24: #{stacked_convs_block_ri_forward.1} parent=0 // pred_region
    _
  $region25: #{stacked_convs_block_ri_forward.1} parent=0 // pred_fallthru
    _
  // Predicated region
  $region26: #{stacked_convs_block_ri_forward.1} parent=0 // pred_check
    _
  $region27: #{stacked_convs_block_ri_forward.1} parent=0 // pred_check_branch
    %28 = sbr.rel (0) target = $region29
  $region28: #{stacked_convs_block_ri_forward.1} parent=0 // pred_region
    _
  $region29: #{stacked_convs_block_ri_forward.1} parent=0 // pred_fallthru
    _
  // Predicated region
  $region30: #{stacked_convs_block_ri_forward.1} parent=0 // pred_check
    _
  $region31: #{stacked_convs_block_ri_forward.1} parent=0 // pred_check_branch
    %30 = sbr.rel (0) target = $region33
  $region32: #{stacked_convs_block_ri_forward.1} parent=0 // pred_region
    _
  $region33: #{stacked_convs_block_ri_forward.1} parent=0 // pred_fallthru
    _
  // Predicated region
  $region34: #{stacked_convs_block_ri_forward.1} parent=0 // pred_check
    _
  $region35: #{stacked_convs_block_ri_forward.1} parent=0 // pred_check_branch
    %32 = sbr.rel (0) target = $region37
  $region36: #{stacked_convs_block_ri_forward.1} parent=0 // pred_region
    _
  $region37: #{stacked_convs_block_ri_forward.1} parent=0 // pred_fallthru
    _
  // Predicated region
  $region38: #{stacked_convs_block_ri_forward.1} parent=0 // pred_check
    _
  $region39: #{stacked_convs_block_ri_forward.1} parent=0 // pred_check_branch
    %34 = sbr.rel (0) target = $region41
  $region40: #{stacked_convs_block_ri_forward.1} parent=0 // pred_region
    _
  $region41: #{stacked_convs_block_ri_forward.1} parent=0 // pred_fallthru
    _
  %v35 = vld [vmem:[%s0] sm:$0xff]
  %v36 = vld [vmem:[%s0 + $0x8] sm:$0xff]
  %v37 = vld [vmem:[%s0 + $0x10] sm:$0xff]
  %v38 = vld [vmem:[%s0 + $0x18] sm:$0xff]
  %v39 = vld [vmem:[%s1] sm:$0xff]
  %v40 = vld [vmem:[%s1 + $0x8] sm:$0xff]
  %v41 = vld [vmem:[%s1 + $0x10] sm:$0xff]
  %v42 = vld [vmem:[%s1 + $0x18] sm:$0xff]
  %v43 = vld [vmem:[%s1 + $0x20] sm:$0xff]
  %v44 = vld [vmem:[%s1 + $0x28] sm:$0xff]
  %v45 = vld [vmem:[%s1 + $0x30] sm:$0xff]
  %v46 = vld [vmem:[%s1 + $0x38] sm:$0xff]
  %v47 = vld [vmem:[%s1 + $0x40] sm:$0xff]
  %v48 = vld [vmem:[%s1 + $0x48] sm:$0xff]
  %v49 = vld [vmem:[%s1 + $0x50] sm:$0xff]
  %v50 = vld [vmem:[%s1 + $0x58] sm:$0xff]
  %v51 = vld [vmem:[%s1 + $0x60] sm:$0xff]
  %v52 = vld [vmem:[%s1 + $0x68] sm:$0xff]
  %v53 = vld [vmem:[%s1 + $0x70] sm:$0xff]
  %v54 = vld [vmem:[%s1 + $0x78] sm:$0xff]
  %v55 = vld [vmem:[%s1 + $0x80] sm:$0xff]
  %v56 = vld [vmem:[%s1 + $0x88] sm:$0xff]
  %v57 = vld [vmem:[%s1 + $0x90] sm:$0xff]
  %v58 = vld [vmem:[%s1 + $0x98] sm:$0xff]
  %v59 = vld [vmem:[%s1 + $0xa0] sm:$0xff]
  %v60 = vld [vmem:[%s1 + $0xa8] sm:$0xff]
  %v61 = vld [vmem:[%s1 + $0xb0] sm:$0xff]
  %v62 = vld [vmem:[%s1 + $0xb8] sm:$0xff]
  %v63 = vld [vmem:[%s1 + $0xc0] sm:$0x1]
  %v64 = vld [vmem:[%s1 + $0xc8] sm:$0x1]
  %v65 = vld [vmem:[%s1 + $0xd0] sm:$0x1]
  %v66 = vld [vmem:[%s1 + $0xd8] sm:$0x1]
  %v67 = vld [vmem:[%s1 + $0xe0] sm:$0x1]
  %v68 = vld [vmem:[%s1 + $0xe8] sm:$0x1]
  %v69 = vld [vmem:[%s1 + $0xf0] sm:$0x1]
  %v70 = vld [vmem:[%s1 + $0xf8] sm:$0x1]
  %75 = vst [vmem:[#allocation1] ss:$2 sm:$0xff] %v35
  %s76 = scalar_lea.vmem [#allocation1], 16
  %77 = vst [vmem:[%s76] ss:$2 sm:$0xff] %v36
  %s78 = scalar_lea.vmem [#allocation1], 32
  %79 = vst [vmem:[%s78] ss:$2 sm:$0xff] %v37
  %s80 = scalar_lea.vmem [#allocation1], 48
  %81 = vst [vmem:[%s80] ss:$2 sm:$0xff] %v38
  %v82 = vld.sshfl [vmem:[#allocation1] sm:$0xff pattern:$0x75316420]
  %v83 = vld.sshfl [vmem:[#allocation1 + $0x8] sm:$0xff pattern:$0x75316420]
  %v84 = vld.sshfl [vmem:[#allocation1 + $0x10] sm:$0xff pattern:$0x75316420]
  %v85 = vld.sshfl [vmem:[#allocation1 + $0x18] sm:$0xff pattern:$0x75316420]
  %v86 = vld.sshfl [vmem:[#allocation1 + $0x20] sm:$0xff pattern:$0x75316420]
  %v87 = vld.sshfl [vmem:[#allocation1 + $0x28] sm:$0xff pattern:$0x75316420]
  %v88 = vld.sshfl [vmem:[#allocation1 + $0x30] sm:$0xff pattern:$0x75316420]
  %v89 = vld.sshfl [vmem:[#allocation1 + $0x38] sm:$0xff pattern:$0x75316420]
  %90 = vrot.lane.b32.xlu0 %v82, 34
  %v91 = vpop.permute.xlu0 %90
  %92 = vrot.lane.b32.xlu0 %v83, 34
  %v93 = vpop.permute.xlu0 %92
  %94 = vrot.lane.b32.xlu0 %v84, 34
  %v95 = vpop.permute.xlu0 %94
  %96 = vrot.lane.b32.xlu0 %v85, 34
  %v97 = vpop.permute.xlu0 %96
  %98 = vrot.lane.b32.xlu0 %v86, 34
  %v99 = vpop.permute.xlu0 %98
  %100 = vrot.lane.b32.xlu0 %v87, 34
  %v101 = vpop.permute.xlu0 %100
  %102 = vrot.lane.b32.xlu0 %v88, 34
  %v103 = vpop.permute.xlu0 %102
  %104 = vrot.lane.b32.xlu0 %v89, 34
  %v105 = vpop.permute.xlu0 %104
  %vm106 = vcmask 277504
  %v107 = vsel %vm106, %v91, %v93
  %v108 = vsel %vm106, %v93, %v95
  %v109 = vsel %vm106, %v95, %v97
  %v110 = vsel %vm106, %v97, %v99
  %v111 = vsel %vm106, %v99, %v101
  %v112 = vsel %vm106, %v101, %v103
  %v113 = vsel %vm106, %v103, %v105
  %v123 = vsel %vm106, 0.0, %v91
  %v124 = vsel %vm106, %v105, 0.0
  %v125 = vperm.slane %v39, 6
  %v126 = vperm.slane %v40, 6
  %v127 = vperm.slane %v41, 6
  %v128 = vperm.slane %v42, 6
  %v129 = vperm.slane %v43, 6
  %v130 = vperm.slane %v44, 6
  %v131 = vperm.slane %v45, 6
  %v132 = vperm.slane %v46, 6
  %141 = vrot.lane.b32.xlu0 %v125, 17
  %v142 = vpop.permute.xlu0 %141
  %143 = vrot.lane.b32.xlu0 %v126, 17
  %v144 = vpop.permute.xlu0 %143
  %145 = vrot.lane.b32.xlu0 %v127, 17
  %v146 = vpop.permute.xlu0 %145
  %147 = vrot.lane.b32.xlu0 %v128, 17
  %v148 = vpop.permute.xlu0 %147
  %149 = vrot.lane.b32.xlu0 %v129, 17
  %v150 = vpop.permute.xlu0 %149
  %151 = vrot.lane.b32.xlu0 %v130, 17
  %v152 = vpop.permute.xlu0 %151
  %153 = vrot.lane.b32.xlu0 %v131, 17
  %v154 = vpop.permute.xlu0 %153
  %155 = vrot.lane.b32.xlu0 %v132, 17
  %v156 = vpop.permute.xlu0 %155
  %vm157 = vcmask 138240
  %v158 = vsel %vm157, %v142, %v144
  %v159 = vsel %vm157, %v144, %v146
  %v160 = vsel %vm157, %v146, %v148
  %v161 = vsel %vm157, %v148, %v150
  %v162 = vsel %vm157, %v150, %v152
  %v163 = vsel %vm157, %v152, %v154
  %v164 = vsel %vm157, %v154, %v156
  %v174 = vmul.f32 %v123, %v142
  %v175 = vmul.f32 %v107, %v158
  %v176 = vmul.f32 %v108, %v159
  %v177 = vmul.f32 %v109, %v160
  %v178 = vmul.f32 %v110, %v161
  %v179 = vmul.f32 %v111, %v162
  %v180 = vmul.f32 %v112, %v163
  %v181 = vmul.f32 %v113, %v164
  %v182 = vmul.f32 %v124, %v156
  %v183 = vperm.slane %v39, 7
  %v184 = vperm.slane %v40, 7
  %v185 = vperm.slane %v41, 7
  %v186 = vperm.slane %v42, 7
  %v187 = vperm.slane %v43, 7
  %v188 = vperm.slane %v44, 7
  %v189 = vperm.slane %v45, 7
  %v190 = vperm.slane %v46, 7
  %199 = vrot.lane.b32.xlu0 %v183, 18
  %v200 = vpop.permute.xlu0 %199
  %201 = vrot.lane.b32.xlu0 %v184, 18
  %v202 = vpop.permute.xlu0 %201
  %203 = vrot.lane.b32.xlu0 %v185, 18
  %v204 = vpop.permute.xlu0 %203
  %205 = vrot.lane.b32.xlu0 %v186, 18
  %v206 = vpop.permute.xlu0 %205
  %207 = vrot.lane.b32.xlu0 %v187, 18
  %v208 = vpop.permute.xlu0 %207
  %209 = vrot.lane.b32.xlu0 %v188, 18
  %v210 = vpop.permute.xlu0 %209
  %211 = vrot.lane.b32.xlu0 %v189, 18
  %v212 = vpop.permute.xlu0 %211
  %213 = vrot.lane.b32.xlu0 %v190, 18
  %v214 = vpop.permute.xlu0 %213
  %vm215 = vcmask 146432
  %v216 = vsel %vm215, %v200, %v202
  %v217 = vsel %vm215, %v202, %v204
  %v218 = vsel %vm215, %v204, %v206
  %v219 = vsel %vm215, %v206, %v208
  %v220 = vsel %vm215, %v208, %v210
  %v221 = vsel %vm215, %v210, %v212
  %v222 = vsel %vm215, %v212, %v214
  %v232 = vmul.f32 %v123, %v200
  %v233 = vmul.f32 %v107, %v216
  %v234 = vmul.f32 %v108, %v217
  %v235 = vmul.f32 %v109, %v218
  %v236 = vmul.f32 %v110, %v219
  %v237 = vmul.f32 %v111, %v220
  %v238 = vmul.f32 %v112, %v221
  %v239 = vmul.f32 %v113, %v222
  %v240 = vmul.f32 %v124, %v214
  %v241 = vperm.slane %v47, 0
  %v242 = vperm.slane %v48, 0
  %v243 = vperm.slane %v49, 0
  %v244 = vperm.slane %v50, 0
  %v245 = vperm.slane %v51, 0
  %v246 = vperm.slane %v52, 0
  %v247 = vperm.slane %v53, 0
  %v248 = vperm.slane %v54, 0
  %257 = vrot.lane.b32.xlu0 %v241, 19
  %v258 = vpop.permute.xlu0 %257
  %259 = vrot.lane.b32.xlu0 %v242, 19
  %v260 = vpop.permute.xlu0 %259
  %261 = vrot.lane.b32.xlu0 %v243, 19
  %v262 = vpop.permute.xlu0 %261
  %263 = vrot.lane.b32.xlu0 %v244, 19
  %v264 = vpop.permute.xlu0 %263
  %265 = vrot.lane.b32.xlu0 %v245, 19
  %v266 = vpop.permute.xlu0 %265
  %267 = vrot.lane.b32.xlu0 %v246, 19
  %v268 = vpop.permute.xlu0 %267
  %269 = vrot.lane.b32.xlu0 %v247, 19
  %v270 = vpop.permute.xlu0 %269
  %271 = vrot.lane.b32.xlu0 %v248, 19
  %v272 = vpop.permute.xlu0 %271
  %vm273 = vcmask 154624
  %v274 = vsel %vm273, %v258, %v260
  %v275 = vsel %vm273, %v260, %v262
  %v276 = vsel %vm273, %v262, %v264
  %v277 = vsel %vm273, %v264, %v266
  %v278 = vsel %vm273, %v266, %v268
  %v279 = vsel %vm273, %v268, %v270
  %v280 = vsel %vm273, %v270, %v272
  %v290 = vmul.f32 %v123, %v258
  %v291 = vmul.f32 %v107, %v274
  %v292 = vmul.f32 %v108, %v275
  %v293 = vmul.f32 %v109, %v276
  %v294 = vmul.f32 %v110, %v277
  %v295 = vmul.f32 %v111, %v278
  %v296 = vmul.f32 %v112, %v279
  %v297 = vmul.f32 %v113, %v280
  %v298 = vmul.f32 %v124, %v272
  %v299 = vperm.slane %v47, 3
  %v300 = vperm.slane %v48, 3
  %v301 = vperm.slane %v49, 3
  %v302 = vperm.slane %v50, 3
  %v303 = vperm.slane %v51, 3
  %v304 = vperm.slane %v52, 3
  %v305 = vperm.slane %v53, 3
  %v306 = vperm.slane %v54, 3
  %315 = vrot.lane.b32.xlu0 %v299, 33
  %v316 = vpop.permute.xlu0 %315
  %317 = vrot.lane.b32.xlu0 %v300, 33
  %v318 = vpop.permute.xlu0 %317
  %319 = vrot.lane.b32.xlu0 %v301, 33
  %v320 = vpop.permute.xlu0 %319
  %321 = vrot.lane.b32.xlu0 %v302, 33
  %v322 = vpop.permute.xlu0 %321
  %323 = vrot.lane.b32.xlu0 %v303, 33
  %v324 = vpop.permute.xlu0 %323
  %325 = vrot.lane.b32.xlu0 %v304, 33
  %v326 = vpop.permute.xlu0 %325
  %327 = vrot.lane.b32.xlu0 %v305, 33
  %v328 = vpop.permute.xlu0 %327
  %329 = vrot.lane.b32.xlu0 %v306, 33
  %v330 = vpop.permute.xlu0 %329
  %vm331 = vcmask 269312
  %v332 = vsel %vm331, %v316, %v318
  %v333 = vsel %vm331, %v318, %v320
  %v334 = vsel %vm331, %v320, %v322
  %v335 = vsel %vm331, %v322, %v324
  %v336 = vsel %vm331, %v324, %v326
  %v337 = vsel %vm331, %v326, %v328
  %v338 = vsel %vm331, %v328, %v330
  %v348 = vmul.f32 %v123, %v316
  %v349 = vmul.f32 %v107, %v332
  %v350 = vmul.f32 %v108, %v333
  %v351 = vmul.f32 %v109, %v334
  %v352 = vmul.f32 %v110, %v335
  %v353 = vmul.f32 %v111, %v336
  %v354 = vmul.f32 %v112, %v337
  %v355 = vmul.f32 %v113, %v338
  %v356 = vmul.f32 %v124, %v330
  %v357 = vperm.slane %v47, 4
  %v358 = vperm.slane %v48, 4
  %v359 = vperm.slane %v49, 4
  %v360 = vperm.slane %v50, 4
  %v361 = vperm.slane %v51, 4
  %v362 = vperm.slane %v52, 4
  %v363 = vperm.slane %v53, 4
  %v364 = vperm.slane %v54, 4
  %373 = vrot.lane.b32.xlu0 %v357, 34
  %v374 = vpop.permute.xlu0 %373
  %375 = vrot.lane.b32.xlu0 %v358, 34
  %v376 = vpop.permute.xlu0 %375
  %377 = vrot.lane.b32.xlu0 %v359, 34
  %v378 = vpop.permute.xlu0 %377
  %379 = vrot.lane.b32.xlu0 %v360, 34
  %v380 = vpop.permute.xlu0 %379
  %381 = vrot.lane.b32.xlu0 %v361, 34
  %v382 = vpop.permute.xlu0 %381
  %383 = vrot.lane.b32.xlu0 %v362, 34
  %v384 = vpop.permute.xlu0 %383
  %385 = vrot.lane.b32.xlu0 %v363, 34
  %v386 = vpop.permute.xlu0 %385
  %387 = vrot.lane.b32.xlu0 %v364, 34
  %v388 = vpop.permute.xlu0 %387
  %v389 = vsel %vm106, %v374, %v376
  %v390 = vsel %vm106, %v376, %v378
  %v391 = vsel %vm106, %v378, %v380
  %v392 = vsel %vm106, %v380, %v382
  %v393 = vsel %vm106, %v382, %v384
  %v394 = vsel %vm106, %v384, %v386
  %v395 = vsel %vm106, %v386, %v388
  %v405 = vmul.f32 %v123, %v374
  %v406 = vmul.f32 %v107, %v389
  %v407 = vmul.f32 %v108, %v390
  %v408 = vmul.f32 %v109, %v391
  %v409 = vmul.f32 %v110, %v392
  %v410 = vmul.f32 %v111, %v393
  %v411 = vmul.f32 %v112, %v394
  %v412 = vmul.f32 %v113, %v395
  %v413 = vmul.f32 %v124, %v388
  %v414 = vperm.slane %v47, 5
  %v415 = vperm.slane %v48, 5
  %v416 = vperm.slane %v49, 5
  %v417 = vperm.slane %v50, 5
  %v418 = vperm.slane %v51, 5
  %v419 = vperm.slane %v52, 5
  %v420 = vperm.slane %v53, 5
  %v421 = vperm.slane %v54, 5
  %430 = vrot.lane.b32.xlu0 %v414, 35
  %v431 = vpop.permute.xlu0 %430
  %432 = vrot.lane.b32.xlu0 %v415, 35
  %v433 = vpop.permute.xlu0 %432
  %434 = vrot.lane.b32.xlu0 %v416, 35
  %v435 = vpop.permute.xlu0 %434
  %436 = vrot.lane.b32.xlu0 %v417, 35
  %v437 = vpop.permute.xlu0 %436
  %438 = vrot.lane.b32.xlu0 %v418, 35
  %v439 = vpop.permute.xlu0 %438
  %440 = vrot.lane.b32.xlu0 %v419, 35
  %v441 = vpop.permute.xlu0 %440
  %442 = vrot.lane.b32.xlu0 %v420, 35
  %v443 = vpop.permute.xlu0 %442
  %444 = vrot.lane.b32.xlu0 %v421, 35
  %v445 = vpop.permute.xlu0 %444
  %vm446 = vcmask 285696
  %v447 = vsel %vm446, %v431, %v433
  %v448 = vsel %vm446, %v433, %v435
  %v449 = vsel %vm446, %v435, %v437
  %v450 = vsel %vm446, %v437, %v439
  %v451 = vsel %vm446, %v439, %v441
  %v452 = vsel %vm446, %v441, %v443
  %v453 = vsel %vm446, %v443, %v445
  %v463 = vmul.f32 %v123, %v431
  %v464 = vmul.f32 %v107, %v447
  %v465 = vmul.f32 %v108, %v448
  %v466 = vmul.f32 %v109, %v449
  %v467 = vmul.f32 %v110, %v450
  %v468 = vmul.f32 %v111, %v451
  %v469 = vmul.f32 %v112, %v452
  %v470 = vmul.f32 %v113, %v453
  %v471 = vmul.f32 %v124, %v445
  %v472 = vperm.slane %v55, 0
  %v473 = vperm.slane %v56, 0
  %v474 = vperm.slane %v57, 0
  %v475 = vperm.slane %v58, 0
  %v476 = vperm.slane %v59, 0
  %v477 = vperm.slane %v60, 0
  %v478 = vperm.slane %v61, 0
  %v479 = vperm.slane %v62, 0
  %488 = vrot.lane.b32.xlu0 %v472, 49
  %v489 = vpop.permute.xlu0 %488
  %490 = vrot.lane.b32.xlu0 %v473, 49
  %v491 = vpop.permute.xlu0 %490
  %492 = vrot.lane.b32.xlu0 %v474, 49
  %v493 = vpop.permute.xlu0 %492
  %494 = vrot.lane.b32.xlu0 %v475, 49
  %v495 = vpop.permute.xlu0 %494
  %496 = vrot.lane.b32.xlu0 %v476, 49
  %v497 = vpop.permute.xlu0 %496
  %498 = vrot.lane.b32.xlu0 %v477, 49
  %v499 = vpop.permute.xlu0 %498
  %500 = vrot.lane.b32.xlu0 %v478, 49
  %v501 = vpop.permute.xlu0 %500
  %502 = vrot.lane.b32.xlu0 %v479, 49
  %v503 = vpop.permute.xlu0 %502
  %vm504 = vcmask 400384
  %v505 = vsel %vm504, %v489, %v491
  %v506 = vsel %vm504, %v491, %v493
  %v507 = vsel %vm504, %v493, %v495
  %v508 = vsel %vm504, %v495, %v497
  %v509 = vsel %vm504, %v497, %v499
  %v510 = vsel %vm504, %v499, %v501
  %v511 = vsel %vm504, %v501, %v503
  %v521 = vmul.f32 %v123, %v489
  %v522 = vmul.f32 %v107, %v505
  %v523 = vmul.f32 %v108, %v506
  %v524 = vmul.f32 %v109, %v507
  %v525 = vmul.f32 %v110, %v508
  %v526 = vmul.f32 %v111, %v509
  %v527 = vmul.f32 %v112, %v510
  %v528 = vmul.f32 %v113, %v511
  %v529 = vmul.f32 %v124, %v503
  %v530 = vperm.slane %v55, 1
  %v531 = vperm.slane %v56, 1
  %v532 = vperm.slane %v57, 1
  %v533 = vperm.slane %v58, 1
  %v534 = vperm.slane %v59, 1
  %v535 = vperm.slane %v60, 1
  %v536 = vperm.slane %v61, 1
  %v537 = vperm.slane %v62, 1
  %546 = vrot.lane.b32.xlu0 %v530, 50
  %v547 = vpop.permute.xlu0 %546
  %548 = vrot.lane.b32.xlu0 %v531, 50
  %v549 = vpop.permute.xlu0 %548
  %550 = vrot.lane.b32.xlu0 %v532, 50
  %v551 = vpop.permute.xlu0 %550
  %552 = vrot.lane.b32.xlu0 %v533, 50
  %v553 = vpop.permute.xlu0 %552
  %554 = vrot.lane.b32.xlu0 %v534, 50
  %v555 = vpop.permute.xlu0 %554
  %556 = vrot.lane.b32.xlu0 %v535, 50
  %v557 = vpop.permute.xlu0 %556
  %558 = vrot.lane.b32.xlu0 %v536, 50
  %v559 = vpop.permute.xlu0 %558
  %560 = vrot.lane.b32.xlu0 %v537, 50
  %v561 = vpop.permute.xlu0 %560
  %vm562 = vcmask 408576
  %v563 = vsel %vm562, %v547, %v549
  %v564 = vsel %vm562, %v549, %v551
  %v565 = vsel %vm562, %v551, %v553
  %v566 = vsel %vm562, %v553, %v555
  %v567 = vsel %vm562, %v555, %v557
  %v568 = vsel %vm562, %v557, %v559
  %v569 = vsel %vm562, %v559, %v561
  %v579 = vmul.f32 %v123, %v547
  %v580 = vmul.f32 %v107, %v563
  %v581 = vmul.f32 %v108, %v564
  %v582 = vmul.f32 %v109, %v565
  %v583 = vmul.f32 %v110, %v566
  %v584 = vmul.f32 %v111, %v567
  %v585 = vmul.f32 %v112, %v568
  %v586 = vmul.f32 %v113, %v569
  %v587 = vmul.f32 %v124, %v561
  %v588 = vperm.slane %v55, 2
  %v589 = vperm.slane %v56, 2
  %v590 = vperm.slane %v57, 2
  %v591 = vperm.slane %v58, 2
  %v592 = vperm.slane %v59, 2
  %v593 = vperm.slane %v60, 2
  %v594 = vperm.slane %v61, 2
  %v595 = vperm.slane %v62, 2
  %604 = vrot.lane.b32.xlu0 %v588, 51
  %v605 = vpop.permute.xlu0 %604
  %606 = vrot.lane.b32.xlu0 %v589, 51
  %v607 = vpop.permute.xlu0 %606
  %608 = vrot.lane.b32.xlu0 %v590, 51
  %v609 = vpop.permute.xlu0 %608
  %610 = vrot.lane.b32.xlu0 %v591, 51
  %v611 = vpop.permute.xlu0 %610
  %612 = vrot.lane.b32.xlu0 %v592, 51
  %v613 = vpop.permute.xlu0 %612
  %614 = vrot.lane.b32.xlu0 %v593, 51
  %v615 = vpop.permute.xlu0 %614
  %616 = vrot.lane.b32.xlu0 %v594, 51
  %v617 = vpop.permute.xlu0 %616
  %618 = vrot.lane.b32.xlu0 %v595, 51
  %v619 = vpop.permute.xlu0 %618
  %vm620 = vcmask 416768
  %v621 = vsel %vm620, %v605, %v607
  %v622 = vsel %vm620, %v607, %v609
  %v623 = vsel %vm620, %v609, %v611
  %v624 = vsel %vm620, %v611, %v613
  %v625 = vsel %vm620, %v613, %v615
  %v626 = vsel %vm620, %v615, %v617
  %v627 = vsel %vm620, %v617, %v619
  %v637 = vmul.f32 %v123, %v605
  %v638 = vmul.f32 %v107, %v621
  %v639 = vmul.f32 %v108, %v622
  %v640 = vmul.f32 %v109, %v623
  %v641 = vmul.f32 %v110, %v624
  %v642 = vmul.f32 %v111, %v625
  %v643 = vmul.f32 %v112, %v626
  %v644 = vmul.f32 %v113, %v627
  %v645 = vmul.f32 %v124, %v619
  %v655 = vrot.slane %v232, 4
  %v656 = vrot.slane %v233, 4
  %v657 = vrot.slane %v234, 4
  %v658 = vrot.slane %v235, 4
  %v659 = vrot.slane %v236, 4
  %v660 = vrot.slane %v237, 4
  %v661 = vrot.slane %v238, 4
  %v662 = vrot.slane %v239, 4
  %v663 = vrot.slane %v240, 4
  %664 = vrot.lane.b32.xlu0 %v655, 127
  %v665 = vpop.permute.xlu0 %664
  %666 = vrot.lane.b32.xlu0 %v656, 127
  %v667 = vpop.permute.xlu0 %666
  %668 = vrot.lane.b32.xlu0 %v657, 127
  %v669 = vpop.permute.xlu0 %668
  %670 = vrot.lane.b32.xlu0 %v658, 127
  %v671 = vpop.permute.xlu0 %670
  %672 = vrot.lane.b32.xlu0 %v659, 127
  %v673 = vpop.permute.xlu0 %672
  %674 = vrot.lane.b32.xlu0 %v660, 127
  %v675 = vpop.permute.xlu0 %674
  %676 = vrot.lane.b32.xlu0 %v661, 127
  %v677 = vpop.permute.xlu0 %676
  %678 = vrot.lane.b32.xlu0 %v662, 127
  %v679 = vpop.permute.xlu0 %678
  %680 = vrot.lane.b32.xlu0 %v663, 127
  %v681 = vpop.permute.xlu0 %680
  %vm682 = vcmask 1039360
  %v683 = vsel %vm682, %v665, %v667
  %v684 = vsel %vm682, %v667, %v669
  %v685 = vsel %vm682, %v669, %v671
  %v686 = vsel %vm682, %v671, %v673
  %v687 = vsel %vm682, %v673, %v675
  %v688 = vsel %vm682, %v675, %v677
  %v689 = vsel %vm682, %v677, %v679
  %v690 = vsel %vm682, %v679, %v681
  %709 = vrot.lane.b32.xlu0 %v290, 126
  %v710 = vpop.permute.xlu0 %709
  %711 = vrot.lane.b32.xlu0 %v291, 126
  %v712 = vpop.permute.xlu0 %711
  %713 = vrot.lane.b32.xlu0 %v292, 126
  %v714 = vpop.permute.xlu0 %713
  %715 = vrot.lane.b32.xlu0 %v293, 126
  %v716 = vpop.permute.xlu0 %715
  %717 = vrot.lane.b32.xlu0 %v294, 126
  %v718 = vpop.permute.xlu0 %717
  %719 = vrot.lane.b32.xlu0 %v295, 126
  %v720 = vpop.permute.xlu0 %719
  %721 = vrot.lane.b32.xlu0 %v296, 126
  %v722 = vpop.permute.xlu0 %721
  %723 = vrot.lane.b32.xlu0 %v297, 126
  %v724 = vpop.permute.xlu0 %723
  %725 = vrot.lane.b32.xlu0 %v298, 126
  %v726 = vpop.permute.xlu0 %725
  %vm727 = vcmask 1031168
  %v728 = vsel %vm727, %v710, %v712
  %v729 = vsel %vm727, %v712, %v714
  %v730 = vsel %vm727, %v714, %v716
  %v731 = vsel %vm727, %v716, %v718
  %v732 = vsel %vm727, %v718, %v720
  %v733 = vsel %vm727, %v720, %v722
  %v734 = vsel %vm727, %v722, %v724
  %v735 = vsel %vm727, %v724, %v726
  %v754 = vrot.slane %v348, 4
  %v755 = vrot.slane %v349, 4
  %v756 = vrot.slane %v350, 4
  %v757 = vrot.slane %v351, 4
  %v758 = vrot.slane %v352, 4
  %v759 = vrot.slane %v353, 4
  %v760 = vrot.slane %v354, 4
  %v761 = vrot.slane %v355, 4
  %v762 = vrot.slane %v356, 4
  %763 = vrot.lane.b32.xlu0 %v754, 112
  %v764 = vpop.permute.xlu0 %763
  %765 = vrot.lane.b32.xlu0 %v755, 112
  %v766 = vpop.permute.xlu0 %765
  %767 = vrot.lane.b32.xlu0 %v756, 112
  %v768 = vpop.permute.xlu0 %767
  %769 = vrot.lane.b32.xlu0 %v757, 112
  %v770 = vpop.permute.xlu0 %769
  %771 = vrot.lane.b32.xlu0 %v758, 112
  %v772 = vpop.permute.xlu0 %771
  %773 = vrot.lane.b32.xlu0 %v759, 112
  %v774 = vpop.permute.xlu0 %773
  %775 = vrot.lane.b32.xlu0 %v760, 112
  %v776 = vpop.permute.xlu0 %775
  %777 = vrot.lane.b32.xlu0 %v761, 112
  %v778 = vpop.permute.xlu0 %777
  %779 = vrot.lane.b32.xlu0 %v762, 112
  %v780 = vpop.permute.xlu0 %779
  %vm781 = vcmask 916480
  %v782 = vsel %vm781, %v764, %v766
  %v783 = vsel %vm781, %v766, %v768
  %v784 = vsel %vm781, %v768, %v770
  %v785 = vsel %vm781, %v770, %v772
  %v786 = vsel %vm781, %v772, %v774
  %v787 = vsel %vm781, %v774, %v776
  %v788 = vsel %vm781, %v776, %v778
  %v789 = vsel %vm781, %v778, %v780
  %808 = vrot.lane.b32.xlu0 %v405, 111
  %v809 = vpop.permute.xlu0 %808
  %810 = vrot.lane.b32.xlu0 %v406, 111
  %v811 = vpop.permute.xlu0 %810
  %812 = vrot.lane.b32.xlu0 %v407, 111
  %v813 = vpop.permute.xlu0 %812
  %814 = vrot.lane.b32.xlu0 %v408, 111
  %v815 = vpop.permute.xlu0 %814
  %816 = vrot.lane.b32.xlu0 %v409, 111
  %v817 = vpop.permute.xlu0 %816
  %818 = vrot.lane.b32.xlu0 %v410, 111
  %v819 = vpop.permute.xlu0 %818
  %820 = vrot.lane.b32.xlu0 %v411, 111
  %v821 = vpop.permute.xlu0 %820
  %822 = vrot.lane.b32.xlu0 %v412, 111
  %v823 = vpop.permute.xlu0 %822
  %824 = vrot.lane.b32.xlu0 %v413, 111
  %v825 = vpop.permute.xlu0 %824
  %vm826 = vcmask 908288
  %v827 = vsel %vm826, %v809, %v811
  %v828 = vsel %vm826, %v811, %v813
  %v829 = vsel %vm826, %v813, %v815
  %v830 = vsel %vm826, %v815, %v817
  %v831 = vsel %vm826, %v817, %v819
  %v832 = vsel %vm826, %v819, %v821
  %v833 = vsel %vm826, %v821, %v823
  %v834 = vsel %vm826, %v823, %v825
  %v853 = vrot.slane %v463, 4
  %v854 = vrot.slane %v464, 4
  %v855 = vrot.slane %v465, 4
  %v856 = vrot.slane %v466, 4
  %v857 = vrot.slane %v467, 4
  %v858 = vrot.slane %v468, 4
  %v859 = vrot.slane %v469, 4
  %v860 = vrot.slane %v470, 4
  %v861 = vrot.slane %v471, 4
  %862 = vrot.lane.b32.xlu0 %v853, 110
  %v863 = vpop.permute.xlu0 %862
  %864 = vrot.lane.b32.xlu0 %v854, 110
  %v865 = vpop.permute.xlu0 %864
  %866 = vrot.lane.b32.xlu0 %v855, 110
  %v867 = vpop.permute.xlu0 %866
  %868 = vrot.lane.b32.xlu0 %v856, 110
  %v869 = vpop.permute.xlu0 %868
  %870 = vrot.lane.b32.xlu0 %v857, 110
  %v871 = vpop.permute.xlu0 %870
  %872 = vrot.lane.b32.xlu0 %v858, 110
  %v873 = vpop.permute.xlu0 %872
  %874 = vrot.lane.b32.xlu0 %v859, 110
  %v875 = vpop.permute.xlu0 %874
  %876 = vrot.lane.b32.xlu0 %v860, 110
  %v877 = vpop.permute.xlu0 %876
  %878 = vrot.lane.b32.xlu0 %v861, 110
  %v879 = vpop.permute.xlu0 %878
  %vm880 = vcmask 900096
  %v881 = vsel %vm880, %v863, %v865
  %v882 = vsel %vm880, %v865, %v867
  %v883 = vsel %vm880, %v867, %v869
  %v884 = vsel %vm880, %v869, %v871
  %v885 = vsel %vm880, %v871, %v873
  %v886 = vsel %vm880, %v873, %v875
  %v887 = vsel %vm880, %v875, %v877
  %v888 = vsel %vm880, %v877, %v879
  %907 = vrot.lane.b32.xlu0 %v521, 96
  %v908 = vpop.permute.xlu0 %907
  %909 = vrot.lane.b32.xlu0 %v522, 96
  %v910 = vpop.permute.xlu0 %909
  %911 = vrot.lane.b32.xlu0 %v523, 96
  %v912 = vpop.permute.xlu0 %911
  %913 = vrot.lane.b32.xlu0 %v524, 96
  %v914 = vpop.permute.xlu0 %913
  %915 = vrot.lane.b32.xlu0 %v525, 96
  %v916 = vpop.permute.xlu0 %915
  %917 = vrot.lane.b32.xlu0 %v526, 96
  %v918 = vpop.permute.xlu0 %917
  %919 = vrot.lane.b32.xlu0 %v527, 96
  %v920 = vpop.permute.xlu0 %919
  %921 = vrot.lane.b32.xlu0 %v528, 96
  %v922 = vpop.permute.xlu0 %921
  %923 = vrot.lane.b32.xlu0 %v529, 96
  %v924 = vpop.permute.xlu0 %923
  %vm925 = vcmask 785408
  %v926 = vsel %vm925, %v908, %v910
  %v927 = vsel %vm925, %v910, %v912
  %v928 = vsel %vm925, %v912, %v914
  %v929 = vsel %vm925, %v914, %v916
  %v930 = vsel %vm925, %v916, %v918
  %v931 = vsel %vm925, %v918, %v920
  %v932 = vsel %vm925, %v920, %v922
  %v933 = vsel %vm925, %v922, %v924
  %v952 = vrot.slane %v579, 4
  %v953 = vrot.slane %v580, 4
  %v954 = vrot.slane %v581, 4
  %v955 = vrot.slane %v582, 4
  %v956 = vrot.slane %v583, 4
  %v957 = vrot.slane %v584, 4
  %v958 = vrot.slane %v585, 4
  %v959 = vrot.slane %v586, 4
  %v960 = vrot.slane %v587, 4
  %961 = vrot.lane.b32.xlu0 %v952, 95
  %v962 = vpop.permute.xlu0 %961
  %963 = vrot.lane.b32.xlu0 %v953, 95
  %v964 = vpop.permute.xlu0 %963
  %965 = vrot.lane.b32.xlu0 %v954, 95
  %v966 = vpop.permute.xlu0 %965
  %967 = vrot.lane.b32.xlu0 %v955, 95
  %v968 = vpop.permute.xlu0 %967
  %969 = vrot.lane.b32.xlu0 %v956, 95
  %v970 = vpop.permute.xlu0 %969
  %971 = vrot.lane.b32.xlu0 %v957, 95
  %v972 = vpop.permute.xlu0 %971
  %973 = vrot.lane.b32.xlu0 %v958, 95
  %v974 = vpop.permute.xlu0 %973
  %975 = vrot.lane.b32.xlu0 %v959, 95
  %v976 = vpop.permute.xlu0 %975
  %977 = vrot.lane.b32.xlu0 %v960, 95
  %v978 = vpop.permute.xlu0 %977
  %vm979 = vcmask 777216
  %v980 = vsel %vm979, %v962, %v964
  %v981 = vsel %vm979, %v964, %v966
  %v982 = vsel %vm979, %v966, %v968
  %v983 = vsel %vm979, %v968, %v970
  %v984 = vsel %vm979, %v970, %v972
  %v985 = vsel %vm979, %v972, %v974
  %v986 = vsel %vm979, %v974, %v976
  %v987 = vsel %vm979, %v976, %v978
  %1006 = vrot.lane.b32.xlu0 %v637, 94
  %v1007 = vpop.permute.xlu0 %1006
  %1008 = vrot.lane.b32.xlu0 %v638, 94
  %v1009 = vpop.permute.xlu0 %1008
  %1010 = vrot.lane.b32.xlu0 %v639, 94
  %v1011 = vpop.permute.xlu0 %1010
  %1012 = vrot.lane.b32.xlu0 %v640, 94
  %v1013 = vpop.permute.xlu0 %1012
  %1014 = vrot.lane.b32.xlu0 %v641, 94
  %v1015 = vpop.permute.xlu0 %1014
  %1016 = vrot.lane.b32.xlu0 %v642, 94
  %v1017 = vpop.permute.xlu0 %1016
  %1018 = vrot.lane.b32.xlu0 %v643, 94
  %v1019 = vpop.permute.xlu0 %1018
  %1020 = vrot.lane.b32.xlu0 %v644, 94
  %v1021 = vpop.permute.xlu0 %1020
  %1022 = vrot.lane.b32.xlu0 %v645, 94
  %v1023 = vpop.permute.xlu0 %1022
  %vm1024 = vcmask 769024
  %v1025 = vsel %vm1024, %v1007, %v1009
  %v1026 = vsel %vm1024, %v1009, %v1011
  %v1027 = vsel %vm1024, %v1011, %v1013
  %v1028 = vsel %vm1024, %v1013, %v1015
  %v1029 = vsel %vm1024, %v1015, %v1017
  %v1030 = vsel %vm1024, %v1017, %v1019
  %v1031 = vsel %vm1024, %v1019, %v1021
  %v1032 = vsel %vm1024, %v1021, %v1023
  %vm1033 = vcmask 1043456
  %v1034 = vsel %vm1033, %v174, %v683
  %v1035 = vsel %vm1033, %v175, %v684
  %v1036 = vsel %vm1033, %v176, %v685
  %v1037 = vsel %vm1033, %v177, %v686
  %v1038 = vsel %vm1033, %v178, %v687
  %v1039 = vsel %vm1033, %v179, %v688
  %v1040 = vsel %vm1033, %v180, %v689
  %v1041 = vsel %vm1033, %v181, %v690
  %v1042 = vsel %vm1033, %v182, %v681
  %v1043 = vsel %vm1033, %v728, %v782
  %v1044 = vsel %vm1033, %v729, %v783
  %v1045 = vsel %vm1033, %v730, %v784
  %v1046 = vsel %vm1033, %v731, %v785
  %v1047 = vsel %vm1033, %v732, %v786
  %v1048 = vsel %vm1033, %v733, %v787
  %v1049 = vsel %vm1033, %v734, %v788
  %v1050 = vsel %vm1033, %v735, %v789
  %v1051 = vsel %vm1033, %v726, %v780
  %v1052 = vsel %vm1033, %v827, %v881
  %v1053 = vsel %vm1033, %v828, %v882
  %v1054 = vsel %vm1033, %v829, %v883
  %v1055 = vsel %vm1033, %v830, %v884
  %v1056 = vsel %vm1033, %v831, %v885
  %v1057 = vsel %vm1033, %v832, %v886
  %v1058 = vsel %vm1033, %v833, %v887
  %v1059 = vsel %vm1033, %v834, %v888
  %v1060 = vsel %vm1033, %v825, %v879
  %v1061 = vsel %vm1033, %v926, %v980
  %v1062 = vsel %vm1033, %v927, %v981
  %v1063 = vsel %vm1033, %v928, %v982
  %v1064 = vsel %vm1033, %v929, %v983
  %v1065 = vsel %vm1033, %v930, %v984
  %v1066 = vsel %vm1033, %v931, %v985
  %v1067 = vsel %vm1033, %v932, %v986
  %v1068 = vsel %vm1033, %v933, %v987
  %v1069 = vsel %vm1033, %v924, %v978
  %v1070 = vld [vmem:[%s2] sm:$0xf]
  %v1071 = vld [vmem:[%s3] sm:$0xf]
  %1073 = vset.pattern.permute.xlu0 0
  %1074 = vperm.xlu0 %1073, %v1071
  %v1075 = vpop.permute.xlu0 %1074
  %1113 = vrot.lane.b32.xlu0 %v1034, 111
  %v1114 = vpop.permute.xlu0 %1113
  %1115 = vrot.lane.b32.xlu0 %v1035, 111
  %v1116 = vpop.permute.xlu0 %1115
  %1117 = vrot.lane.b32.xlu0 %v1036, 111
  %v1118 = vpop.permute.xlu0 %1117
  %1119 = vrot.lane.b32.xlu0 %v1037, 111
  %v1120 = vpop.permute.xlu0 %1119
  %1121 = vrot.lane.b32.xlu0 %v1038, 111
  %v1122 = vpop.permute.xlu0 %1121
  %1123 = vrot.lane.b32.xlu0 %v1039, 111
  %v1124 = vpop.permute.xlu0 %1123
  %1125 = vrot.lane.b32.xlu0 %v1040, 111
  %v1126 = vpop.permute.xlu0 %1125
  %1127 = vrot.lane.b32.xlu0 %v1041, 111
  %v1128 = vpop.permute.xlu0 %1127
  %1129 = vrot.lane.b32.xlu0 %v1042, 111
  %v1130 = vpop.permute.xlu0 %1129
  %1131 = vrot.lane.b32.xlu0 %v1043, 111
  %v1132 = vpop.permute.xlu0 %1131
  %1133 = vrot.lane.b32.xlu0 %v1044, 111
  %v1134 = vpop.permute.xlu0 %1133
  %1135 = vrot.lane.b32.xlu0 %v1045, 111
  %v1136 = vpop.permute.xlu0 %1135
  %1137 = vrot.lane.b32.xlu0 %v1046, 111
  %v1138 = vpop.permute.xlu0 %1137
  %1139 = vrot.lane.b32.xlu0 %v1047, 111
  %v1140 = vpop.permute.xlu0 %1139
  %1141 = vrot.lane.b32.xlu0 %v1048, 111
  %v1142 = vpop.permute.xlu0 %1141
  %1143 = vrot.lane.b32.xlu0 %v1049, 111
  %v1144 = vpop.permute.xlu0 %1143
  %1145 = vrot.lane.b32.xlu0 %v1050, 111
  %v1146 = vpop.permute.xlu0 %1145
  %1147 = vrot.lane.b32.xlu0 %v1051, 111
  %v1148 = vpop.permute.xlu0 %1147
  %1149 = vrot.lane.b32.xlu0 %v1052, 111
  %v1150 = vpop.permute.xlu0 %1149
  %1151 = vrot.lane.b32.xlu0 %v1053, 111
  %v1152 = vpop.permute.xlu0 %1151
  %1153 = vrot.lane.b32.xlu0 %v1054, 111
  %v1154 = vpop.permute.xlu0 %1153
  %1155 = vrot.lane.b32.xlu0 %v1055, 111
  %v1156 = vpop.permute.xlu0 %1155
  %1157 = vrot.lane.b32.xlu0 %v1056, 111
  %v1158 = vpop.permute.xlu0 %1157
  %1159 = vrot.lane.b32.xlu0 %v1057, 111
  %v1160 = vpop.permute.xlu0 %1159
  %1161 = vrot.lane.b32.xlu0 %v1058, 111
  %v1162 = vpop.permute.xlu0 %1161
  %1163 = vrot.lane.b32.xlu0 %v1059, 111
  %v1164 = vpop.permute.xlu0 %1163
  %1165 = vrot.lane.b32.xlu0 %v1060, 111
  %v1166 = vpop.permute.xlu0 %1165
  %1167 = vrot.lane.b32.xlu0 %v1061, 111
  %v1168 = vpop.permute.xlu0 %1167
  %1169 = vrot.lane.b32.xlu0 %v1062, 111
  %v1170 = vpop.permute.xlu0 %1169
  %1171 = vrot.lane.b32.xlu0 %v1063, 111
  %v1172 = vpop.permute.xlu0 %1171
  %1173 = vrot.lane.b32.xlu0 %v1064, 111
  %v1174 = vpop.permute.xlu0 %1173
  %1175 = vrot.lane.b32.xlu0 %v1065, 111
  %v1176 = vpop.permute.xlu0 %1175
  %1177 = vrot.lane.b32.xlu0 %v1066, 111
  %v1178 = vpop.permute.xlu0 %1177
  %1179 = vrot.lane.b32.xlu0 %v1067, 111
  %v1180 = vpop.permute.xlu0 %1179
  %1181 = vrot.lane.b32.xlu0 %v1068, 111
  %v1182 = vpop.permute.xlu0 %1181
  %1183 = vrot.lane.b32.xlu0 %v1069, 111
  %v1184 = vpop.permute.xlu0 %1183
  %1185 = vrot.lane.b32.xlu0 %v1025, 111
  %v1186 = vpop.permute.xlu0 %1185
  %1187 = vrot.lane.b32.xlu0 %v1026, 111
  %v1188 = vpop.permute.xlu0 %1187
  %1189 = vrot.lane.b32.xlu0 %v1027, 111
  %v1190 = vpop.permute.xlu0 %1189
  %1191 = vrot.lane.b32.xlu0 %v1028, 111
  %v1192 = vpop.permute.xlu0 %1191
  %1193 = vrot.lane.b32.xlu0 %v1029, 111
  %v1194 = vpop.permute.xlu0 %1193
  %1195 = vrot.lane.b32.xlu0 %v1030, 111
  %v1196 = vpop.permute.xlu0 %1195
  %1197 = vrot.lane.b32.xlu0 %v1031, 111
  %v1198 = vpop.permute.xlu0 %1197
  %1199 = vrot.lane.b32.xlu0 %v1032, 111
  %v1200 = vpop.permute.xlu0 %1199
  %1201 = vrot.lane.b32.xlu0 %v1023, 111
  %v1202 = vpop.permute.xlu0 %1201
  %v1203 = vsel %vm826, %v1114, %v1116
  %v1204 = vsel %vm826, %v1116, %v1118
  %v1205 = vsel %vm826, %v1118, %v1120
  %v1206 = vsel %vm826, %v1120, %v1122
  %v1207 = vsel %vm826, %v1122, %v1124
  %v1208 = vsel %vm826, %v1124, %v1126
  %v1209 = vsel %vm826, %v1126, %v1128
  %v1210 = vsel %vm826, %v1128, %v1130
  %v1211 = vsel %vm826, %v1132, %v1134
  %v1212 = vsel %vm826, %v1134, %v1136
  %v1213 = vsel %vm826, %v1136, %v1138
  %v1214 = vsel %vm826, %v1138, %v1140
  %v1215 = vsel %vm826, %v1140, %v1142
  %v1216 = vsel %vm826, %v1142, %v1144
  %v1217 = vsel %vm826, %v1144, %v1146
  %v1218 = vsel %vm826, %v1146, %v1148
  %v1219 = vsel %vm826, %v1150, %v1152
  %v1220 = vsel %vm826, %v1152, %v1154
  %v1221 = vsel %vm826, %v1154, %v1156
  %v1222 = vsel %vm826, %v1156, %v1158
  %v1223 = vsel %vm826, %v1158, %v1160
  %v1224 = vsel %vm826, %v1160, %v1162
  %v1225 = vsel %vm826, %v1162, %v1164
  %v1226 = vsel %vm826, %v1164, %v1166
  %v1227 = vsel %vm826, %v1168, %v1170
  %v1228 = vsel %vm826, %v1170, %v1172
  %v1229 = vsel %vm826, %v1172, %v1174
  %v1230 = vsel %vm826, %v1174, %v1176
  %v1231 = vsel %vm826, %v1176, %v1178
  %v1232 = vsel %vm826, %v1178, %v1180
  %v1233 = vsel %vm826, %v1180, %v1182
  %v1234 = vsel %vm826, %v1182, %v1184
  %v1235 = vsel %vm826, %v1186, %v1188
  %v1236 = vsel %vm826, %v1188, %v1190
  %v1237 = vsel %vm826, %v1190, %v1192
  %v1238 = vsel %vm826, %v1192, %v1194
  %v1239 = vsel %vm826, %v1194, %v1196
  %v1240 = vsel %vm826, %v1196, %v1198
  %v1241 = vsel %vm826, %v1198, %v1200
  %v1242 = vsel %vm826, %v1200, %v1202
  %vm1275 = vcmask 293888
  %v1277 = vsel %vm1275, %v1070, 0
  %v1279 = vsel %vm1033, %v1235, 0
  %v1281 = vsel %vm1033, %v1236, 0
  %v1283 = vsel %vm1033, %v1237, 0
  %v1285 = vsel %vm1033, %v1238, 0
  %v1287 = vsel %vm1033, %v1239, 0
  %v1289 = vsel %vm1033, %v1240, 0
  %v1291 = vsel %vm1033, %v1241, 0
  %v1293 = vsel %vm1033, %v1242, 0
  %1295 = vmatpush.msra.mxu0 0.0
  %1296 = vmatpush.msra.mxu0 0.0
  %1297 = vmatpush.msra.mxu0 0.0
  %1298 = vmatpush.msra.mxu0 0.0
  %1299 = vmatpush.msra.mxu0 0.0
  %1300 = vmatpush.msra.mxu0 0.0
  %1301 = vmatpush.msra.mxu0 0.0
  %1302 = vmatpush.msra.mxu0 0.0
  %1303 = vmatpush.msra.mxu0 0.0
  %1304 = vmatpush.msra.mxu0 0.0
  %1305 = vmatpush.msra.mxu0 0.0
  %1306 = vmatpush.msra.mxu0 %v1279
  %1307 = vmatpush.msra.mxu0 %v1227
  %1308 = vmatpush.msra.mxu0 %v1219
  %1309 = vmatpush.msra.mxu0 %v1211
  %1310 = vmatpush.msra.mxu0 %v1203
  %1311 = vmatmul.f32.gmra.mxu0 %v1277
  %v1312 = vpop.f32.mrf.mxu0
  %v1313 = vadd.f32 %v1075, %v1312
  %1314 = vdwg.mxu0
  %1315 = vmatpush.msra.mxu0 0.0
  %1316 = vmatpush.msra.mxu0 0.0
  %1317 = vmatpush.msra.mxu0 0.0
  %1318 = vmatpush.msra.mxu0 0.0
  %1319 = vmatpush.msra.mxu0 0.0
  %1320 = vmatpush.msra.mxu0 0.0
  %1321 = vmatpush.msra.mxu0 0.0
  %1322 = vmatpush.msra.mxu0 0.0
  %1323 = vmatpush.msra.mxu0 0.0
  %1324 = vmatpush.msra.mxu0 0.0
  %1325 = vmatpush.msra.mxu0 0.0
  %1326 = vmatpush.msra.mxu0 %v1281
  %1327 = vmatpush.msra.mxu0 %v1228
  %1328 = vmatpush.msra.mxu0 %v1220
  %1329 = vmatpush.msra.mxu0 %v1212
  %1330 = vmatpush.msra.mxu0 %v1204
  %1331 = vmatmul.f32.gmra.mxu0 %v1277
  %v1332 = vpop.f32.mrf.mxu0
  %v1333 = vadd.f32 %v1075, %v1332
  %1334 = vdwg.mxu0
  %1335 = vmatpush.msra.mxu0 0.0
  %1336 = vmatpush.msra.mxu0 0.0
  %1337 = vmatpush.msra.mxu0 0.0
  %1338 = vmatpush.msra.mxu0 0.0
  %1339 = vmatpush.msra.mxu0 0.0
  %1340 = vmatpush.msra.mxu0 0.0
  %1341 = vmatpush.msra.mxu0 0.0
  %1342 = vmatpush.msra.mxu0 0.0
  %1343 = vmatpush.msra.mxu0 0.0
  %1344 = vmatpush.msra.mxu0 0.0
  %1345 = vmatpush.msra.mxu0 0.0
  %1346 = vmatpush.msra.mxu0 %v1283
  %1347 = vmatpush.msra.mxu0 %v1229
  %1348 = vmatpush.msra.mxu0 %v1221
  %1349 = vmatpush.msra.mxu0 %v1213
  %1350 = vmatpush.msra.mxu0 %v1205
  %1351 = vmatmul.f32.gmra.mxu0 %v1277
  %v1352 = vpop.f32.mrf.mxu0
  %v1353 = vadd.f32 %v1075, %v1352
  %1354 = vdwg.mxu0
  %1355 = vmatpush.msra.mxu0 0.0
  %1356 = vmatpush.msra.mxu0 0.0
  %1357 = vmatpush.msra.mxu0 0.0
  %1358 = vmatpush.msra.mxu0 0.0
  %1359 = vmatpush.msra.mxu0 0.0
  %1360 = vmatpush.msra.mxu0 0.0
  %1361 = vmatpush.msra.mxu0 0.0
  %1362 = vmatpush.msra.mxu0 0.0
  %1363 = vmatpush.msra.mxu0 0.0
  %1364 = vmatpush.msra.mxu0 0.0
  %1365 = vmatpush.msra.mxu0 0.0
  %1366 = vmatpush.msra.mxu0 %v1285
  %1367 = vmatpush.msra.mxu0 %v1230
  %1368 = vmatpush.msra.mxu0 %v1222
  %1369 = vmatpush.msra.mxu0 %v1214
  %1370 = vmatpush.msra.mxu0 %v1206
  %1371 = vmatmul.f32.gmra.mxu0 %v1277
  %v1372 = vpop.f32.mrf.mxu0
  %v1373 = vadd.f32 %v1075, %v1372
  %1374 = vdwg.mxu0
  %1375 = vmatpush.msra.mxu0 0.0
  %1376 = vmatpush.msra.mxu0 0.0
  %1377 = vmatpush.msra.mxu0 0.0
  %1378 = vmatpush.msra.mxu0 0.0
  %1379 = vmatpush.msra.mxu0 0.0
  %1380 = vmatpush.msra.mxu0 0.0
  %1381 = vmatpush.msra.mxu0 0.0
  %1382 = vmatpush.msra.mxu0 0.0
  %1383 = vmatpush.msra.mxu0 0.0
  %1384 = vmatpush.msra.mxu0 0.0
  %1385 = vmatpush.msra.mxu0 0.0
  %1386 = vmatpush.msra.mxu0 %v1287
  %1387 = vmatpush.msra.mxu0 %v1231
  %1388 = vmatpush.msra.mxu0 %v1223
  %1389 = vmatpush.msra.mxu0 %v1215
  %1390 = vmatpush.msra.mxu0 %v1207
  %1391 = vmatmul.f32.gmra.mxu0 %v1277
  %v1392 = vpop.f32.mrf.mxu0
  %v1393 = vadd.f32 %v1075, %v1392
  %1394 = vdwg.mxu0
  %1395 = vmatpush.msra.mxu0 0.0
  %1396 = vmatpush.msra.mxu0 0.0
  %1397 = vmatpush.msra.mxu0 0.0
  %1398 = vmatpush.msra.mxu0 0.0
  %1399 = vmatpush.msra.mxu0 0.0
  %1400 = vmatpush.msra.mxu0 0.0
  %1401 = vmatpush.msra.mxu0 0.0
  %1402 = vmatpush.msra.mxu0 0.0
  %1403 = vmatpush.msra.mxu0 0.0
  %1404 = vmatpush.msra.mxu0 0.0
  %1405 = vmatpush.msra.mxu0 0.0
  %1406 = vmatpush.msra.mxu0 %v1289
  %1407 = vmatpush.msra.mxu0 %v1232
  %1408 = vmatpush.msra.mxu0 %v1224
  %1409 = vmatpush.msra.mxu0 %v1216
  %1410 = vmatpush.msra.mxu0 %v1208
  %1411 = vmatmul.f32.gmra.mxu0 %v1277
  %v1412 = vpop.f32.mrf.mxu0
  %v1413 = vadd.f32 %v1075, %v1412
  %1414 = vdwg.mxu0
  %1415 = vmatpush.msra.mxu0 0.0
  %1416 = vmatpush.msra.mxu0 0.0
  %1417 = vmatpush.msra.mxu0 0.0
  %1418 = vmatpush.msra.mxu0 0.0
  %1419 = vmatpush.msra.mxu0 0.0
  %1420 = vmatpush.msra.mxu0 0.0
  %1421 = vmatpush.msra.mxu0 0.0
  %1422 = vmatpush.msra.mxu0 0.0
  %1423 = vmatpush.msra.mxu0 0.0
  %1424 = vmatpush.msra.mxu0 0.0
  %1425 = vmatpush.msra.mxu0 0.0
  %1426 = vmatpush.msra.mxu0 %v1291
  %1427 = vmatpush.msra.mxu0 %v1233
  %1428 = vmatpush.msra.mxu0 %v1225
  %1429 = vmatpush.msra.mxu0 %v1217
  %1430 = vmatpush.msra.mxu0 %v1209
  %1431 = vmatmul.f32.gmra.mxu0 %v1277
  %v1432 = vpop.f32.mrf.mxu0
  %v1433 = vadd.f32 %v1075, %v1432
  %1434 = vdwg.mxu0
  %1435 = vmatpush.msra.mxu0 0.0
  %1436 = vmatpush.msra.mxu0 0.0
  %1437 = vmatpush.msra.mxu0 0.0
  %1438 = vmatpush.msra.mxu0 0.0
  %1439 = vmatpush.msra.mxu0 0.0
  %1440 = vmatpush.msra.mxu0 0.0
  %1441 = vmatpush.msra.mxu0 0.0
  %1442 = vmatpush.msra.mxu0 0.0
  %1443 = vmatpush.msra.mxu0 0.0
  %1444 = vmatpush.msra.mxu0 0.0
  %1445 = vmatpush.msra.mxu0 0.0
  %1446 = vmatpush.msra.mxu0 %v1293
  %1447 = vmatpush.msra.mxu0 %v1234
  %1448 = vmatpush.msra.mxu0 %v1226
  %1449 = vmatpush.msra.mxu0 %v1218
  %1450 = vmatpush.msra.mxu0 %v1210
  %1451 = vmatmul.f32.gmra.mxu0 %v1277
  %v1452 = vpop.f32.mrf.mxu0
  %v1453 = vadd.f32 %v1075, %v1452
  %1454 = vdwg.mxu0
  %1463 = vrot.lane.b32.xlu0 %v1313, 34
  %v1464 = vpop.permute.xlu0 %1463
  %1465 = vrot.lane.b32.xlu0 %v1333, 34
  %v1466 = vpop.permute.xlu0 %1465
  %1467 = vrot.lane.b32.xlu0 %v1353, 34
  %v1468 = vpop.permute.xlu0 %1467
  %1469 = vrot.lane.b32.xlu0 %v1373, 34
  %v1470 = vpop.permute.xlu0 %1469
  %1471 = vrot.lane.b32.xlu0 %v1393, 34
  %v1472 = vpop.permute.xlu0 %1471
  %1473 = vrot.lane.b32.xlu0 %v1413, 34
  %v1474 = vpop.permute.xlu0 %1473
  %1475 = vrot.lane.b32.xlu0 %v1433, 34
  %v1476 = vpop.permute.xlu0 %1475
  %1477 = vrot.lane.b32.xlu0 %v1453, 34
  %v1478 = vpop.permute.xlu0 %1477
  %v1479 = vsel %vm106, %v1464, %v1466
  %v1480 = vsel %vm106, %v1466, %v1468
  %v1481 = vsel %vm106, %v1468, %v1470
  %v1482 = vsel %vm106, %v1470, %v1472
  %v1483 = vsel %vm106, %v1472, %v1474
  %v1484 = vsel %vm106, %v1474, %v1476
  %v1485 = vsel %vm106, %v1476, %v1478
  %v1495 = vsel %vm106, 0.0, %v1464
  %v1496 = vsel %vm106, %v1478, 0.0
  %v1497 = vperm.slane %v39, 0
  %v1498 = vperm.slane %v40, 0
  %v1499 = vperm.slane %v41, 0
  %v1500 = vperm.slane %v42, 0
  %v1501 = vperm.slane %v43, 0
  %v1502 = vperm.slane %v44, 0
  %v1503 = vperm.slane %v45, 0
  %v1504 = vperm.slane %v46, 0
  %v1505 = vmul.f32 %v1495, %v1497
  %v1506 = vmul.f32 %v1479, %v1498
  %v1507 = vmul.f32 %v1480, %v1499
  %v1508 = vmul.f32 %v1481, %v1500
  %v1509 = vmul.f32 %v1482, %v1501
  %v1510 = vmul.f32 %v1483, %v1502
  %v1511 = vmul.f32 %v1484, %v1503
  %v1512 = vmul.f32 %v1485, %v1504
  %v1513 = vperm.slane %v39, 1
  %v1514 = vperm.slane %v40, 1
  %v1515 = vperm.slane %v41, 1
  %v1516 = vperm.slane %v42, 1
  %v1517 = vperm.slane %v43, 1
  %v1518 = vperm.slane %v44, 1
  %v1519 = vperm.slane %v45, 1
  %v1520 = vperm.slane %v46, 1
  %1529 = vrot.lane.b32.xlu0 %v1513, 1
  %v1530 = vpop.permute.xlu0 %1529
  %1531 = vrot.lane.b32.xlu0 %v1514, 1
  %v1532 = vpop.permute.xlu0 %1531
  %1533 = vrot.lane.b32.xlu0 %v1515, 1
  %v1534 = vpop.permute.xlu0 %1533
  %1535 = vrot.lane.b32.xlu0 %v1516, 1
  %v1536 = vpop.permute.xlu0 %1535
  %1537 = vrot.lane.b32.xlu0 %v1517, 1
  %v1538 = vpop.permute.xlu0 %1537
  %1539 = vrot.lane.b32.xlu0 %v1518, 1
  %v1540 = vpop.permute.xlu0 %1539
  %1541 = vrot.lane.b32.xlu0 %v1519, 1
  %v1542 = vpop.permute.xlu0 %1541
  %1543 = vrot.lane.b32.xlu0 %v1520, 1
  %v1544 = vpop.permute.xlu0 %1543
  %vm1545 = vcmask 7168
  %v1546 = vsel %vm1545, %v1530, %v1532
  %v1547 = vsel %vm1545, %v1532, %v1534
  %v1548 = vsel %vm1545, %v1534, %v1536
  %v1549 = vsel %vm1545, %v1536, %v1538
  %v1550 = vsel %vm1545, %v1538, %v1540
  %v1551 = vsel %vm1545, %v1540, %v1542
  %v1552 = vsel %vm1545, %v1542, %v1544
  %v1562 = vmul.f32 %v1495, %v1530
  %v1563 = vmul.f32 %v1479, %v1546
  %v1564 = vmul.f32 %v1480, %v1547
  %v1565 = vmul.f32 %v1481, %v1548
  %v1566 = vmul.f32 %v1482, %v1549
  %v1567 = vmul.f32 %v1483, %v1550
  %v1568 = vmul.f32 %v1484, %v1551
  %v1569 = vmul.f32 %v1485, %v1552
  %v1570 = vmul.f32 %v1496, %v1544
  %v1571 = vperm.slane %v39, 2
  %v1572 = vperm.slane %v40, 2
  %v1573 = vperm.slane %v41, 2
  %v1574 = vperm.slane %v42, 2
  %v1575 = vperm.slane %v43, 2
  %v1576 = vperm.slane %v44, 2
  %v1577 = vperm.slane %v45, 2
  %v1578 = vperm.slane %v46, 2
  %1587 = vrot.lane.b32.xlu0 %v1571, 2
  %v1588 = vpop.permute.xlu0 %1587
  %1589 = vrot.lane.b32.xlu0 %v1572, 2
  %v1590 = vpop.permute.xlu0 %1589
  %1591 = vrot.lane.b32.xlu0 %v1573, 2
  %v1592 = vpop.permute.xlu0 %1591
  %1593 = vrot.lane.b32.xlu0 %v1574, 2
  %v1594 = vpop.permute.xlu0 %1593
  %1595 = vrot.lane.b32.xlu0 %v1575, 2
  %v1596 = vpop.permute.xlu0 %1595
  %1597 = vrot.lane.b32.xlu0 %v1576, 2
  %v1598 = vpop.permute.xlu0 %1597
  %1599 = vrot.lane.b32.xlu0 %v1577, 2
  %v1600 = vpop.permute.xlu0 %1599
  %1601 = vrot.lane.b32.xlu0 %v1578, 2
  %v1602 = vpop.permute.xlu0 %1601
  %vm1603 = vcmask 15360
  %v1604 = vsel %vm1603, %v1588, %v1590
  %v1605 = vsel %vm1603, %v1590, %v1592
  %v1606 = vsel %vm1603, %v1592, %v1594
  %v1607 = vsel %vm1603, %v1594, %v1596
  %v1608 = vsel %vm1603, %v1596, %v1598
  %v1609 = vsel %vm1603, %v1598, %v1600
  %v1610 = vsel %vm1603, %v1600, %v1602
  %v1620 = vmul.f32 %v1495, %v1588
  %v1621 = vmul.f32 %v1479, %v1604
  %v1622 = vmul.f32 %v1480, %v1605
  %v1623 = vmul.f32 %v1481, %v1606
  %v1624 = vmul.f32 %v1482, %v1607
  %v1625 = vmul.f32 %v1483, %v1608
  %v1626 = vmul.f32 %v1484, %v1609
  %v1627 = vmul.f32 %v1485, %v1610
  %v1628 = vmul.f32 %v1496, %v1602
  %v1629 = vperm.slane %v39, 3
  %v1630 = vperm.slane %v40, 3
  %v1631 = vperm.slane %v41, 3
  %v1632 = vperm.slane %v42, 3
  %v1633 = vperm.slane %v43, 3
  %v1634 = vperm.slane %v44, 3
  %v1635 = vperm.slane %v45, 3
  %v1636 = vperm.slane %v46, 3
  %1645 = vrot.lane.b32.xlu0 %v1629, 3
  %v1646 = vpop.permute.xlu0 %1645
  %1647 = vrot.lane.b32.xlu0 %v1630, 3
  %v1648 = vpop.permute.xlu0 %1647
  %1649 = vrot.lane.b32.xlu0 %v1631, 3
  %v1650 = vpop.permute.xlu0 %1649
  %1651 = vrot.lane.b32.xlu0 %v1632, 3
  %v1652 = vpop.permute.xlu0 %1651
  %1653 = vrot.lane.b32.xlu0 %v1633, 3
  %v1654 = vpop.permute.xlu0 %1653
  %1655 = vrot.lane.b32.xlu0 %v1634, 3
  %v1656 = vpop.permute.xlu0 %1655
  %1657 = vrot.lane.b32.xlu0 %v1635, 3
  %v1658 = vpop.permute.xlu0 %1657
  %1659 = vrot.lane.b32.xlu0 %v1636, 3
  %v1660 = vpop.permute.xlu0 %1659
  %vm1661 = vcmask 23552
  %v1662 = vsel %vm1661, %v1646, %v1648
  %v1663 = vsel %vm1661, %v1648, %v1650
  %v1664 = vsel %vm1661, %v1650, %v1652
  %v1665 = vsel %vm1661, %v1652, %v1654
  %v1666 = vsel %vm1661, %v1654, %v1656
  %v1667 = vsel %vm1661, %v1656, %v1658
  %v1668 = vsel %vm1661, %v1658, %v1660
  %v1678 = vmul.f32 %v1495, %v1646
  %v1679 = vmul.f32 %v1479, %v1662
  %v1680 = vmul.f32 %v1480, %v1663
  %v1681 = vmul.f32 %v1481, %v1664
  %v1682 = vmul.f32 %v1482, %v1665
  %v1683 = vmul.f32 %v1483, %v1666
  %v1684 = vmul.f32 %v1484, %v1667
  %v1685 = vmul.f32 %v1485, %v1668
  %v1686 = vmul.f32 %v1496, %v1660
  %v1687 = vperm.slane %v39, 4
  %v1688 = vperm.slane %v40, 4
  %v1689 = vperm.slane %v41, 4
  %v1690 = vperm.slane %v42, 4
  %v1691 = vperm.slane %v43, 4
  %v1692 = vperm.slane %v44, 4
  %v1693 = vperm.slane %v45, 4
  %v1694 = vperm.slane %v46, 4
  %1703 = vrot.lane.b32.xlu0 %v1687, 4
  %v1704 = vpop.permute.xlu0 %1703
  %1705 = vrot.lane.b32.xlu0 %v1688, 4
  %v1706 = vpop.permute.xlu0 %1705
  %1707 = vrot.lane.b32.xlu0 %v1689, 4
  %v1708 = vpop.permute.xlu0 %1707
  %1709 = vrot.lane.b32.xlu0 %v1690, 4
  %v1710 = vpop.permute.xlu0 %1709
  %1711 = vrot.lane.b32.xlu0 %v1691, 4
  %v1712 = vpop.permute.xlu0 %1711
  %1713 = vrot.lane.b32.xlu0 %v1692, 4
  %v1714 = vpop.permute.xlu0 %1713
  %1715 = vrot.lane.b32.xlu0 %v1693, 4
  %v1716 = vpop.permute.xlu0 %1715
  %1717 = vrot.lane.b32.xlu0 %v1694, 4
  %v1718 = vpop.permute.xlu0 %1717
  %vm1719 = vcmask 31744
  %v1720 = vsel %vm1719, %v1704, %v1706
  %v1721 = vsel %vm1719, %v1706, %v1708
  %v1722 = vsel %vm1719, %v1708, %v1710
  %v1723 = vsel %vm1719, %v1710, %v1712
  %v1724 = vsel %vm1719, %v1712, %v1714
  %v1725 = vsel %vm1719, %v1714, %v1716
  %v1726 = vsel %vm1719, %v1716, %v1718
  %v1736 = vmul.f32 %v1495, %v1704
  %v1737 = vmul.f32 %v1479, %v1720
  %v1738 = vmul.f32 %v1480, %v1721
  %v1739 = vmul.f32 %v1481, %v1722
  %v1740 = vmul.f32 %v1482, %v1723
  %v1741 = vmul.f32 %v1483, %v1724
  %v1742 = vmul.f32 %v1484, %v1725
  %v1743 = vmul.f32 %v1485, %v1726
  %v1744 = vmul.f32 %v1496, %v1718
  %v1745 = vperm.slane %v39, 5
  %v1746 = vperm.slane %v40, 5
  %v1747 = vperm.slane %v41, 5
  %v1748 = vperm.slane %v42, 5
  %v1749 = vperm.slane %v43, 5
  %v1750 = vperm.slane %v44, 5
  %v1751 = vperm.slane %v45, 5
  %v1752 = vperm.slane %v46, 5
  %1761 = vrot.lane.b32.xlu0 %v1745, 16
  %v1762 = vpop.permute.xlu0 %1761
  %1763 = vrot.lane.b32.xlu0 %v1746, 16
  %v1764 = vpop.permute.xlu0 %1763
  %1765 = vrot.lane.b32.xlu0 %v1747, 16
  %v1766 = vpop.permute.xlu0 %1765
  %1767 = vrot.lane.b32.xlu0 %v1748, 16
  %v1768 = vpop.permute.xlu0 %1767
  %1769 = vrot.lane.b32.xlu0 %v1749, 16
  %v1770 = vpop.permute.xlu0 %1769
  %1771 = vrot.lane.b32.xlu0 %v1750, 16
  %v1772 = vpop.permute.xlu0 %1771
  %1773 = vrot.lane.b32.xlu0 %v1751, 16
  %v1774 = vpop.permute.xlu0 %1773
  %1775 = vrot.lane.b32.xlu0 %v1752, 16
  %v1776 = vpop.permute.xlu0 %1775
  %vm1777 = vcmask 130048
  %v1778 = vsel %vm1777, %v1762, %v1764
  %v1779 = vsel %vm1777, %v1764, %v1766
  %v1780 = vsel %vm1777, %v1766, %v1768
  %v1781 = vsel %vm1777, %v1768, %v1770
  %v1782 = vsel %vm1777, %v1770, %v1772
  %v1783 = vsel %vm1777, %v1772, %v1774
  %v1784 = vsel %vm1777, %v1774, %v1776
  %v1794 = vmul.f32 %v1495, %v1762
  %v1795 = vmul.f32 %v1479, %v1778
  %v1796 = vmul.f32 %v1480, %v1779
  %v1797 = vmul.f32 %v1481, %v1780
  %v1798 = vmul.f32 %v1482, %v1781
  %v1799 = vmul.f32 %v1483, %v1782
  %v1800 = vmul.f32 %v1484, %v1783
  %v1801 = vmul.f32 %v1485, %v1784
  %v1802 = vmul.f32 %v1496, %v1776
  %v1803 = vmul.f32 %v1495, %v142
  %v1804 = vmul.f32 %v1479, %v158
  %v1805 = vmul.f32 %v1480, %v159
  %v1806 = vmul.f32 %v1481, %v160
  %v1807 = vmul.f32 %v1482, %v161
  %v1808 = vmul.f32 %v1483, %v162
  %v1809 = vmul.f32 %v1484, %v163
  %v1810 = vmul.f32 %v1485, %v164
  %v1811 = vmul.f32 %v1496, %v156
  %v1812 = vmul.f32 %v1495, %v200
  %v1813 = vmul.f32 %v1479, %v216
  %v1814 = vmul.f32 %v1480, %v217
  %v1815 = vmul.f32 %v1481, %v218
  %v1816 = vmul.f32 %v1482, %v219
  %v1817 = vmul.f32 %v1483, %v220
  %v1818 = vmul.f32 %v1484, %v221
  %v1819 = vmul.f32 %v1485, %v222
  %v1820 = vmul.f32 %v1496, %v214
  %v1821 = vmul.f32 %v1495, %v258
  %v1822 = vmul.f32 %v1479, %v274
  %v1823 = vmul.f32 %v1480, %v275
  %v1824 = vmul.f32 %v1481, %v276
  %v1825 = vmul.f32 %v1482, %v277
  %v1826 = vmul.f32 %v1483, %v278
  %v1827 = vmul.f32 %v1484, %v279
  %v1828 = vmul.f32 %v1485, %v280
  %v1829 = vmul.f32 %v1496, %v272
  %v1830 = vperm.slane %v47, 1
  %v1831 = vperm.slane %v48, 1
  %v1832 = vperm.slane %v49, 1
  %v1833 = vperm.slane %v50, 1
  %v1834 = vperm.slane %v51, 1
  %v1835 = vperm.slane %v52, 1
  %v1836 = vperm.slane %v53, 1
  %v1837 = vperm.slane %v54, 1
  %1846 = vrot.lane.b32.xlu0 %v1830, 20
  %v1847 = vpop.permute.xlu0 %1846
  %1848 = vrot.lane.b32.xlu0 %v1831, 20
  %v1849 = vpop.permute.xlu0 %1848
  %1850 = vrot.lane.b32.xlu0 %v1832, 20
  %v1851 = vpop.permute.xlu0 %1850
  %1852 = vrot.lane.b32.xlu0 %v1833, 20
  %v1853 = vpop.permute.xlu0 %1852
  %1854 = vrot.lane.b32.xlu0 %v1834, 20
  %v1855 = vpop.permute.xlu0 %1854
  %1856 = vrot.lane.b32.xlu0 %v1835, 20
  %v1857 = vpop.permute.xlu0 %1856
  %1858 = vrot.lane.b32.xlu0 %v1836, 20
  %v1859 = vpop.permute.xlu0 %1858
  %1860 = vrot.lane.b32.xlu0 %v1837, 20
  %v1861 = vpop.permute.xlu0 %1860
  %vm1862 = vcmask 162816
  %v1863 = vsel %vm1862, %v1847, %v1849
  %v1864 = vsel %vm1862, %v1849, %v1851
  %v1865 = vsel %vm1862, %v1851, %v1853
  %v1866 = vsel %vm1862, %v1853, %v1855
  %v1867 = vsel %vm1862, %v1855, %v1857
  %v1868 = vsel %vm1862, %v1857, %v1859
  %v1869 = vsel %vm1862, %v1859, %v1861
  %v1879 = vmul.f32 %v1495, %v1847
  %v1880 = vmul.f32 %v1479, %v1863
  %v1881 = vmul.f32 %v1480, %v1864
  %v1882 = vmul.f32 %v1481, %v1865
  %v1883 = vmul.f32 %v1482, %v1866
  %v1884 = vmul.f32 %v1483, %v1867
  %v1885 = vmul.f32 %v1484, %v1868
  %v1886 = vmul.f32 %v1485, %v1869
  %v1887 = vmul.f32 %v1496, %v1861
  %v1888 = vperm.slane %v47, 2
  %v1889 = vperm.slane %v48, 2
  %v1890 = vperm.slane %v49, 2
  %v1891 = vperm.slane %v50, 2
  %v1892 = vperm.slane %v51, 2
  %v1893 = vperm.slane %v52, 2
  %v1894 = vperm.slane %v53, 2
  %v1895 = vperm.slane %v54, 2
  %1904 = vrot.lane.b32.xlu0 %v1888, 32
  %v1905 = vpop.permute.xlu0 %1904
  %1906 = vrot.lane.b32.xlu0 %v1889, 32
  %v1907 = vpop.permute.xlu0 %1906
  %1908 = vrot.lane.b32.xlu0 %v1890, 32
  %v1909 = vpop.permute.xlu0 %1908
  %1910 = vrot.lane.b32.xlu0 %v1891, 32
  %v1911 = vpop.permute.xlu0 %1910
  %1912 = vrot.lane.b32.xlu0 %v1892, 32
  %v1913 = vpop.permute.xlu0 %1912
  %1914 = vrot.lane.b32.xlu0 %v1893, 32
  %v1915 = vpop.permute.xlu0 %1914
  %1916 = vrot.lane.b32.xlu0 %v1894, 32
  %v1917 = vpop.permute.xlu0 %1916
  %1918 = vrot.lane.b32.xlu0 %v1895, 32
  %v1919 = vpop.permute.xlu0 %1918
  %vm1920 = vcmask 261120
  %v1921 = vsel %vm1920, %v1905, %v1907
  %v1922 = vsel %vm1920, %v1907, %v1909
  %v1923 = vsel %vm1920, %v1909, %v1911
  %v1924 = vsel %vm1920, %v1911, %v1913
  %v1925 = vsel %vm1920, %v1913, %v1915
  %v1926 = vsel %vm1920, %v1915, %v1917
  %v1927 = vsel %vm1920, %v1917, %v1919
  %v1937 = vmul.f32 %v1495, %v1905
  %v1938 = vmul.f32 %v1479, %v1921
  %v1939 = vmul.f32 %v1480, %v1922
  %v1940 = vmul.f32 %v1481, %v1923
  %v1941 = vmul.f32 %v1482, %v1924
  %v1942 = vmul.f32 %v1483, %v1925
  %v1943 = vmul.f32 %v1484, %v1926
  %v1944 = vmul.f32 %v1485, %v1927
  %v1945 = vmul.f32 %v1496, %v1919
  %v1946 = vmul.f32 %v1495, %v316
  %v1947 = vmul.f32 %v1479, %v332
  %v1948 = vmul.f32 %v1480, %v333
  %v1949 = vmul.f32 %v1481, %v334
  %v1950 = vmul.f32 %v1482, %v335
  %v1951 = vmul.f32 %v1483, %v336
  %v1952 = vmul.f32 %v1484, %v337
  %v1953 = vmul.f32 %v1485, %v338
  %v1954 = vmul.f32 %v1496, %v330
  %v1955 = vmul.f32 %v1495, %v374
  %v1956 = vmul.f32 %v1479, %v389
  %v1957 = vmul.f32 %v1480, %v390
  %v1958 = vmul.f32 %v1481, %v391
  %v1959 = vmul.f32 %v1482, %v392
  %v1960 = vmul.f32 %v1483, %v393
  %v1961 = vmul.f32 %v1484, %v394
  %v1962 = vmul.f32 %v1485, %v395
  %v1963 = vmul.f32 %v1496, %v388
  %v1964 = vmul.f32 %v1495, %v431
  %v1965 = vmul.f32 %v1479, %v447
  %v1966 = vmul.f32 %v1480, %v448
  %v1967 = vmul.f32 %v1481, %v449
  %v1968 = vmul.f32 %v1482, %v450
  %v1969 = vmul.f32 %v1483, %v451
  %v1970 = vmul.f32 %v1484, %v452
  %v1971 = vmul.f32 %v1485, %v453
  %v1972 = vmul.f32 %v1496, %v445
  %v1973 = vperm.slane %v47, 6
  %v1974 = vperm.slane %v48, 6
  %v1975 = vperm.slane %v49, 6
  %v1976 = vperm.slane %v50, 6
  %v1977 = vperm.slane %v51, 6
  %v1978 = vperm.slane %v52, 6
  %v1979 = vperm.slane %v53, 6
  %v1980 = vperm.slane %v54, 6
  %1989 = vrot.lane.b32.xlu0 %v1973, 36
  %v1990 = vpop.permute.xlu0 %1989
  %1991 = vrot.lane.b32.xlu0 %v1974, 36
  %v1992 = vpop.permute.xlu0 %1991
  %1993 = vrot.lane.b32.xlu0 %v1975, 36
  %v1994 = vpop.permute.xlu0 %1993
  %1995 = vrot.lane.b32.xlu0 %v1976, 36
  %v1996 = vpop.permute.xlu0 %1995
  %1997 = vrot.lane.b32.xlu0 %v1977, 36
  %v1998 = vpop.permute.xlu0 %1997
  %1999 = vrot.lane.b32.xlu0 %v1978, 36
  %v2000 = vpop.permute.xlu0 %1999
  %2001 = vrot.lane.b32.xlu0 %v1979, 36
  %v2002 = vpop.permute.xlu0 %2001
  %2003 = vrot.lane.b32.xlu0 %v1980, 36
  %v2004 = vpop.permute.xlu0 %2003
  %v2005 = vsel %vm1275, %v1990, %v1992
  %v2006 = vsel %vm1275, %v1992, %v1994
  %v2007 = vsel %vm1275, %v1994, %v1996
  %v2008 = vsel %vm1275, %v1996, %v1998
  %v2009 = vsel %vm1275, %v1998, %v2000
  %v2010 = vsel %vm1275, %v2000, %v2002
  %v2011 = vsel %vm1275, %v2002, %v2004
  %v2021 = vmul.f32 %v1495, %v1990
  %v2022 = vmul.f32 %v1479, %v2005
  %v2023 = vmul.f32 %v1480, %v2006
  %v2024 = vmul.f32 %v1481, %v2007
  %v2025 = vmul.f32 %v1482, %v2008
  %v2026 = vmul.f32 %v1483, %v2009
  %v2027 = vmul.f32 %v1484, %v2010
  %v2028 = vmul.f32 %v1485, %v2011
  %v2029 = vmul.f32 %v1496, %v2004
  %v2030 = vperm.slane %v47, 7
  %v2031 = vperm.slane %v48, 7
  %v2032 = vperm.slane %v49, 7
  %v2033 = vperm.slane %v50, 7
  %v2034 = vperm.slane %v51, 7
  %v2035 = vperm.slane %v52, 7
  %v2036 = vperm.slane %v53, 7
  %v2037 = vperm.slane %v54, 7
  %2046 = vrot.lane.b32.xlu0 %v2030, 48
  %v2047 = vpop.permute.xlu0 %2046
  %2048 = vrot.lane.b32.xlu0 %v2031, 48
  %v2049 = vpop.permute.xlu0 %2048
  %2050 = vrot.lane.b32.xlu0 %v2032, 48
  %v2051 = vpop.permute.xlu0 %2050
  %2052 = vrot.lane.b32.xlu0 %v2033, 48
  %v2053 = vpop.permute.xlu0 %2052
  %2054 = vrot.lane.b32.xlu0 %v2034, 48
  %v2055 = vpop.permute.xlu0 %2054
  %2056 = vrot.lane.b32.xlu0 %v2035, 48
  %v2057 = vpop.permute.xlu0 %2056
  %2058 = vrot.lane.b32.xlu0 %v2036, 48
  %v2059 = vpop.permute.xlu0 %2058
  %2060 = vrot.lane.b32.xlu0 %v2037, 48
  %v2061 = vpop.permute.xlu0 %2060
  %vm2062 = vcmask 392192
  %v2063 = vsel %vm2062, %v2047, %v2049
  %v2064 = vsel %vm2062, %v2049, %v2051
  %v2065 = vsel %vm2062, %v2051, %v2053
  %v2066 = vsel %vm2062, %v2053, %v2055
  %v2067 = vsel %vm2062, %v2055, %v2057
  %v2068 = vsel %vm2062, %v2057, %v2059
  %v2069 = vsel %vm2062, %v2059, %v2061
  %v2079 = vmul.f32 %v1495, %v2047
  %v2080 = vmul.f32 %v1479, %v2063
  %v2081 = vmul.f32 %v1480, %v2064
  %v2082 = vmul.f32 %v1481, %v2065
  %v2083 = vmul.f32 %v1482, %v2066
  %v2084 = vmul.f32 %v1483, %v2067
  %v2085 = vmul.f32 %v1484, %v2068
  %v2086 = vmul.f32 %v1485, %v2069
  %v2087 = vmul.f32 %v1496, %v2061
  %v2088 = vmul.f32 %v1495, %v489
  %v2089 = vmul.f32 %v1479, %v505
  %v2090 = vmul.f32 %v1480, %v506
  %v2091 = vmul.f32 %v1481, %v507
  %v2092 = vmul.f32 %v1482, %v508
  %v2093 = vmul.f32 %v1483, %v509
  %v2094 = vmul.f32 %v1484, %v510
  %v2095 = vmul.f32 %v1485, %v511
  %v2096 = vmul.f32 %v1496, %v503
  %v2097 = vmul.f32 %v1495, %v547
  %v2098 = vmul.f32 %v1479, %v563
  %v2099 = vmul.f32 %v1480, %v564
  %v2100 = vmul.f32 %v1481, %v565
  %v2101 = vmul.f32 %v1482, %v566
  %v2102 = vmul.f32 %v1483, %v567
  %v2103 = vmul.f32 %v1484, %v568
  %v2104 = vmul.f32 %v1485, %v569
  %v2105 = vmul.f32 %v1496, %v561
  %v2106 = vmul.f32 %v1495, %v605
  %v2107 = vmul.f32 %v1479, %v621
  %v2108 = vmul.f32 %v1480, %v622
  %v2109 = vmul.f32 %v1481, %v623
  %v2110 = vmul.f32 %v1482, %v624
  %v2111 = vmul.f32 %v1483, %v625
  %v2112 = vmul.f32 %v1484, %v626
  %v2113 = vmul.f32 %v1485, %v627
  %v2114 = vmul.f32 %v1496, %v619
  %v2115 = vperm.slane %v55, 3
  %v2116 = vperm.slane %v56, 3
  %v2117 = vperm.slane %v57, 3
  %v2118 = vperm.slane %v58, 3
  %v2119 = vperm.slane %v59, 3
  %v2120 = vperm.slane %v60, 3
  %v2121 = vperm.slane %v61, 3
  %v2122 = vperm.slane %v62, 3
  %2131 = vrot.lane.b32.xlu0 %v2115, 52
  %v2132 = vpop.permute.xlu0 %2131
  %2133 = vrot.lane.b32.xlu0 %v2116, 52
  %v2134 = vpop.permute.xlu0 %2133
  %2135 = vrot.lane.b32.xlu0 %v2117, 52
  %v2136 = vpop.permute.xlu0 %2135
  %2137 = vrot.lane.b32.xlu0 %v2118, 52
  %v2138 = vpop.permute.xlu0 %2137
  %2139 = vrot.lane.b32.xlu0 %v2119, 52
  %v2140 = vpop.permute.xlu0 %2139
  %2141 = vrot.lane.b32.xlu0 %v2120, 52
  %v2142 = vpop.permute.xlu0 %2141
  %2143 = vrot.lane.b32.xlu0 %v2121, 52
  %v2144 = vpop.permute.xlu0 %2143
  %2145 = vrot.lane.b32.xlu0 %v2122, 52
  %v2146 = vpop.permute.xlu0 %2145
  %vm2147 = vcmask 424960
  %v2148 = vsel %vm2147, %v2132, %v2134
  %v2149 = vsel %vm2147, %v2134, %v2136
  %v2150 = vsel %vm2147, %v2136, %v2138
  %v2151 = vsel %vm2147, %v2138, %v2140
  %v2152 = vsel %vm2147, %v2140, %v2142
  %v2153 = vsel %vm2147, %v2142, %v2144
  %v2154 = vsel %vm2147, %v2144, %v2146
  %v2164 = vmul.f32 %v1495, %v2132
  %v2165 = vmul.f32 %v1479, %v2148
  %v2166 = vmul.f32 %v1480, %v2149
  %v2167 = vmul.f32 %v1481, %v2150
  %v2168 = vmul.f32 %v1482, %v2151
  %v2169 = vmul.f32 %v1483, %v2152
  %v2170 = vmul.f32 %v1484, %v2153
  %v2171 = vmul.f32 %v1485, %v2154
  %v2172 = vmul.f32 %v1496, %v2146
  %v2173 = vperm.slane %v55, 4
  %v2174 = vperm.slane %v56, 4
  %v2175 = vperm.slane %v57, 4
  %v2176 = vperm.slane %v58, 4
  %v2177 = vperm.slane %v59, 4
  %v2178 = vperm.slane %v60, 4
  %v2179 = vperm.slane %v61, 4
  %v2180 = vperm.slane %v62, 4
  %2189 = vrot.lane.b32.xlu0 %v2173, 64
  %v2190 = vpop.permute.xlu0 %2189
  %2191 = vrot.lane.b32.xlu0 %v2174, 64
  %v2192 = vpop.permute.xlu0 %2191
  %2193 = vrot.lane.b32.xlu0 %v2175, 64
  %v2194 = vpop.permute.xlu0 %2193
  %2195 = vrot.lane.b32.xlu0 %v2176, 64
  %v2196 = vpop.permute.xlu0 %2195
  %2197 = vrot.lane.b32.xlu0 %v2177, 64
  %v2198 = vpop.permute.xlu0 %2197
  %2199 = vrot.lane.b32.xlu0 %v2178, 64
  %v2200 = vpop.permute.xlu0 %2199
  %2201 = vrot.lane.b32.xlu0 %v2179, 64
  %v2202 = vpop.permute.xlu0 %2201
  %2203 = vrot.lane.b32.xlu0 %v2180, 64
  %v2204 = vpop.permute.xlu0 %2203
  %vm2205 = vcmask 523264
  %v2206 = vsel %vm2205, %v2190, %v2192
  %v2207 = vsel %vm2205, %v2192, %v2194
  %v2208 = vsel %vm2205, %v2194, %v2196
  %v2209 = vsel %vm2205, %v2196, %v2198
  %v2210 = vsel %vm2205, %v2198, %v2200
  %v2211 = vsel %vm2205, %v2200, %v2202
  %v2212 = vsel %vm2205, %v2202, %v2204
  %v2222 = vmul.f32 %v1495, %v2190
  %v2223 = vmul.f32 %v1479, %v2206
  %v2224 = vmul.f32 %v1480, %v2207
  %v2225 = vmul.f32 %v1481, %v2208
  %v2226 = vmul.f32 %v1482, %v2209
  %v2227 = vmul.f32 %v1483, %v2210
  %v2228 = vmul.f32 %v1484, %v2211
  %v2229 = vmul.f32 %v1485, %v2212
  %v2230 = vmul.f32 %v1496, %v2204
  %v2231 = vperm.slane %v55, 5
  %v2232 = vperm.slane %v56, 5
  %v2233 = vperm.slane %v57, 5
  %v2234 = vperm.slane %v58, 5
  %v2235 = vperm.slane %v59, 5
  %v2236 = vperm.slane %v60, 5
  %v2237 = vperm.slane %v61, 5
  %v2238 = vperm.slane %v62, 5
  %2247 = vrot.lane.b32.xlu0 %v2231, 65
  %v2248 = vpop.permute.xlu0 %2247
  %2249 = vrot.lane.b32.xlu0 %v2232, 65
  %v2250 = vpop.permute.xlu0 %2249
  %2251 = vrot.lane.b32.xlu0 %v2233, 65
  %v2252 = vpop.permute.xlu0 %2251
  %2253 = vrot.lane.b32.xlu0 %v2234, 65
  %v2254 = vpop.permute.xlu0 %2253
  %2255 = vrot.lane.b32.xlu0 %v2235, 65
  %v2256 = vpop.permute.xlu0 %2255
  %2257 = vrot.lane.b32.xlu0 %v2236, 65
  %v2258 = vpop.permute.xlu0 %2257
  %2259 = vrot.lane.b32.xlu0 %v2237, 65
  %v2260 = vpop.permute.xlu0 %2259
  %2261 = vrot.lane.b32.xlu0 %v2238, 65
  %v2262 = vpop.permute.xlu0 %2261
  %vm2263 = vcmask 531456
  %v2264 = vsel %vm2263, %v2248, %v2250
  %v2265 = vsel %vm2263, %v2250, %v2252
  %v2266 = vsel %vm2263, %v2252, %v2254
  %v2267 = vsel %vm2263, %v2254, %v2256
  %v2268 = vsel %vm2263, %v2256, %v2258
  %v2269 = vsel %vm2263, %v2258, %v2260
  %v2270 = vsel %vm2263, %v2260, %v2262
  %v2280 = vmul.f32 %v1495, %v2248
  %v2281 = vmul.f32 %v1479, %v2264
  %v2282 = vmul.f32 %v1480, %v2265
  %v2283 = vmul.f32 %v1481, %v2266
  %v2284 = vmul.f32 %v1482, %v2267
  %v2285 = vmul.f32 %v1483, %v2268
  %v2286 = vmul.f32 %v1484, %v2269
  %v2287 = vmul.f32 %v1485, %v2270
  %v2288 = vmul.f32 %v1496, %v2262
  %v2289 = vperm.slane %v55, 6
  %v2290 = vperm.slane %v56, 6
  %v2291 = vperm.slane %v57, 6
  %v2292 = vperm.slane %v58, 6
  %v2293 = vperm.slane %v59, 6
  %v2294 = vperm.slane %v60, 6
  %v2295 = vperm.slane %v61, 6
  %v2296 = vperm.slane %v62, 6
  %2305 = vrot.lane.b32.xlu0 %v2289, 66
  %v2306 = vpop.permute.xlu0 %2305
  %2307 = vrot.lane.b32.xlu0 %v2290, 66
  %v2308 = vpop.permute.xlu0 %2307
  %2309 = vrot.lane.b32.xlu0 %v2291, 66
  %v2310 = vpop.permute.xlu0 %2309
  %2311 = vrot.lane.b32.xlu0 %v2292, 66
  %v2312 = vpop.permute.xlu0 %2311
  %2313 = vrot.lane.b32.xlu0 %v2293, 66
  %v2314 = vpop.permute.xlu0 %2313
  %2315 = vrot.lane.b32.xlu0 %v2294, 66
  %v2316 = vpop.permute.xlu0 %2315
  %2317 = vrot.lane.b32.xlu0 %v2295, 66
  %v2318 = vpop.permute.xlu0 %2317
  %2319 = vrot.lane.b32.xlu0 %v2296, 66
  %v2320 = vpop.permute.xlu0 %2319
  %vm2321 = vcmask 539648
  %v2322 = vsel %vm2321, %v2306, %v2308
  %v2323 = vsel %vm2321, %v2308, %v2310
  %v2324 = vsel %vm2321, %v2310, %v2312
  %v2325 = vsel %vm2321, %v2312, %v2314
  %v2326 = vsel %vm2321, %v2314, %v2316
  %v2327 = vsel %vm2321, %v2316, %v2318
  %v2328 = vsel %vm2321, %v2318, %v2320
  %v2338 = vmul.f32 %v1495, %v2306
  %v2339 = vmul.f32 %v1479, %v2322
  %v2340 = vmul.f32 %v1480, %v2323
  %v2341 = vmul.f32 %v1481, %v2324
  %v2342 = vmul.f32 %v1482, %v2325
  %v2343 = vmul.f32 %v1483, %v2326
  %v2344 = vmul.f32 %v1484, %v2327
  %v2345 = vmul.f32 %v1485, %v2328
  %v2346 = vmul.f32 %v1496, %v2320
  %v2347 = vperm.slane %v55, 7
  %v2348 = vperm.slane %v56, 7
  %v2349 = vperm.slane %v57, 7
  %v2350 = vperm.slane %v58, 7
  %v2351 = vperm.slane %v59, 7
  %v2352 = vperm.slane %v60, 7
  %v2353 = vperm.slane %v61, 7
  %v2354 = vperm.slane %v62, 7
  %2363 = vrot.lane.b32.xlu0 %v2347, 67
  %v2364 = vpop.permute.xlu0 %2363
  %2365 = vrot.lane.b32.xlu0 %v2348, 67
  %v2366 = vpop.permute.xlu0 %2365
  %2367 = vrot.lane.b32.xlu0 %v2349, 67
  %v2368 = vpop.permute.xlu0 %2367
  %2369 = vrot.lane.b32.xlu0 %v2350, 67
  %v2370 = vpop.permute.xlu0 %2369
  %2371 = vrot.lane.b32.xlu0 %v2351, 67
  %v2372 = vpop.permute.xlu0 %2371
  %2373 = vrot.lane.b32.xlu0 %v2352, 67
  %v2374 = vpop.permute.xlu0 %2373
  %2375 = vrot.lane.b32.xlu0 %v2353, 67
  %v2376 = vpop.permute.xlu0 %2375
  %2377 = vrot.lane.b32.xlu0 %v2354, 67
  %v2378 = vpop.permute.xlu0 %2377
  %vm2379 = vcmask 547840
  %v2380 = vsel %vm2379, %v2364, %v2366
  %v2381 = vsel %vm2379, %v2366, %v2368
  %v2382 = vsel %vm2379, %v2368, %v2370
  %v2383 = vsel %vm2379, %v2370, %v2372
  %v2384 = vsel %vm2379, %v2372, %v2374
  %v2385 = vsel %vm2379, %v2374, %v2376
  %v2386 = vsel %vm2379, %v2376, %v2378
  %v2396 = vmul.f32 %v1495, %v2364
  %v2397 = vmul.f32 %v1479, %v2380
  %v2398 = vmul.f32 %v1480, %v2381
  %v2399 = vmul.f32 %v1481, %v2382
  %v2400 = vmul.f32 %v1482, %v2383
  %v2401 = vmul.f32 %v1483, %v2384
  %v2402 = vmul.f32 %v1484, %v2385
  %v2403 = vmul.f32 %v1485, %v2386
  %v2404 = vmul.f32 %v1496, %v2378
  %v2405 = vperm.slane %v63, 0
  %v2406 = vperm.slane %v64, 0
  %v2407 = vperm.slane %v65, 0
  %v2408 = vperm.slane %v66, 0
  %v2409 = vperm.slane %v67, 0
  %v2410 = vperm.slane %v68, 0
  %v2411 = vperm.slane %v69, 0
  %v2412 = vperm.slane %v70, 0
  %2421 = vrot.lane.b32.xlu0 %v2405, 68
  %v2422 = vpop.permute.xlu0 %2421
  %2423 = vrot.lane.b32.xlu0 %v2406, 68
  %v2424 = vpop.permute.xlu0 %2423
  %2425 = vrot.lane.b32.xlu0 %v2407, 68
  %v2426 = vpop.permute.xlu0 %2425
  %2427 = vrot.lane.b32.xlu0 %v2408, 68
  %v2428 = vpop.permute.xlu0 %2427
  %2429 = vrot.lane.b32.xlu0 %v2409, 68
  %v2430 = vpop.permute.xlu0 %2429
  %2431 = vrot.lane.b32.xlu0 %v2410, 68
  %v2432 = vpop.permute.xlu0 %2431
  %2433 = vrot.lane.b32.xlu0 %v2411, 68
  %v2434 = vpop.permute.xlu0 %2433
  %2435 = vrot.lane.b32.xlu0 %v2412, 68
  %v2436 = vpop.permute.xlu0 %2435
  %vm2437 = vcmask 556032
  %v2438 = vsel %vm2437, %v2422, %v2424
  %v2439 = vsel %vm2437, %v2424, %v2426
  %v2440 = vsel %vm2437, %v2426, %v2428
  %v2441 = vsel %vm2437, %v2428, %v2430
  %v2442 = vsel %vm2437, %v2430, %v2432
  %v2443 = vsel %vm2437, %v2432, %v2434
  %v2444 = vsel %vm2437, %v2434, %v2436
  %v2454 = vmul.f32 %v1495, %v2422
  %v2455 = vmul.f32 %v1479, %v2438
  %v2456 = vmul.f32 %v1480, %v2439
  %v2457 = vmul.f32 %v1481, %v2440
  %v2458 = vmul.f32 %v1482, %v2441
  %v2459 = vmul.f32 %v1483, %v2442
  %v2460 = vmul.f32 %v1484, %v2443
  %v2461 = vmul.f32 %v1485, %v2444
  %v2462 = vmul.f32 %v1496, %v2436
  %v2472 = vrot.slane %v1562, 4
  %v2473 = vrot.slane %v1563, 4
  %v2474 = vrot.slane %v1564, 4
  %v2475 = vrot.slane %v1565, 4
  %v2476 = vrot.slane %v1566, 4
  %v2477 = vrot.slane %v1567, 4
  %v2478 = vrot.slane %v1568, 4
  %v2479 = vrot.slane %v1569, 4
  %v2480 = vrot.slane %v1570, 4
  %2481 = vrot.lane.b32.xlu0 %v2472, 127
  %v2482 = vpop.permute.xlu0 %2481
  %2483 = vrot.lane.b32.xlu0 %v2473, 127
  %v2484 = vpop.permute.xlu0 %2483
  %2485 = vrot.lane.b32.xlu0 %v2474, 127
  %v2486 = vpop.permute.xlu0 %2485
  %2487 = vrot.lane.b32.xlu0 %v2475, 127
  %v2488 = vpop.permute.xlu0 %2487
  %2489 = vrot.lane.b32.xlu0 %v2476, 127
  %v2490 = vpop.permute.xlu0 %2489
  %2491 = vrot.lane.b32.xlu0 %v2477, 127
  %v2492 = vpop.permute.xlu0 %2491
  %2493 = vrot.lane.b32.xlu0 %v2478, 127
  %v2494 = vpop.permute.xlu0 %2493
  %2495 = vrot.lane.b32.xlu0 %v2479, 127
  %v2496 = vpop.permute.xlu0 %2495
  %2497 = vrot.lane.b32.xlu0 %v2480, 127
  %v2498 = vpop.permute.xlu0 %2497
  %v2499 = vsel %vm682, %v2482, %v2484
  %v2500 = vsel %vm682, %v2484, %v2486
  %v2501 = vsel %vm682, %v2486, %v2488
  %v2502 = vsel %vm682, %v2488, %v2490
  %v2503 = vsel %vm682, %v2490, %v2492
  %v2504 = vsel %vm682, %v2492, %v2494
  %v2505 = vsel %vm682, %v2494, %v2496
  %v2506 = vsel %vm682, %v2496, %v2498
  %2524 = vrot.lane.b32.xlu0 %v1620, 126
  %v2525 = vpop.permute.xlu0 %2524
  %2526 = vrot.lane.b32.xlu0 %v1621, 126
  %v2527 = vpop.permute.xlu0 %2526
  %2528 = vrot.lane.b32.xlu0 %v1622, 126
  %v2529 = vpop.permute.xlu0 %2528
  %2530 = vrot.lane.b32.xlu0 %v1623, 126
  %v2531 = vpop.permute.xlu0 %2530
  %2532 = vrot.lane.b32.xlu0 %v1624, 126
  %v2533 = vpop.permute.xlu0 %2532
  %2534 = vrot.lane.b32.xlu0 %v1625, 126
  %v2535 = vpop.permute.xlu0 %2534
  %2536 = vrot.lane.b32.xlu0 %v1626, 126
  %v2537 = vpop.permute.xlu0 %2536
  %2538 = vrot.lane.b32.xlu0 %v1627, 126
  %v2539 = vpop.permute.xlu0 %2538
  %2540 = vrot.lane.b32.xlu0 %v1628, 126
  %v2541 = vpop.permute.xlu0 %2540
  %v2542 = vsel %vm727, %v2525, %v2527
  %v2543 = vsel %vm727, %v2527, %v2529
  %v2544 = vsel %vm727, %v2529, %v2531
  %v2545 = vsel %vm727, %v2531, %v2533
  %v2546 = vsel %vm727, %v2533, %v2535
  %v2547 = vsel %vm727, %v2535, %v2537
  %v2548 = vsel %vm727, %v2537, %v2539
  %v2549 = vsel %vm727, %v2539, %v2541
  %v2567 = vrot.slane %v1678, 4
  %v2568 = vrot.slane %v1679, 4
  %v2569 = vrot.slane %v1680, 4
  %v2570 = vrot.slane %v1681, 4
  %v2571 = vrot.slane %v1682, 4
  %v2572 = vrot.slane %v1683, 4
  %v2573 = vrot.slane %v1684, 4
  %v2574 = vrot.slane %v1685, 4
  %v2575 = vrot.slane %v1686, 4
  %2576 = vrot.lane.b32.xlu0 %v2567, 125
  %v2577 = vpop.permute.xlu0 %2576
  %2578 = vrot.lane.b32.xlu0 %v2568, 125
  %v2579 = vpop.permute.xlu0 %2578
  %2580 = vrot.lane.b32.xlu0 %v2569, 125
  %v2581 = vpop.permute.xlu0 %2580
  %2582 = vrot.lane.b32.xlu0 %v2570, 125
  %v2583 = vpop.permute.xlu0 %2582
  %2584 = vrot.lane.b32.xlu0 %v2571, 125
  %v2585 = vpop.permute.xlu0 %2584
  %2586 = vrot.lane.b32.xlu0 %v2572, 125
  %v2587 = vpop.permute.xlu0 %2586
  %2588 = vrot.lane.b32.xlu0 %v2573, 125
  %v2589 = vpop.permute.xlu0 %2588
  %2590 = vrot.lane.b32.xlu0 %v2574, 125
  %v2591 = vpop.permute.xlu0 %2590
  %2592 = vrot.lane.b32.xlu0 %v2575, 125
  %v2593 = vpop.permute.xlu0 %2592
  %vm2594 = vcmask 1022976
  %v2595 = vsel %vm2594, %v2577, %v2579
  %v2596 = vsel %vm2594, %v2579, %v2581
  %v2597 = vsel %vm2594, %v2581, %v2583
  %v2598 = vsel %vm2594, %v2583, %v2585
  %v2599 = vsel %vm2594, %v2585, %v2587
  %v2600 = vsel %vm2594, %v2587, %v2589
  %v2601 = vsel %vm2594, %v2589, %v2591
  %v2602 = vsel %vm2594, %v2591, %v2593
  %2620 = vrot.lane.b32.xlu0 %v1736, 124
  %v2621 = vpop.permute.xlu0 %2620
  %2622 = vrot.lane.b32.xlu0 %v1737, 124
  %v2623 = vpop.permute.xlu0 %2622
  %2624 = vrot.lane.b32.xlu0 %v1738, 124
  %v2625 = vpop.permute.xlu0 %2624
  %2626 = vrot.lane.b32.xlu0 %v1739, 124
  %v2627 = vpop.permute.xlu0 %2626
  %2628 = vrot.lane.b32.xlu0 %v1740, 124
  %v2629 = vpop.permute.xlu0 %2628
  %2630 = vrot.lane.b32.xlu0 %v1741, 124
  %v2631 = vpop.permute.xlu0 %2630
  %2632 = vrot.lane.b32.xlu0 %v1742, 124
  %v2633 = vpop.permute.xlu0 %2632
  %2634 = vrot.lane.b32.xlu0 %v1743, 124
  %v2635 = vpop.permute.xlu0 %2634
  %2636 = vrot.lane.b32.xlu0 %v1744, 124
  %v2637 = vpop.permute.xlu0 %2636
  %vm2638 = vcmask 1014784
  %v2639 = vsel %vm2638, %v2621, %v2623
  %v2640 = vsel %vm2638, %v2623, %v2625
  %v2641 = vsel %vm2638, %v2625, %v2627
  %v2642 = vsel %vm2638, %v2627, %v2629
  %v2643 = vsel %vm2638, %v2629, %v2631
  %v2644 = vsel %vm2638, %v2631, %v2633
  %v2645 = vsel %vm2638, %v2633, %v2635
  %v2646 = vsel %vm2638, %v2635, %v2637
  %v2664 = vrot.slane %v1794, 4
  %v2665 = vrot.slane %v1795, 4
  %v2666 = vrot.slane %v1796, 4
  %v2667 = vrot.slane %v1797, 4
  %v2668 = vrot.slane %v1798, 4
  %v2669 = vrot.slane %v1799, 4
  %v2670 = vrot.slane %v1800, 4
  %v2671 = vrot.slane %v1801, 4
  %v2672 = vrot.slane %v1802, 4
  %2673 = vrot.lane.b32.xlu0 %v2664, 112
  %v2674 = vpop.permute.xlu0 %2673
  %2675 = vrot.lane.b32.xlu0 %v2665, 112
  %v2676 = vpop.permute.xlu0 %2675
  %2677 = vrot.lane.b32.xlu0 %v2666, 112
  %v2678 = vpop.permute.xlu0 %2677
  %2679 = vrot.lane.b32.xlu0 %v2667, 112
  %v2680 = vpop.permute.xlu0 %2679
  %2681 = vrot.lane.b32.xlu0 %v2668, 112
  %v2682 = vpop.permute.xlu0 %2681
  %2683 = vrot.lane.b32.xlu0 %v2669, 112
  %v2684 = vpop.permute.xlu0 %2683
  %2685 = vrot.lane.b32.xlu0 %v2670, 112
  %v2686 = vpop.permute.xlu0 %2685
  %2687 = vrot.lane.b32.xlu0 %v2671, 112
  %v2688 = vpop.permute.xlu0 %2687
  %2689 = vrot.lane.b32.xlu0 %v2672, 112
  %v2690 = vpop.permute.xlu0 %2689
  %v2691 = vsel %vm781, %v2674, %v2676
  %v2692 = vsel %vm781, %v2676, %v2678
  %v2693 = vsel %vm781, %v2678, %v2680
  %v2694 = vsel %vm781, %v2680, %v2682
  %v2695 = vsel %vm781, %v2682, %v2684
  %v2696 = vsel %vm781, %v2684, %v2686
  %v2697 = vsel %vm781, %v2686, %v2688
  %v2698 = vsel %vm781, %v2688, %v2690
  %2716 = vrot.lane.b32.xlu0 %v1803, 111
  %v2717 = vpop.permute.xlu0 %2716
  %2718 = vrot.lane.b32.xlu0 %v1804, 111
  %v2719 = vpop.permute.xlu0 %2718
  %2720 = vrot.lane.b32.xlu0 %v1805, 111
  %v2721 = vpop.permute.xlu0 %2720
  %2722 = vrot.lane.b32.xlu0 %v1806, 111
  %v2723 = vpop.permute.xlu0 %2722
  %2724 = vrot.lane.b32.xlu0 %v1807, 111
  %v2725 = vpop.permute.xlu0 %2724
  %2726 = vrot.lane.b32.xlu0 %v1808, 111
  %v2727 = vpop.permute.xlu0 %2726
  %2728 = vrot.lane.b32.xlu0 %v1809, 111
  %v2729 = vpop.permute.xlu0 %2728
  %2730 = vrot.lane.b32.xlu0 %v1810, 111
  %v2731 = vpop.permute.xlu0 %2730
  %2732 = vrot.lane.b32.xlu0 %v1811, 111
  %v2733 = vpop.permute.xlu0 %2732
  %v2734 = vsel %vm826, %v2717, %v2719
  %v2735 = vsel %vm826, %v2719, %v2721
  %v2736 = vsel %vm826, %v2721, %v2723
  %v2737 = vsel %vm826, %v2723, %v2725
  %v2738 = vsel %vm826, %v2725, %v2727
  %v2739 = vsel %vm826, %v2727, %v2729
  %v2740 = vsel %vm826, %v2729, %v2731
  %v2741 = vsel %vm826, %v2731, %v2733
  %v2759 = vrot.slane %v1812, 4
  %v2760 = vrot.slane %v1813, 4
  %v2761 = vrot.slane %v1814, 4
  %v2762 = vrot.slane %v1815, 4
  %v2763 = vrot.slane %v1816, 4
  %v2764 = vrot.slane %v1817, 4
  %v2765 = vrot.slane %v1818, 4
  %v2766 = vrot.slane %v1819, 4
  %v2767 = vrot.slane %v1820, 4
  %2768 = vrot.lane.b32.xlu0 %v2759, 110
  %v2769 = vpop.permute.xlu0 %2768
  %2770 = vrot.lane.b32.xlu0 %v2760, 110
  %v2771 = vpop.permute.xlu0 %2770
  %2772 = vrot.lane.b32.xlu0 %v2761, 110
  %v2773 = vpop.permute.xlu0 %2772
  %2774 = vrot.lane.b32.xlu0 %v2762, 110
  %v2775 = vpop.permute.xlu0 %2774
  %2776 = vrot.lane.b32.xlu0 %v2763, 110
  %v2777 = vpop.permute.xlu0 %2776
  %2778 = vrot.lane.b32.xlu0 %v2764, 110
  %v2779 = vpop.permute.xlu0 %2778
  %2780 = vrot.lane.b32.xlu0 %v2765, 110
  %v2781 = vpop.permute.xlu0 %2780
  %2782 = vrot.lane.b32.xlu0 %v2766, 110
  %v2783 = vpop.permute.xlu0 %2782
  %2784 = vrot.lane.b32.xlu0 %v2767, 110
  %v2785 = vpop.permute.xlu0 %2784
  %v2786 = vsel %vm880, %v2769, %v2771
  %v2787 = vsel %vm880, %v2771, %v2773
  %v2788 = vsel %vm880, %v2773, %v2775
  %v2789 = vsel %vm880, %v2775, %v2777
  %v2790 = vsel %vm880, %v2777, %v2779
  %v2791 = vsel %vm880, %v2779, %v2781
  %v2792 = vsel %vm880, %v2781, %v2783
  %v2793 = vsel %vm880, %v2783, %v2785
  %2811 = vrot.lane.b32.xlu0 %v1821, 109
  %v2812 = vpop.permute.xlu0 %2811
  %2813 = vrot.lane.b32.xlu0 %v1822, 109
  %v2814 = vpop.permute.xlu0 %2813
  %2815 = vrot.lane.b32.xlu0 %v1823, 109
  %v2816 = vpop.permute.xlu0 %2815
  %2817 = vrot.lane.b32.xlu0 %v1824, 109
  %v2818 = vpop.permute.xlu0 %2817
  %2819 = vrot.lane.b32.xlu0 %v1825, 109
  %v2820 = vpop.permute.xlu0 %2819
  %2821 = vrot.lane.b32.xlu0 %v1826, 109
  %v2822 = vpop.permute.xlu0 %2821
  %2823 = vrot.lane.b32.xlu0 %v1827, 109
  %v2824 = vpop.permute.xlu0 %2823
  %2825 = vrot.lane.b32.xlu0 %v1828, 109
  %v2826 = vpop.permute.xlu0 %2825
  %2827 = vrot.lane.b32.xlu0 %v1829, 109
  %v2828 = vpop.permute.xlu0 %2827
  %vm2829 = vcmask 891904
  %v2830 = vsel %vm2829, %v2812, %v2814
  %v2831 = vsel %vm2829, %v2814, %v2816
  %v2832 = vsel %vm2829, %v2816, %v2818
  %v2833 = vsel %vm2829, %v2818, %v2820
  %v2834 = vsel %vm2829, %v2820, %v2822
  %v2835 = vsel %vm2829, %v2822, %v2824
  %v2836 = vsel %vm2829, %v2824, %v2826
  %v2837 = vsel %vm2829, %v2826, %v2828
  %v2855 = vrot.slane %v1879, 4
  %v2856 = vrot.slane %v1880, 4
  %v2857 = vrot.slane %v1881, 4
  %v2858 = vrot.slane %v1882, 4
  %v2859 = vrot.slane %v1883, 4
  %v2860 = vrot.slane %v1884, 4
  %v2861 = vrot.slane %v1885, 4
  %v2862 = vrot.slane %v1886, 4
  %v2863 = vrot.slane %v1887, 4
  %2864 = vrot.lane.b32.xlu0 %v2855, 108
  %v2865 = vpop.permute.xlu0 %2864
  %2866 = vrot.lane.b32.xlu0 %v2856, 108
  %v2867 = vpop.permute.xlu0 %2866
  %2868 = vrot.lane.b32.xlu0 %v2857, 108
  %v2869 = vpop.permute.xlu0 %2868
  %2870 = vrot.lane.b32.xlu0 %v2858, 108
  %v2871 = vpop.permute.xlu0 %2870
  %2872 = vrot.lane.b32.xlu0 %v2859, 108
  %v2873 = vpop.permute.xlu0 %2872
  %2874 = vrot.lane.b32.xlu0 %v2860, 108
  %v2875 = vpop.permute.xlu0 %2874
  %2876 = vrot.lane.b32.xlu0 %v2861, 108
  %v2877 = vpop.permute.xlu0 %2876
  %2878 = vrot.lane.b32.xlu0 %v2862, 108
  %v2879 = vpop.permute.xlu0 %2878
  %2880 = vrot.lane.b32.xlu0 %v2863, 108
  %v2881 = vpop.permute.xlu0 %2880
  %vm2882 = vcmask 883712
  %v2883 = vsel %vm2882, %v2865, %v2867
  %v2884 = vsel %vm2882, %v2867, %v2869
  %v2885 = vsel %vm2882, %v2869, %v2871
  %v2886 = vsel %vm2882, %v2871, %v2873
  %v2887 = vsel %vm2882, %v2873, %v2875
  %v2888 = vsel %vm2882, %v2875, %v2877
  %v2889 = vsel %vm2882, %v2877, %v2879
  %v2890 = vsel %vm2882, %v2879, %v2881
  %2908 = vrot.lane.b32.xlu0 %v1937, 96
  %v2909 = vpop.permute.xlu0 %2908
  %2910 = vrot.lane.b32.xlu0 %v1938, 96
  %v2911 = vpop.permute.xlu0 %2910
  %2912 = vrot.lane.b32.xlu0 %v1939, 96
  %v2913 = vpop.permute.xlu0 %2912
  %2914 = vrot.lane.b32.xlu0 %v1940, 96
  %v2915 = vpop.permute.xlu0 %2914
  %2916 = vrot.lane.b32.xlu0 %v1941, 96
  %v2917 = vpop.permute.xlu0 %2916
  %2918 = vrot.lane.b32.xlu0 %v1942, 96
  %v2919 = vpop.permute.xlu0 %2918
  %2920 = vrot.lane.b32.xlu0 %v1943, 96
  %v2921 = vpop.permute.xlu0 %2920
  %2922 = vrot.lane.b32.xlu0 %v1944, 96
  %v2923 = vpop.permute.xlu0 %2922
  %2924 = vrot.lane.b32.xlu0 %v1945, 96
  %v2925 = vpop.permute.xlu0 %2924
  %v2926 = vsel %vm925, %v2909, %v2911
  %v2927 = vsel %vm925, %v2911, %v2913
  %v2928 = vsel %vm925, %v2913, %v2915
  %v2929 = vsel %vm925, %v2915, %v2917
  %v2930 = vsel %vm925, %v2917, %v2919
  %v2931 = vsel %vm925, %v2919, %v2921
  %v2932 = vsel %vm925, %v2921, %v2923
  %v2933 = vsel %vm925, %v2923, %v2925
  %v2951 = vrot.slane %v1946, 4
  %v2952 = vrot.slane %v1947, 4
  %v2953 = vrot.slane %v1948, 4
  %v2954 = vrot.slane %v1949, 4
  %v2955 = vrot.slane %v1950, 4
  %v2956 = vrot.slane %v1951, 4
  %v2957 = vrot.slane %v1952, 4
  %v2958 = vrot.slane %v1953, 4
  %v2959 = vrot.slane %v1954, 4
  %2960 = vrot.lane.b32.xlu0 %v2951, 95
  %v2961 = vpop.permute.xlu0 %2960
  %2962 = vrot.lane.b32.xlu0 %v2952, 95
  %v2963 = vpop.permute.xlu0 %2962
  %2964 = vrot.lane.b32.xlu0 %v2953, 95
  %v2965 = vpop.permute.xlu0 %2964
  %2966 = vrot.lane.b32.xlu0 %v2954, 95
  %v2967 = vpop.permute.xlu0 %2966
  %2968 = vrot.lane.b32.xlu0 %v2955, 95
  %v2969 = vpop.permute.xlu0 %2968
  %2970 = vrot.lane.b32.xlu0 %v2956, 95
  %v2971 = vpop.permute.xlu0 %2970
  %2972 = vrot.lane.b32.xlu0 %v2957, 95
  %v2973 = vpop.permute.xlu0 %2972
  %2974 = vrot.lane.b32.xlu0 %v2958, 95
  %v2975 = vpop.permute.xlu0 %2974
  %2976 = vrot.lane.b32.xlu0 %v2959, 95
  %v2977 = vpop.permute.xlu0 %2976
  %v2978 = vsel %vm979, %v2961, %v2963
  %v2979 = vsel %vm979, %v2963, %v2965
  %v2980 = vsel %vm979, %v2965, %v2967
  %v2981 = vsel %vm979, %v2967, %v2969
  %v2982 = vsel %vm979, %v2969, %v2971
  %v2983 = vsel %vm979, %v2971, %v2973
  %v2984 = vsel %vm979, %v2973, %v2975
  %v2985 = vsel %vm979, %v2975, %v2977
  %3003 = vrot.lane.b32.xlu0 %v1955, 94
  %v3004 = vpop.permute.xlu0 %3003
  %3005 = vrot.lane.b32.xlu0 %v1956, 94
  %v3006 = vpop.permute.xlu0 %3005
  %3007 = vrot.lane.b32.xlu0 %v1957, 94
  %v3008 = vpop.permute.xlu0 %3007
  %3009 = vrot.lane.b32.xlu0 %v1958, 94
  %v3010 = vpop.permute.xlu0 %3009
  %3011 = vrot.lane.b32.xlu0 %v1959, 94
  %v3012 = vpop.permute.xlu0 %3011
  %3013 = vrot.lane.b32.xlu0 %v1960, 94
  %v3014 = vpop.permute.xlu0 %3013
  %3015 = vrot.lane.b32.xlu0 %v1961, 94
  %v3016 = vpop.permute.xlu0 %3015
  %3017 = vrot.lane.b32.xlu0 %v1962, 94
  %v3018 = vpop.permute.xlu0 %3017
  %3019 = vrot.lane.b32.xlu0 %v1963, 94
  %v3020 = vpop.permute.xlu0 %3019
  %v3021 = vsel %vm1024, %v3004, %v3006
  %v3022 = vsel %vm1024, %v3006, %v3008
  %v3023 = vsel %vm1024, %v3008, %v3010
  %v3024 = vsel %vm1024, %v3010, %v3012
  %v3025 = vsel %vm1024, %v3012, %v3014
  %v3026 = vsel %vm1024, %v3014, %v3016
  %v3027 = vsel %vm1024, %v3016, %v3018
  %v3028 = vsel %vm1024, %v3018, %v3020
  %v3046 = vrot.slane %v1964, 4
  %v3047 = vrot.slane %v1965, 4
  %v3048 = vrot.slane %v1966, 4
  %v3049 = vrot.slane %v1967, 4
  %v3050 = vrot.slane %v1968, 4
  %v3051 = vrot.slane %v1969, 4
  %v3052 = vrot.slane %v1970, 4
  %v3053 = vrot.slane %v1971, 4
  %v3054 = vrot.slane %v1972, 4
  %3055 = vrot.lane.b32.xlu0 %v3046, 93
  %v3056 = vpop.permute.xlu0 %3055
  %3057 = vrot.lane.b32.xlu0 %v3047, 93
  %v3058 = vpop.permute.xlu0 %3057
  %3059 = vrot.lane.b32.xlu0 %v3048, 93
  %v3060 = vpop.permute.xlu0 %3059
  %3061 = vrot.lane.b32.xlu0 %v3049, 93
  %v3062 = vpop.permute.xlu0 %3061
  %3063 = vrot.lane.b32.xlu0 %v3050, 93
  %v3064 = vpop.permute.xlu0 %3063
  %3065 = vrot.lane.b32.xlu0 %v3051, 93
  %v3066 = vpop.permute.xlu0 %3065
  %3067 = vrot.lane.b32.xlu0 %v3052, 93
  %v3068 = vpop.permute.xlu0 %3067
  %3069 = vrot.lane.b32.xlu0 %v3053, 93
  %v3070 = vpop.permute.xlu0 %3069
  %3071 = vrot.lane.b32.xlu0 %v3054, 93
  %v3072 = vpop.permute.xlu0 %3071
  %vm3073 = vcmask 760832
  %v3074 = vsel %vm3073, %v3056, %v3058
  %v3075 = vsel %vm3073, %v3058, %v3060
  %v3076 = vsel %vm3073, %v3060, %v3062
  %v3077 = vsel %vm3073, %v3062, %v3064
  %v3078 = vsel %vm3073, %v3064, %v3066
  %v3079 = vsel %vm3073, %v3066, %v3068
  %v3080 = vsel %vm3073, %v3068, %v3070
  %v3081 = vsel %vm3073, %v3070, %v3072
  %3099 = vrot.lane.b32.xlu0 %v2021, 92
  %v3100 = vpop.permute.xlu0 %3099
  %3101 = vrot.lane.b32.xlu0 %v2022, 92
  %v3102 = vpop.permute.xlu0 %3101
  %3103 = vrot.lane.b32.xlu0 %v2023, 92
  %v3104 = vpop.permute.xlu0 %3103
  %3105 = vrot.lane.b32.xlu0 %v2024, 92
  %v3106 = vpop.permute.xlu0 %3105
  %3107 = vrot.lane.b32.xlu0 %v2025, 92
  %v3108 = vpop.permute.xlu0 %3107
  %3109 = vrot.lane.b32.xlu0 %v2026, 92
  %v3110 = vpop.permute.xlu0 %3109
  %3111 = vrot.lane.b32.xlu0 %v2027, 92
  %v3112 = vpop.permute.xlu0 %3111
  %3113 = vrot.lane.b32.xlu0 %v2028, 92
  %v3114 = vpop.permute.xlu0 %3113
  %3115 = vrot.lane.b32.xlu0 %v2029, 92
  %v3116 = vpop.permute.xlu0 %3115
  %vm3117 = vcmask 752640
  %v3118 = vsel %vm3117, %v3100, %v3102
  %v3119 = vsel %vm3117, %v3102, %v3104
  %v3120 = vsel %vm3117, %v3104, %v3106
  %v3121 = vsel %vm3117, %v3106, %v3108
  %v3122 = vsel %vm3117, %v3108, %v3110
  %v3123 = vsel %vm3117, %v3110, %v3112
  %v3124 = vsel %vm3117, %v3112, %v3114
  %v3125 = vsel %vm3117, %v3114, %v3116
  %v3143 = vrot.slane %v2079, 4
  %v3144 = vrot.slane %v2080, 4
  %v3145 = vrot.slane %v2081, 4
  %v3146 = vrot.slane %v2082, 4
  %v3147 = vrot.slane %v2083, 4
  %v3148 = vrot.slane %v2084, 4
  %v3149 = vrot.slane %v2085, 4
  %v3150 = vrot.slane %v2086, 4
  %v3151 = vrot.slane %v2087, 4
  %3152 = vrot.lane.b32.xlu0 %v3143, 80
  %v3153 = vpop.permute.xlu0 %3152
  %3154 = vrot.lane.b32.xlu0 %v3144, 80
  %v3155 = vpop.permute.xlu0 %3154
  %3156 = vrot.lane.b32.xlu0 %v3145, 80
  %v3157 = vpop.permute.xlu0 %3156
  %3158 = vrot.lane.b32.xlu0 %v3146, 80
  %v3159 = vpop.permute.xlu0 %3158
  %3160 = vrot.lane.b32.xlu0 %v3147, 80
  %v3161 = vpop.permute.xlu0 %3160
  %3162 = vrot.lane.b32.xlu0 %v3148, 80
  %v3163 = vpop.permute.xlu0 %3162
  %3164 = vrot.lane.b32.xlu0 %v3149, 80
  %v3165 = vpop.permute.xlu0 %3164
  %3166 = vrot.lane.b32.xlu0 %v3150, 80
  %v3167 = vpop.permute.xlu0 %3166
  %3168 = vrot.lane.b32.xlu0 %v3151, 80
  %v3169 = vpop.permute.xlu0 %3168
  %vm3170 = vcmask 654336
  %v3171 = vsel %vm3170, %v3153, %v3155
  %v3172 = vsel %vm3170, %v3155, %v3157
  %v3173 = vsel %vm3170, %v3157, %v3159
  %v3174 = vsel %vm3170, %v3159, %v3161
  %v3175 = vsel %vm3170, %v3161, %v3163
  %v3176 = vsel %vm3170, %v3163, %v3165
  %v3177 = vsel %vm3170, %v3165, %v3167
  %v3178 = vsel %vm3170, %v3167, %v3169
  %v3187 = vsel %vm1033, %v1505, %v2499
  %v3188 = vsel %vm1033, %v1506, %v2500
  %v3189 = vsel %vm1033, %v1507, %v2501
  %v3190 = vsel %vm1033, %v1508, %v2502
  %v3191 = vsel %vm1033, %v1509, %v2503
  %v3192 = vsel %vm1033, %v1510, %v2504
  %v3193 = vsel %vm1033, %v1511, %v2505
  %v3194 = vsel %vm1033, %v1512, %v2506
  %v3195 = vsel %vm1033, %v2542, %v2595
  %v3196 = vsel %vm1033, %v2543, %v2596
  %v3197 = vsel %vm1033, %v2544, %v2597
  %v3198 = vsel %vm1033, %v2545, %v2598
  %v3199 = vsel %vm1033, %v2546, %v2599
  %v3200 = vsel %vm1033, %v2547, %v2600
  %v3201 = vsel %vm1033, %v2548, %v2601
  %v3202 = vsel %vm1033, %v2549, %v2602
  %v3203 = vsel %vm1033, %v2639, %v2691
  %v3204 = vsel %vm1033, %v2640, %v2692
  %v3205 = vsel %vm1033, %v2641, %v2693
  %v3206 = vsel %vm1033, %v2642, %v2694
  %v3207 = vsel %vm1033, %v2643, %v2695
  %v3208 = vsel %vm1033, %v2644, %v2696
  %v3209 = vsel %vm1033, %v2645, %v2697
  %v3210 = vsel %vm1033, %v2646, %v2698
  %v3211 = vsel %vm1033, %v2734, %v2786
  %v3212 = vsel %vm1033, %v2735, %v2787
  %v3213 = vsel %vm1033, %v2736, %v2788
  %v3214 = vsel %vm1033, %v2737, %v2789
  %v3215 = vsel %vm1033, %v2738, %v2790
  %v3216 = vsel %vm1033, %v2739, %v2791
  %v3217 = vsel %vm1033, %v2740, %v2792
  %v3218 = vsel %vm1033, %v2741, %v2793
  %v3219 = vsel %vm1033, %v2830, %v2883
  %v3220 = vsel %vm1033, %v2831, %v2884
  %v3221 = vsel %vm1033, %v2832, %v2885
  %v3222 = vsel %vm1033, %v2833, %v2886
  %v3223 = vsel %vm1033, %v2834, %v2887
  %v3224 = vsel %vm1033, %v2835, %v2888
  %v3225 = vsel %vm1033, %v2836, %v2889
  %v3226 = vsel %vm1033, %v2837, %v2890
  %v3227 = vsel %vm1033, %v2926, %v2978
  %v3228 = vsel %vm1033, %v2927, %v2979
  %v3229 = vsel %vm1033, %v2928, %v2980
  %v3230 = vsel %vm1033, %v2929, %v2981
  %v3231 = vsel %vm1033, %v2930, %v2982
  %v3232 = vsel %vm1033, %v2931, %v2983
  %v3233 = vsel %vm1033, %v2932, %v2984
  %v3234 = vsel %vm1033, %v2933, %v2985
  %v3235 = vsel %vm1033, %v3021, %v3074
  %v3236 = vsel %vm1033, %v3022, %v3075
  %v3237 = vsel %vm1033, %v3023, %v3076
  %v3238 = vsel %vm1033, %v3024, %v3077
  %v3239 = vsel %vm1033, %v3025, %v3078
  %v3240 = vsel %vm1033, %v3026, %v3079
  %v3241 = vsel %vm1033, %v3027, %v3080
  %v3242 = vsel %vm1033, %v3028, %v3081
  %v3243 = vsel %vm1033, %v3118, %v3171
  %v3244 = vsel %vm1033, %v3119, %v3172
  %v3245 = vsel %vm1033, %v3120, %v3173
  %v3246 = vsel %vm1033, %v3121, %v3174
  %v3247 = vsel %vm1033, %v3122, %v3175
  %v3248 = vsel %vm1033, %v3123, %v3176
  %v3249 = vsel %vm1033, %v3124, %v3177
  %v3250 = vsel %vm1033, %v3125, %v3178
  %v3260 = vrot.slane %v2097, 4
  %v3261 = vrot.slane %v2098, 4
  %v3262 = vrot.slane %v2099, 4
  %v3263 = vrot.slane %v2100, 4
  %v3264 = vrot.slane %v2101, 4
  %v3265 = vrot.slane %v2102, 4
  %v3266 = vrot.slane %v2103, 4
  %v3267 = vrot.slane %v2104, 4
  %v3268 = vrot.slane %v2105, 4
  %3269 = vrot.lane.b32.xlu0 %v3260, 127
  %v3270 = vpop.permute.xlu0 %3269
  %3271 = vrot.lane.b32.xlu0 %v3261, 127
  %v3272 = vpop.permute.xlu0 %3271
  %3273 = vrot.lane.b32.xlu0 %v3262, 127
  %v3274 = vpop.permute.xlu0 %3273
  %3275 = vrot.lane.b32.xlu0 %v3263, 127
  %v3276 = vpop.permute.xlu0 %3275
  %3277 = vrot.lane.b32.xlu0 %v3264, 127
  %v3278 = vpop.permute.xlu0 %3277
  %3279 = vrot.lane.b32.xlu0 %v3265, 127
  %v3280 = vpop.permute.xlu0 %3279
  %3281 = vrot.lane.b32.xlu0 %v3266, 127
  %v3282 = vpop.permute.xlu0 %3281
  %3283 = vrot.lane.b32.xlu0 %v3267, 127
  %v3284 = vpop.permute.xlu0 %3283
  %3285 = vrot.lane.b32.xlu0 %v3268, 127
  %v3286 = vpop.permute.xlu0 %3285
  %v3287 = vsel %vm682, %v3270, %v3272
  %v3288 = vsel %vm682, %v3272, %v3274
  %v3289 = vsel %vm682, %v3274, %v3276
  %v3290 = vsel %vm682, %v3276, %v3278
  %v3291 = vsel %vm682, %v3278, %v3280
  %v3292 = vsel %vm682, %v3280, %v3282
  %v3293 = vsel %vm682, %v3282, %v3284
  %v3294 = vsel %vm682, %v3284, %v3286
  %3313 = vrot.lane.b32.xlu0 %v2106, 126
  %v3314 = vpop.permute.xlu0 %3313
  %3315 = vrot.lane.b32.xlu0 %v2107, 126
  %v3316 = vpop.permute.xlu0 %3315
  %3317 = vrot.lane.b32.xlu0 %v2108, 126
  %v3318 = vpop.permute.xlu0 %3317
  %3319 = vrot.lane.b32.xlu0 %v2109, 126
  %v3320 = vpop.permute.xlu0 %3319
  %3321 = vrot.lane.b32.xlu0 %v2110, 126
  %v3322 = vpop.permute.xlu0 %3321
  %3323 = vrot.lane.b32.xlu0 %v2111, 126
  %v3324 = vpop.permute.xlu0 %3323
  %3325 = vrot.lane.b32.xlu0 %v2112, 126
  %v3326 = vpop.permute.xlu0 %3325
  %3327 = vrot.lane.b32.xlu0 %v2113, 126
  %v3328 = vpop.permute.xlu0 %3327
  %3329 = vrot.lane.b32.xlu0 %v2114, 126
  %v3330 = vpop.permute.xlu0 %3329
  %v3331 = vsel %vm727, %v3314, %v3316
  %v3332 = vsel %vm727, %v3316, %v3318
  %v3333 = vsel %vm727, %v3318, %v3320
  %v3334 = vsel %vm727, %v3320, %v3322
  %v3335 = vsel %vm727, %v3322, %v3324
  %v3336 = vsel %vm727, %v3324, %v3326
  %v3337 = vsel %vm727, %v3326, %v3328
  %v3338 = vsel %vm727, %v3328, %v3330
  %v3357 = vrot.slane %v2164, 4
  %v3358 = vrot.slane %v2165, 4
  %v3359 = vrot.slane %v2166, 4
  %v3360 = vrot.slane %v2167, 4
  %v3361 = vrot.slane %v2168, 4
  %v3362 = vrot.slane %v2169, 4
  %v3363 = vrot.slane %v2170, 4
  %v3364 = vrot.slane %v2171, 4
  %v3365 = vrot.slane %v2172, 4
  %3366 = vrot.lane.b32.xlu0 %v3357, 125
  %v3367 = vpop.permute.xlu0 %3366
  %3368 = vrot.lane.b32.xlu0 %v3358, 125
  %v3369 = vpop.permute.xlu0 %3368
  %3370 = vrot.lane.b32.xlu0 %v3359, 125
  %v3371 = vpop.permute.xlu0 %3370
  %3372 = vrot.lane.b32.xlu0 %v3360, 125
  %v3373 = vpop.permute.xlu0 %3372
  %3374 = vrot.lane.b32.xlu0 %v3361, 125
  %v3375 = vpop.permute.xlu0 %3374
  %3376 = vrot.lane.b32.xlu0 %v3362, 125
  %v3377 = vpop.permute.xlu0 %3376
  %3378 = vrot.lane.b32.xlu0 %v3363, 125
  %v3379 = vpop.permute.xlu0 %3378
  %3380 = vrot.lane.b32.xlu0 %v3364, 125
  %v3381 = vpop.permute.xlu0 %3380
  %3382 = vrot.lane.b32.xlu0 %v3365, 125
  %v3383 = vpop.permute.xlu0 %3382
  %v3384 = vsel %vm2594, %v3367, %v3369
  %v3385 = vsel %vm2594, %v3369, %v3371
  %v3386 = vsel %vm2594, %v3371, %v3373
  %v3387 = vsel %vm2594, %v3373, %v3375
  %v3388 = vsel %vm2594, %v3375, %v3377
  %v3389 = vsel %vm2594, %v3377, %v3379
  %v3390 = vsel %vm2594, %v3379, %v3381
  %v3391 = vsel %vm2594, %v3381, %v3383
  %3410 = vrot.lane.b32.xlu0 %v2222, 113
  %v3411 = vpop.permute.xlu0 %3410
  %3412 = vrot.lane.b32.xlu0 %v2223, 113
  %v3413 = vpop.permute.xlu0 %3412
  %3414 = vrot.lane.b32.xlu0 %v2224, 113
  %v3415 = vpop.permute.xlu0 %3414
  %3416 = vrot.lane.b32.xlu0 %v2225, 113
  %v3417 = vpop.permute.xlu0 %3416
  %3418 = vrot.lane.b32.xlu0 %v2226, 113
  %v3419 = vpop.permute.xlu0 %3418
  %3420 = vrot.lane.b32.xlu0 %v2227, 113
  %v3421 = vpop.permute.xlu0 %3420
  %3422 = vrot.lane.b32.xlu0 %v2228, 113
  %v3423 = vpop.permute.xlu0 %3422
  %3424 = vrot.lane.b32.xlu0 %v2229, 113
  %v3425 = vpop.permute.xlu0 %3424
  %3426 = vrot.lane.b32.xlu0 %v2230, 113
  %v3427 = vpop.permute.xlu0 %3426
  %vm3428 = vcmask 924672
  %v3429 = vsel %vm3428, %v3411, %v3413
  %v3430 = vsel %vm3428, %v3413, %v3415
  %v3431 = vsel %vm3428, %v3415, %v3417
  %v3432 = vsel %vm3428, %v3417, %v3419
  %v3433 = vsel %vm3428, %v3419, %v3421
  %v3434 = vsel %vm3428, %v3421, %v3423
  %v3435 = vsel %vm3428, %v3423, %v3425
  %v3436 = vsel %vm3428, %v3425, %v3427
  %v3455 = vrot.slane %v2280, 4
  %v3456 = vrot.slane %v2281, 4
  %v3457 = vrot.slane %v2282, 4
  %v3458 = vrot.slane %v2283, 4
  %v3459 = vrot.slane %v2284, 4
  %v3460 = vrot.slane %v2285, 4
  %v3461 = vrot.slane %v2286, 4
  %v3462 = vrot.slane %v2287, 4
  %v3463 = vrot.slane %v2288, 4
  %3464 = vrot.lane.b32.xlu0 %v3455, 112
  %v3465 = vpop.permute.xlu0 %3464
  %3466 = vrot.lane.b32.xlu0 %v3456, 112
  %v3467 = vpop.permute.xlu0 %3466
  %3468 = vrot.lane.b32.xlu0 %v3457, 112
  %v3469 = vpop.permute.xlu0 %3468
  %3470 = vrot.lane.b32.xlu0 %v3458, 112
  %v3471 = vpop.permute.xlu0 %3470
  %3472 = vrot.lane.b32.xlu0 %v3459, 112
  %v3473 = vpop.permute.xlu0 %3472
  %3474 = vrot.lane.b32.xlu0 %v3460, 112
  %v3475 = vpop.permute.xlu0 %3474
  %3476 = vrot.lane.b32.xlu0 %v3461, 112
  %v3477 = vpop.permute.xlu0 %3476
  %3478 = vrot.lane.b32.xlu0 %v3462, 112
  %v3479 = vpop.permute.xlu0 %3478
  %3480 = vrot.lane.b32.xlu0 %v3463, 112
  %v3481 = vpop.permute.xlu0 %3480
  %v3482 = vsel %vm781, %v3465, %v3467
  %v3483 = vsel %vm781, %v3467, %v3469
  %v3484 = vsel %vm781, %v3469, %v3471
  %v3485 = vsel %vm781, %v3471, %v3473
  %v3486 = vsel %vm781, %v3473, %v3475
  %v3487 = vsel %vm781, %v3475, %v3477
  %v3488 = vsel %vm781, %v3477, %v3479
  %v3489 = vsel %vm781, %v3479, %v3481
  %3508 = vrot.lane.b32.xlu0 %v2338, 111
  %v3509 = vpop.permute.xlu0 %3508
  %3510 = vrot.lane.b32.xlu0 %v2339, 111
  %v3511 = vpop.permute.xlu0 %3510
  %3512 = vrot.lane.b32.xlu0 %v2340, 111
  %v3513 = vpop.permute.xlu0 %3512
  %3514 = vrot.lane.b32.xlu0 %v2341, 111
  %v3515 = vpop.permute.xlu0 %3514
  %3516 = vrot.lane.b32.xlu0 %v2342, 111
  %v3517 = vpop.permute.xlu0 %3516
  %3518 = vrot.lane.b32.xlu0 %v2343, 111
  %v3519 = vpop.permute.xlu0 %3518
  %3520 = vrot.lane.b32.xlu0 %v2344, 111
  %v3521 = vpop.permute.xlu0 %3520
  %3522 = vrot.lane.b32.xlu0 %v2345, 111
  %v3523 = vpop.permute.xlu0 %3522
  %3524 = vrot.lane.b32.xlu0 %v2346, 111
  %v3525 = vpop.permute.xlu0 %3524
  %v3526 = vsel %vm826, %v3509, %v3511
  %v3527 = vsel %vm826, %v3511, %v3513
  %v3528 = vsel %vm826, %v3513, %v3515
  %v3529 = vsel %vm826, %v3515, %v3517
  %v3530 = vsel %vm826, %v3517, %v3519
  %v3531 = vsel %vm826, %v3519, %v3521
  %v3532 = vsel %vm826, %v3521, %v3523
  %v3533 = vsel %vm826, %v3523, %v3525
  %v3552 = vrot.slane %v2396, 4
  %v3553 = vrot.slane %v2397, 4
  %v3554 = vrot.slane %v2398, 4
  %v3555 = vrot.slane %v2399, 4
  %v3556 = vrot.slane %v2400, 4
  %v3557 = vrot.slane %v2401, 4
  %v3558 = vrot.slane %v2402, 4
  %v3559 = vrot.slane %v2403, 4
  %v3560 = vrot.slane %v2404, 4
  %3561 = vrot.lane.b32.xlu0 %v3552, 110
  %v3562 = vpop.permute.xlu0 %3561
  %3563 = vrot.lane.b32.xlu0 %v3553, 110
  %v3564 = vpop.permute.xlu0 %3563
  %3565 = vrot.lane.b32.xlu0 %v3554, 110
  %v3566 = vpop.permute.xlu0 %3565
  %3567 = vrot.lane.b32.xlu0 %v3555, 110
  %v3568 = vpop.permute.xlu0 %3567
  %3569 = vrot.lane.b32.xlu0 %v3556, 110
  %v3570 = vpop.permute.xlu0 %3569
  %3571 = vrot.lane.b32.xlu0 %v3557, 110
  %v3572 = vpop.permute.xlu0 %3571
  %3573 = vrot.lane.b32.xlu0 %v3558, 110
  %v3574 = vpop.permute.xlu0 %3573
  %3575 = vrot.lane.b32.xlu0 %v3559, 110
  %v3576 = vpop.permute.xlu0 %3575
  %3577 = vrot.lane.b32.xlu0 %v3560, 110
  %v3578 = vpop.permute.xlu0 %3577
  %v3579 = vsel %vm880, %v3562, %v3564
  %v3580 = vsel %vm880, %v3564, %v3566
  %v3581 = vsel %vm880, %v3566, %v3568
  %v3582 = vsel %vm880, %v3568, %v3570
  %v3583 = vsel %vm880, %v3570, %v3572
  %v3584 = vsel %vm880, %v3572, %v3574
  %v3585 = vsel %vm880, %v3574, %v3576
  %v3586 = vsel %vm880, %v3576, %v3578
  %3605 = vrot.lane.b32.xlu0 %v2454, 109
  %v3606 = vpop.permute.xlu0 %3605
  %3607 = vrot.lane.b32.xlu0 %v2455, 109
  %v3608 = vpop.permute.xlu0 %3607
  %3609 = vrot.lane.b32.xlu0 %v2456, 109
  %v3610 = vpop.permute.xlu0 %3609
  %3611 = vrot.lane.b32.xlu0 %v2457, 109
  %v3612 = vpop.permute.xlu0 %3611
  %3613 = vrot.lane.b32.xlu0 %v2458, 109
  %v3614 = vpop.permute.xlu0 %3613
  %3615 = vrot.lane.b32.xlu0 %v2459, 109
  %v3616 = vpop.permute.xlu0 %3615
  %3617 = vrot.lane.b32.xlu0 %v2460, 109
  %v3618 = vpop.permute.xlu0 %3617
  %3619 = vrot.lane.b32.xlu0 %v2461, 109
  %v3620 = vpop.permute.xlu0 %3619
  %3621 = vrot.lane.b32.xlu0 %v2462, 109
  %v3622 = vpop.permute.xlu0 %3621
  %v3623 = vsel %vm2829, %v3606, %v3608
  %v3624 = vsel %vm2829, %v3608, %v3610
  %v3625 = vsel %vm2829, %v3610, %v3612
  %v3626 = vsel %vm2829, %v3612, %v3614
  %v3627 = vsel %vm2829, %v3614, %v3616
  %v3628 = vsel %vm2829, %v3616, %v3618
  %v3629 = vsel %vm2829, %v3618, %v3620
  %v3630 = vsel %vm2829, %v3620, %v3622
  %v3631 = vsel %vm1033, %v2088, %v3287
  %v3632 = vsel %vm1033, %v2089, %v3288
  %v3633 = vsel %vm1033, %v2090, %v3289
  %v3634 = vsel %vm1033, %v2091, %v3290
  %v3635 = vsel %vm1033, %v2092, %v3291
  %v3636 = vsel %vm1033, %v2093, %v3292
  %v3637 = vsel %vm1033, %v2094, %v3293
  %v3638 = vsel %vm1033, %v2095, %v3294
  %v3639 = vsel %vm1033, %v2096, %v3286
  %v3640 = vsel %vm1033, %v3331, %v3384
  %v3641 = vsel %vm1033, %v3332, %v3385
  %v3642 = vsel %vm1033, %v3333, %v3386
  %v3643 = vsel %vm1033, %v3334, %v3387
  %v3644 = vsel %vm1033, %v3335, %v3388
  %v3645 = vsel %vm1033, %v3336, %v3389
  %v3646 = vsel %vm1033, %v3337, %v3390
  %v3647 = vsel %vm1033, %v3338, %v3391
  %v3648 = vsel %vm1033, %v3330, %v3383
  %v3649 = vsel %vm1033, %v3429, %v3482
  %v3650 = vsel %vm1033, %v3430, %v3483
  %v3651 = vsel %vm1033, %v3431, %v3484
  %v3652 = vsel %vm1033, %v3432, %v3485
  %v3653 = vsel %vm1033, %v3433, %v3486
  %v3654 = vsel %vm1033, %v3434, %v3487
  %v3655 = vsel %vm1033, %v3435, %v3488
  %v3656 = vsel %vm1033, %v3436, %v3489
  %v3657 = vsel %vm1033, %v3427, %v3481
  %v3658 = vsel %vm1033, %v3526, %v3579
  %v3659 = vsel %vm1033, %v3527, %v3580
  %v3660 = vsel %vm1033, %v3528, %v3581
  %v3661 = vsel %vm1033, %v3529, %v3582
  %v3662 = vsel %vm1033, %v3530, %v3583
  %v3663 = vsel %vm1033, %v3531, %v3584
  %v3664 = vsel %vm1033, %v3532, %v3585
  %v3665 = vsel %vm1033, %v3533, %v3586
  %v3666 = vsel %vm1033, %v3525, %v3578
  %3703 = vrot.lane.b32.xlu0 %v3631, 79
  %v3704 = vpop.permute.xlu0 %3703
  %3705 = vrot.lane.b32.xlu0 %v3632, 79
  %v3706 = vpop.permute.xlu0 %3705
  %3707 = vrot.lane.b32.xlu0 %v3633, 79
  %v3708 = vpop.permute.xlu0 %3707
  %3709 = vrot.lane.b32.xlu0 %v3634, 79
  %v3710 = vpop.permute.xlu0 %3709
  %3711 = vrot.lane.b32.xlu0 %v3635, 79
  %v3712 = vpop.permute.xlu0 %3711
  %3713 = vrot.lane.b32.xlu0 %v3636, 79
  %v3714 = vpop.permute.xlu0 %3713
  %3715 = vrot.lane.b32.xlu0 %v3637, 79
  %v3716 = vpop.permute.xlu0 %3715
  %3717 = vrot.lane.b32.xlu0 %v3638, 79
  %v3718 = vpop.permute.xlu0 %3717
  %3719 = vrot.lane.b32.xlu0 %v3639, 79
  %v3720 = vpop.permute.xlu0 %3719
  %3721 = vrot.lane.b32.xlu0 %v3640, 79
  %v3722 = vpop.permute.xlu0 %3721
  %3723 = vrot.lane.b32.xlu0 %v3641, 79
  %v3724 = vpop.permute.xlu0 %3723
  %3725 = vrot.lane.b32.xlu0 %v3642, 79
  %v3726 = vpop.permute.xlu0 %3725
  %3727 = vrot.lane.b32.xlu0 %v3643, 79
  %v3728 = vpop.permute.xlu0 %3727
  %3729 = vrot.lane.b32.xlu0 %v3644, 79
  %v3730 = vpop.permute.xlu0 %3729
  %3731 = vrot.lane.b32.xlu0 %v3645, 79
  %v3732 = vpop.permute.xlu0 %3731
  %3733 = vrot.lane.b32.xlu0 %v3646, 79
  %v3734 = vpop.permute.xlu0 %3733
  %3735 = vrot.lane.b32.xlu0 %v3647, 79
  %v3736 = vpop.permute.xlu0 %3735
  %3737 = vrot.lane.b32.xlu0 %v3648, 79
  %v3738 = vpop.permute.xlu0 %3737
  %3739 = vrot.lane.b32.xlu0 %v3649, 79
  %v3740 = vpop.permute.xlu0 %3739
  %3741 = vrot.lane.b32.xlu0 %v3650, 79
  %v3742 = vpop.permute.xlu0 %3741
  %3743 = vrot.lane.b32.xlu0 %v3651, 79
  %v3744 = vpop.permute.xlu0 %3743
  %3745 = vrot.lane.b32.xlu0 %v3652, 79
  %v3746 = vpop.permute.xlu0 %3745
  %3747 = vrot.lane.b32.xlu0 %v3653, 79
  %v3748 = vpop.permute.xlu0 %3747
  %3749 = vrot.lane.b32.xlu0 %v3654, 79
  %v3750 = vpop.permute.xlu0 %3749
  %3751 = vrot.lane.b32.xlu0 %v3655, 79
  %v3752 = vpop.permute.xlu0 %3751
  %3753 = vrot.lane.b32.xlu0 %v3656, 79
  %v3754 = vpop.permute.xlu0 %3753
  %3755 = vrot.lane.b32.xlu0 %v3657, 79
  %v3756 = vpop.permute.xlu0 %3755
  %3757 = vrot.lane.b32.xlu0 %v3658, 79
  %v3758 = vpop.permute.xlu0 %3757
  %3759 = vrot.lane.b32.xlu0 %v3659, 79
  %v3760 = vpop.permute.xlu0 %3759
  %3761 = vrot.lane.b32.xlu0 %v3660, 79
  %v3762 = vpop.permute.xlu0 %3761
  %3763 = vrot.lane.b32.xlu0 %v3661, 79
  %v3764 = vpop.permute.xlu0 %3763
  %3765 = vrot.lane.b32.xlu0 %v3662, 79
  %v3766 = vpop.permute.xlu0 %3765
  %3767 = vrot.lane.b32.xlu0 %v3663, 79
  %v3768 = vpop.permute.xlu0 %3767
  %3769 = vrot.lane.b32.xlu0 %v3664, 79
  %v3770 = vpop.permute.xlu0 %3769
  %3771 = vrot.lane.b32.xlu0 %v3665, 79
  %v3772 = vpop.permute.xlu0 %3771
  %3773 = vrot.lane.b32.xlu0 %v3666, 79
  %v3774 = vpop.permute.xlu0 %3773
  %3775 = vrot.lane.b32.xlu0 %v3623, 79
  %v3776 = vpop.permute.xlu0 %3775
  %3777 = vrot.lane.b32.xlu0 %v3624, 79
  %v3778 = vpop.permute.xlu0 %3777
  %3779 = vrot.lane.b32.xlu0 %v3625, 79
  %v3780 = vpop.permute.xlu0 %3779
  %3781 = vrot.lane.b32.xlu0 %v3626, 79
  %v3782 = vpop.permute.xlu0 %3781
  %3783 = vrot.lane.b32.xlu0 %v3627, 79
  %v3784 = vpop.permute.xlu0 %3783
  %3785 = vrot.lane.b32.xlu0 %v3628, 79
  %v3786 = vpop.permute.xlu0 %3785
  %3787 = vrot.lane.b32.xlu0 %v3629, 79
  %v3788 = vpop.permute.xlu0 %3787
  %3789 = vrot.lane.b32.xlu0 %v3630, 79
  %v3790 = vpop.permute.xlu0 %3789
  %3791 = vrot.lane.b32.xlu0 %v3622, 79
  %v3792 = vpop.permute.xlu0 %3791
  %vm3793 = vcmask 646144
  %v3794 = vsel %vm3793, %v3704, %v3706
  %v3795 = vsel %vm3793, %v3706, %v3708
  %v3796 = vsel %vm3793, %v3708, %v3710
  %v3797 = vsel %vm3793, %v3710, %v3712
  %v3798 = vsel %vm3793, %v3712, %v3714
  %v3799 = vsel %vm3793, %v3714, %v3716
  %v3800 = vsel %vm3793, %v3716, %v3718
  %v3801 = vsel %vm3793, %v3718, %v3720
  %v3802 = vsel %vm3793, %v3722, %v3724
  %v3803 = vsel %vm3793, %v3724, %v3726
  %v3804 = vsel %vm3793, %v3726, %v3728
  %v3805 = vsel %vm3793, %v3728, %v3730
  %v3806 = vsel %vm3793, %v3730, %v3732
  %v3807 = vsel %vm3793, %v3732, %v3734
  %v3808 = vsel %vm3793, %v3734, %v3736
  %v3809 = vsel %vm3793, %v3736, %v3738
  %v3810 = vsel %vm3793, %v3740, %v3742
  %v3811 = vsel %vm3793, %v3742, %v3744
  %v3812 = vsel %vm3793, %v3744, %v3746
  %v3813 = vsel %vm3793, %v3746, %v3748
  %v3814 = vsel %vm3793, %v3748, %v3750
  %v3815 = vsel %vm3793, %v3750, %v3752
  %v3816 = vsel %vm3793, %v3752, %v3754
  %v3817 = vsel %vm3793, %v3754, %v3756
  %v3818 = vsel %vm3793, %v3758, %v3760
  %v3819 = vsel %vm3793, %v3760, %v3762
  %v3820 = vsel %vm3793, %v3762, %v3764
  %v3821 = vsel %vm3793, %v3764, %v3766
  %v3822 = vsel %vm3793, %v3766, %v3768
  %v3823 = vsel %vm3793, %v3768, %v3770
  %v3824 = vsel %vm3793, %v3770, %v3772
  %v3825 = vsel %vm3793, %v3772, %v3774
  %v3826 = vsel %vm3793, %v3776, %v3778
  %v3827 = vsel %vm3793, %v3778, %v3780
  %v3828 = vsel %vm3793, %v3780, %v3782
  %v3829 = vsel %vm3793, %v3782, %v3784
  %v3830 = vsel %vm3793, %v3784, %v3786
  %v3831 = vsel %vm3793, %v3786, %v3788
  %v3832 = vsel %vm3793, %v3788, %v3790
  %v3833 = vsel %vm3793, %v3790, %v3792
  %v3866 = vld [vmem:[%s4] sm:$0xf]
  %v3867 = vld [vmem:[%s5] sm:$0xf]
  %3869 = vset.pattern.permute.xlu0 0
  %3870 = vperm.xlu0 %3869, %v3867
  %v3871 = vpop.permute.xlu0 %3870
  %vm3873 = vcmask 818176
  %v3875 = vsel %vm3873, %v3866, 0
  %v3877 = vsel %vm1033, %v3826, 0
  %v3879 = vsel %vm1033, %v3827, 0
  %v3881 = vsel %vm1033, %v3828, 0
  %v3883 = vsel %vm1033, %v3829, 0
  %v3885 = vsel %vm1033, %v3830, 0
  %v3887 = vsel %vm1033, %v3831, 0
  %v3889 = vsel %vm1033, %v3832, 0
  %v3891 = vsel %vm1033, %v3833, 0
  %3893 = vmatpush.msra.mxu0 0.0
  %3894 = vmatpush.msra.mxu0 0.0
  %3895 = vmatpush.msra.mxu0 0.0
  %3896 = vmatpush.msra.mxu0 %v3877
  %3897 = vmatpush.msra.mxu0 %v3818
  %3898 = vmatpush.msra.mxu0 %v3810
  %3899 = vmatpush.msra.mxu0 %v3802
  %3900 = vmatpush.msra.mxu0 %v3794
  %3901 = vmatpush.msra.mxu0 %v3243
  %3902 = vmatpush.msra.mxu0 %v3235
  %3903 = vmatpush.msra.mxu0 %v3227
  %3904 = vmatpush.msra.mxu0 %v3219
  %3905 = vmatpush.msra.mxu0 %v3211
  %3906 = vmatpush.msra.mxu0 %v3203
  %3907 = vmatpush.msra.mxu0 %v3195
  %3908 = vmatpush.msra.mxu0 %v3187
  %3909 = vmatmul.f32.gmra.mxu0 %v3875
  %v3910 = vpop.f32.mrf.mxu0
  %v3911 = vadd.f32 %v3871, %v3910
  %3912 = vdwg.mxu0
  %3913 = vmatpush.msra.mxu0 0.0
  %3914 = vmatpush.msra.mxu0 0.0
  %3915 = vmatpush.msra.mxu0 0.0
  %3916 = vmatpush.msra.mxu0 %v3879
  %3917 = vmatpush.msra.mxu0 %v3819
  %3918 = vmatpush.msra.mxu0 %v3811
  %3919 = vmatpush.msra.mxu0 %v3803
  %3920 = vmatpush.msra.mxu0 %v3795
  %3921 = vmatpush.msra.mxu0 %v3244
  %3922 = vmatpush.msra.mxu0 %v3236
  %3923 = vmatpush.msra.mxu0 %v3228
  %3924 = vmatpush.msra.mxu0 %v3220
  %3925 = vmatpush.msra.mxu0 %v3212
  %3926 = vmatpush.msra.mxu0 %v3204
  %3927 = vmatpush.msra.mxu0 %v3196
  %3928 = vmatpush.msra.mxu0 %v3188
  %3929 = vmatmul.f32.gmra.mxu0 %v3875
  %v3930 = vpop.f32.mrf.mxu0
  %v3931 = vadd.f32 %v3871, %v3930
  %3932 = vdwg.mxu0
  %3933 = vmatpush.msra.mxu0 0.0
  %3934 = vmatpush.msra.mxu0 0.0
  %3935 = vmatpush.msra.mxu0 0.0
  %3936 = vmatpush.msra.mxu0 %v3881
  %3937 = vmatpush.msra.mxu0 %v3820
  %3938 = vmatpush.msra.mxu0 %v3812
  %3939 = vmatpush.msra.mxu0 %v3804
  %3940 = vmatpush.msra.mxu0 %v3796
  %3941 = vmatpush.msra.mxu0 %v3245
  %3942 = vmatpush.msra.mxu0 %v3237
  %3943 = vmatpush.msra.mxu0 %v3229
  %3944 = vmatpush.msra.mxu0 %v3221
  %3945 = vmatpush.msra.mxu0 %v3213
  %3946 = vmatpush.msra.mxu0 %v3205
  %3947 = vmatpush.msra.mxu0 %v3197
  %3948 = vmatpush.msra.mxu0 %v3189
  %3949 = vmatmul.f32.gmra.mxu0 %v3875
  %v3950 = vpop.f32.mrf.mxu0
  %v3951 = vadd.f32 %v3871, %v3950
  %3952 = vdwg.mxu0
  %3953 = vmatpush.msra.mxu0 0.0
  %3954 = vmatpush.msra.mxu0 0.0
  %3955 = vmatpush.msra.mxu0 0.0
  %3956 = vmatpush.msra.mxu0 %v3883
  %3957 = vmatpush.msra.mxu0 %v3821
  %3958 = vmatpush.msra.mxu0 %v3813
  %3959 = vmatpush.msra.mxu0 %v3805
  %3960 = vmatpush.msra.mxu0 %v3797
  %3961 = vmatpush.msra.mxu0 %v3246
  %3962 = vmatpush.msra.mxu0 %v3238
  %3963 = vmatpush.msra.mxu0 %v3230
  %3964 = vmatpush.msra.mxu0 %v3222
  %3965 = vmatpush.msra.mxu0 %v3214
  %3966 = vmatpush.msra.mxu0 %v3206
  %3967 = vmatpush.msra.mxu0 %v3198
  %3968 = vmatpush.msra.mxu0 %v3190
  %3969 = vmatmul.f32.gmra.mxu0 %v3875
  %v3970 = vpop.f32.mrf.mxu0
  %v3971 = vadd.f32 %v3871, %v3970
  %3972 = vdwg.mxu0
  %3973 = vmatpush.msra.mxu0 0.0
  %3974 = vmatpush.msra.mxu0 0.0
  %3975 = vmatpush.msra.mxu0 0.0
  %3976 = vmatpush.msra.mxu0 %v3885
  %3977 = vmatpush.msra.mxu0 %v3822
  %3978 = vmatpush.msra.mxu0 %v3814
  %3979 = vmatpush.msra.mxu0 %v3806
  %3980 = vmatpush.msra.mxu0 %v3798
  %3981 = vmatpush.msra.mxu0 %v3247
  %3982 = vmatpush.msra.mxu0 %v3239
  %3983 = vmatpush.msra.mxu0 %v3231
  %3984 = vmatpush.msra.mxu0 %v3223
  %3985 = vmatpush.msra.mxu0 %v3215
  %3986 = vmatpush.msra.mxu0 %v3207
  %3987 = vmatpush.msra.mxu0 %v3199
  %3988 = vmatpush.msra.mxu0 %v3191
  %3989 = vmatmul.f32.gmra.mxu0 %v3875
  %v3990 = vpop.f32.mrf.mxu0
  %v3991 = vadd.f32 %v3871, %v3990
  %3992 = vdwg.mxu0
  %3993 = vmatpush.msra.mxu0 0.0
  %3994 = vmatpush.msra.mxu0 0.0
  %3995 = vmatpush.msra.mxu0 0.0
  %3996 = vmatpush.msra.mxu0 %v3887
  %3997 = vmatpush.msra.mxu0 %v3823
  %3998 = vmatpush.msra.mxu0 %v3815
  %3999 = vmatpush.msra.mxu0 %v3807
  %4000 = vmatpush.msra.mxu0 %v3799
  %4001 = vmatpush.msra.mxu0 %v3248
  %4002 = vmatpush.msra.mxu0 %v3240
  %4003 = vmatpush.msra.mxu0 %v3232
  %4004 = vmatpush.msra.mxu0 %v3224
  %4005 = vmatpush.msra.mxu0 %v3216
  %4006 = vmatpush.msra.mxu0 %v3208
  %4007 = vmatpush.msra.mxu0 %v3200
  %4008 = vmatpush.msra.mxu0 %v3192
  %4009 = vmatmul.f32.gmra.mxu0 %v3875
  %v4010 = vpop.f32.mrf.mxu0
  %v4011 = vadd.f32 %v3871, %v4010
  %4012 = vdwg.mxu0
  %4013 = vmatpush.msra.mxu0 0.0
  %4014 = vmatpush.msra.mxu0 0.0
  %4015 = vmatpush.msra.mxu0 0.0
  %4016 = vmatpush.msra.mxu0 %v3889
  %4017 = vmatpush.msra.mxu0 %v3824
  %4018 = vmatpush.msra.mxu0 %v3816
  %4019 = vmatpush.msra.mxu0 %v3808
  %4020 = vmatpush.msra.mxu0 %v3800
  %4021 = vmatpush.msra.mxu0 %v3249
  %4022 = vmatpush.msra.mxu0 %v3241
  %4023 = vmatpush.msra.mxu0 %v3233
  %4024 = vmatpush.msra.mxu0 %v3225
  %4025 = vmatpush.msra.mxu0 %v3217
  %4026 = vmatpush.msra.mxu0 %v3209
  %4027 = vmatpush.msra.mxu0 %v3201
  %4028 = vmatpush.msra.mxu0 %v3193
  %4029 = vmatmul.f32.gmra.mxu0 %v3875
  %v4030 = vpop.f32.mrf.mxu0
  %v4031 = vadd.f32 %v3871, %v4030
  %4032 = vdwg.mxu0
  %4033 = vmatpush.msra.mxu0 0.0
  %4034 = vmatpush.msra.mxu0 0.0
  %4035 = vmatpush.msra.mxu0 0.0
  %4036 = vmatpush.msra.mxu0 %v3891
  %4037 = vmatpush.msra.mxu0 %v3825
  %4038 = vmatpush.msra.mxu0 %v3817
  %4039 = vmatpush.msra.mxu0 %v3809
  %4040 = vmatpush.msra.mxu0 %v3801
  %4041 = vmatpush.msra.mxu0 %v3250
  %4042 = vmatpush.msra.mxu0 %v3242
  %4043 = vmatpush.msra.mxu0 %v3234
  %4044 = vmatpush.msra.mxu0 %v3226
  %4045 = vmatpush.msra.mxu0 %v3218
  %4046 = vmatpush.msra.mxu0 %v3210
  %4047 = vmatpush.msra.mxu0 %v3202
  %4048 = vmatpush.msra.mxu0 %v3194
  %4049 = vmatmul.f32.gmra.mxu0 %v3875
  %v4050 = vpop.f32.mrf.mxu0
  %v4051 = vadd.f32 %v3871, %v4050
  %4052 = vdwg.mxu0
  %4061 = vrot.lane.b32.xlu0 %v3911, 34
  %v4062 = vpop.permute.xlu0 %4061
  %4063 = vrot.lane.b32.xlu0 %v3931, 34
  %v4064 = vpop.permute.xlu0 %4063
  %4065 = vrot.lane.b32.xlu0 %v3951, 34
  %v4066 = vpop.permute.xlu0 %4065
  %4067 = vrot.lane.b32.xlu0 %v3971, 34
  %v4068 = vpop.permute.xlu0 %4067
  %4069 = vrot.lane.b32.xlu0 %v3991, 34
  %v4070 = vpop.permute.xlu0 %4069
  %4071 = vrot.lane.b32.xlu0 %v4011, 34
  %v4072 = vpop.permute.xlu0 %4071
  %4073 = vrot.lane.b32.xlu0 %v4031, 34
  %v4074 = vpop.permute.xlu0 %4073
  %4075 = vrot.lane.b32.xlu0 %v4051, 34
  %v4076 = vpop.permute.xlu0 %4075
  %v4077 = vsel %vm106, %v4062, %v4064
  %v4078 = vsel %vm106, %v4064, %v4066
  %v4079 = vsel %vm106, %v4066, %v4068
  %v4080 = vsel %vm106, %v4068, %v4070
  %v4081 = vsel %vm106, %v4070, %v4072
  %v4082 = vsel %vm106, %v4072, %v4074
  %v4083 = vsel %vm106, %v4074, %v4076
  %v4093 = vsel %vm106, 0.0, %v4062
  %v4094 = vsel %vm106, %v4076, 0.0
  %v4095 = vmul.f32 %v4093, %v1497
  %v4096 = vmul.f32 %v4077, %v1498
  %v4097 = vmul.f32 %v4078, %v1499
  %v4098 = vmul.f32 %v4079, %v1500
  %v4099 = vmul.f32 %v4080, %v1501
  %v4100 = vmul.f32 %v4081, %v1502
  %v4101 = vmul.f32 %v4082, %v1503
  %v4102 = vmul.f32 %v4083, %v1504
  %v4103 = vmul.f32 %v4093, %v1530
  %v4104 = vmul.f32 %v4077, %v1546
  %v4105 = vmul.f32 %v4078, %v1547
  %v4106 = vmul.f32 %v4079, %v1548
  %v4107 = vmul.f32 %v4080, %v1549
  %v4108 = vmul.f32 %v4081, %v1550
  %v4109 = vmul.f32 %v4082, %v1551
  %v4110 = vmul.f32 %v4083, %v1552
  %v4111 = vmul.f32 %v4094, %v1544
  %v4112 = vmul.f32 %v4093, %v1588
  %v4113 = vmul.f32 %v4077, %v1604
  %v4114 = vmul.f32 %v4078, %v1605
  %v4115 = vmul.f32 %v4079, %v1606
  %v4116 = vmul.f32 %v4080, %v1607
  %v4117 = vmul.f32 %v4081, %v1608
  %v4118 = vmul.f32 %v4082, %v1609
  %v4119 = vmul.f32 %v4083, %v1610
  %v4120 = vmul.f32 %v4094, %v1602
  %v4121 = vmul.f32 %v4093, %v1646
  %v4122 = vmul.f32 %v4077, %v1662
  %v4123 = vmul.f32 %v4078, %v1663
  %v4124 = vmul.f32 %v4079, %v1664
  %v4125 = vmul.f32 %v4080, %v1665
  %v4126 = vmul.f32 %v4081, %v1666
  %v4127 = vmul.f32 %v4082, %v1667
  %v4128 = vmul.f32 %v4083, %v1668
  %v4129 = vmul.f32 %v4094, %v1660
  %v4130 = vmul.f32 %v4093, %v1704
  %v4131 = vmul.f32 %v4077, %v1720
  %v4132 = vmul.f32 %v4078, %v1721
  %v4133 = vmul.f32 %v4079, %v1722
  %v4134 = vmul.f32 %v4080, %v1723
  %v4135 = vmul.f32 %v4081, %v1724
  %v4136 = vmul.f32 %v4082, %v1725
  %v4137 = vmul.f32 %v4083, %v1726
  %v4138 = vmul.f32 %v4094, %v1718
  %v4139 = vmul.f32 %v4093, %v1762
  %v4140 = vmul.f32 %v4077, %v1778
  %v4141 = vmul.f32 %v4078, %v1779
  %v4142 = vmul.f32 %v4079, %v1780
  %v4143 = vmul.f32 %v4080, %v1781
  %v4144 = vmul.f32 %v4081, %v1782
  %v4145 = vmul.f32 %v4082, %v1783
  %v4146 = vmul.f32 %v4083, %v1784
  %v4147 = vmul.f32 %v4094, %v1776
  %v4148 = vmul.f32 %v4093, %v142
  %v4149 = vmul.f32 %v4077, %v158
  %v4150 = vmul.f32 %v4078, %v159
  %v4151 = vmul.f32 %v4079, %v160
  %v4152 = vmul.f32 %v4080, %v161
  %v4153 = vmul.f32 %v4081, %v162
  %v4154 = vmul.f32 %v4082, %v163
  %v4155 = vmul.f32 %v4083, %v164
  %v4156 = vmul.f32 %v4094, %v156
  %v4157 = vmul.f32 %v4093, %v200
  %v4158 = vmul.f32 %v4077, %v216
  %v4159 = vmul.f32 %v4078, %v217
  %v4160 = vmul.f32 %v4079, %v218
  %v4161 = vmul.f32 %v4080, %v219
  %v4162 = vmul.f32 %v4081, %v220
  %v4163 = vmul.f32 %v4082, %v221
  %v4164 = vmul.f32 %v4083, %v222
  %v4165 = vmul.f32 %v4094, %v214
  %v4166 = vmul.f32 %v4093, %v258
  %v4167 = vmul.f32 %v4077, %v274
  %v4168 = vmul.f32 %v4078, %v275
  %v4169 = vmul.f32 %v4079, %v276
  %v4170 = vmul.f32 %v4080, %v277
  %v4171 = vmul.f32 %v4081, %v278
  %v4172 = vmul.f32 %v4082, %v279
  %v4173 = vmul.f32 %v4083, %v280
  %v4174 = vmul.f32 %v4094, %v272
  %v4175 = vmul.f32 %v4093, %v1847
  %v4176 = vmul.f32 %v4077, %v1863
  %v4177 = vmul.f32 %v4078, %v1864
  %v4178 = vmul.f32 %v4079, %v1865
  %v4179 = vmul.f32 %v4080, %v1866
  %v4180 = vmul.f32 %v4081, %v1867
  %v4181 = vmul.f32 %v4082, %v1868
  %v4182 = vmul.f32 %v4083, %v1869
  %v4183 = vmul.f32 %v4094, %v1861
  %v4184 = vmul.f32 %v4093, %v1905
  %v4185 = vmul.f32 %v4077, %v1921
  %v4186 = vmul.f32 %v4078, %v1922
  %v4187 = vmul.f32 %v4079, %v1923
  %v4188 = vmul.f32 %v4080, %v1924
  %v4189 = vmul.f32 %v4081, %v1925
  %v4190 = vmul.f32 %v4082, %v1926
  %v4191 = vmul.f32 %v4083, %v1927
  %v4192 = vmul.f32 %v4094, %v1919
  %v4193 = vmul.f32 %v4093, %v316
  %v4194 = vmul.f32 %v4077, %v332
  %v4195 = vmul.f32 %v4078, %v333
  %v4196 = vmul.f32 %v4079, %v334
  %v4197 = vmul.f32 %v4080, %v335
  %v4198 = vmul.f32 %v4081, %v336
  %v4199 = vmul.f32 %v4082, %v337
  %v4200 = vmul.f32 %v4083, %v338
  %v4201 = vmul.f32 %v4094, %v330
  %v4202 = vmul.f32 %v4093, %v374
  %v4203 = vmul.f32 %v4077, %v389
  %v4204 = vmul.f32 %v4078, %v390
  %v4205 = vmul.f32 %v4079, %v391
  %v4206 = vmul.f32 %v4080, %v392
  %v4207 = vmul.f32 %v4081, %v393
  %v4208 = vmul.f32 %v4082, %v394
  %v4209 = vmul.f32 %v4083, %v395
  %v4210 = vmul.f32 %v4094, %v388
  %v4211 = vmul.f32 %v4093, %v431
  %v4212 = vmul.f32 %v4077, %v447
  %v4213 = vmul.f32 %v4078, %v448
  %v4214 = vmul.f32 %v4079, %v449
  %v4215 = vmul.f32 %v4080, %v450
  %v4216 = vmul.f32 %v4081, %v451
  %v4217 = vmul.f32 %v4082, %v452
  %v4218 = vmul.f32 %v4083, %v453
  %v4219 = vmul.f32 %v4094, %v445
  %v4220 = vmul.f32 %v4093, %v1990
  %v4221 = vmul.f32 %v4077, %v2005
  %v4222 = vmul.f32 %v4078, %v2006
  %v4223 = vmul.f32 %v4079, %v2007
  %v4224 = vmul.f32 %v4080, %v2008
  %v4225 = vmul.f32 %v4081, %v2009
  %v4226 = vmul.f32 %v4082, %v2010
  %v4227 = vmul.f32 %v4083, %v2011
  %v4228 = vmul.f32 %v4094, %v2004
  %v4229 = vmul.f32 %v4093, %v2047
  %v4230 = vmul.f32 %v4077, %v2063
  %v4231 = vmul.f32 %v4078, %v2064
  %v4232 = vmul.f32 %v4079, %v2065
  %v4233 = vmul.f32 %v4080, %v2066
  %v4234 = vmul.f32 %v4081, %v2067
  %v4235 = vmul.f32 %v4082, %v2068
  %v4236 = vmul.f32 %v4083, %v2069
  %v4237 = vmul.f32 %v4094, %v2061
  %v4238 = vmul.f32 %v4093, %v489
  %v4239 = vmul.f32 %v4077, %v505
  %v4240 = vmul.f32 %v4078, %v506
  %v4241 = vmul.f32 %v4079, %v507
  %v4242 = vmul.f32 %v4080, %v508
  %v4243 = vmul.f32 %v4081, %v509
  %v4244 = vmul.f32 %v4082, %v510
  %v4245 = vmul.f32 %v4083, %v511
  %v4246 = vmul.f32 %v4094, %v503
  %v4247 = vmul.f32 %v4093, %v547
  %v4248 = vmul.f32 %v4077, %v563
  %v4249 = vmul.f32 %v4078, %v564
  %v4250 = vmul.f32 %v4079, %v565
  %v4251 = vmul.f32 %v4080, %v566
  %v4252 = vmul.f32 %v4081, %v567
  %v4253 = vmul.f32 %v4082, %v568
  %v4254 = vmul.f32 %v4083, %v569
  %v4255 = vmul.f32 %v4094, %v561
  %v4256 = vmul.f32 %v4093, %v605
  %v4257 = vmul.f32 %v4077, %v621
  %v4258 = vmul.f32 %v4078, %v622
  %v4259 = vmul.f32 %v4079, %v623
  %v4260 = vmul.f32 %v4080, %v624
  %v4261 = vmul.f32 %v4081, %v625
  %v4262 = vmul.f32 %v4082, %v626
  %v4263 = vmul.f32 %v4083, %v627
  %v4264 = vmul.f32 %v4094, %v619
  %v4265 = vmul.f32 %v4093, %v2132
  %v4266 = vmul.f32 %v4077, %v2148
  %v4267 = vmul.f32 %v4078, %v2149
  %v4268 = vmul.f32 %v4079, %v2150
  %v4269 = vmul.f32 %v4080, %v2151
  %v4270 = vmul.f32 %v4081, %v2152
  %v4271 = vmul.f32 %v4082, %v2153
  %v4272 = vmul.f32 %v4083, %v2154
  %v4273 = vmul.f32 %v4094, %v2146
  %v4274 = vmul.f32 %v4093, %v2190
  %v4275 = vmul.f32 %v4077, %v2206
  %v4276 = vmul.f32 %v4078, %v2207
  %v4277 = vmul.f32 %v4079, %v2208
  %v4278 = vmul.f32 %v4080, %v2209
  %v4279 = vmul.f32 %v4081, %v2210
  %v4280 = vmul.f32 %v4082, %v2211
  %v4281 = vmul.f32 %v4083, %v2212
  %v4282 = vmul.f32 %v4094, %v2204
  %v4283 = vmul.f32 %v4093, %v2248
  %v4284 = vmul.f32 %v4077, %v2264
  %v4285 = vmul.f32 %v4078, %v2265
  %v4286 = vmul.f32 %v4079, %v2266
  %v4287 = vmul.f32 %v4080, %v2267
  %v4288 = vmul.f32 %v4081, %v2268
  %v4289 = vmul.f32 %v4082, %v2269
  %v4290 = vmul.f32 %v4083, %v2270
  %v4291 = vmul.f32 %v4094, %v2262
  %v4292 = vmul.f32 %v4093, %v2306
  %v4293 = vmul.f32 %v4077, %v2322
  %v4294 = vmul.f32 %v4078, %v2323
  %v4295 = vmul.f32 %v4079, %v2324
  %v4296 = vmul.f32 %v4080, %v2325
  %v4297 = vmul.f32 %v4081, %v2326
  %v4298 = vmul.f32 %v4082, %v2327
  %v4299 = vmul.f32 %v4083, %v2328
  %v4300 = vmul.f32 %v4094, %v2320
  %v4301 = vmul.f32 %v4093, %v2364
  %v4302 = vmul.f32 %v4077, %v2380
  %v4303 = vmul.f32 %v4078, %v2381
  %v4304 = vmul.f32 %v4079, %v2382
  %v4305 = vmul.f32 %v4080, %v2383
  %v4306 = vmul.f32 %v4081, %v2384
  %v4307 = vmul.f32 %v4082, %v2385
  %v4308 = vmul.f32 %v4083, %v2386
  %v4309 = vmul.f32 %v4094, %v2378
  %v4310 = vmul.f32 %v4093, %v2422
  %v4311 = vmul.f32 %v4077, %v2438
  %v4312 = vmul.f32 %v4078, %v2439
  %v4313 = vmul.f32 %v4079, %v2440
  %v4314 = vmul.f32 %v4080, %v2441
  %v4315 = vmul.f32 %v4081, %v2442
  %v4316 = vmul.f32 %v4082, %v2443
  %v4317 = vmul.f32 %v4083, %v2444
  %v4318 = vmul.f32 %v4094, %v2436
  %v4328 = vrot.slane %v4103, 4
  %v4329 = vrot.slane %v4104, 4
  %v4330 = vrot.slane %v4105, 4
  %v4331 = vrot.slane %v4106, 4
  %v4332 = vrot.slane %v4107, 4
  %v4333 = vrot.slane %v4108, 4
  %v4334 = vrot.slane %v4109, 4
  %v4335 = vrot.slane %v4110, 4
  %v4336 = vrot.slane %v4111, 4
  %4337 = vrot.lane.b32.xlu0 %v4328, 127
  %v4338 = vpop.permute.xlu0 %4337
  %4339 = vrot.lane.b32.xlu0 %v4329, 127
  %v4340 = vpop.permute.xlu0 %4339
  %4341 = vrot.lane.b32.xlu0 %v4330, 127
  %v4342 = vpop.permute.xlu0 %4341
  %4343 = vrot.lane.b32.xlu0 %v4331, 127
  %v4344 = vpop.permute.xlu0 %4343
  %4345 = vrot.lane.b32.xlu0 %v4332, 127
  %v4346 = vpop.permute.xlu0 %4345
  %4347 = vrot.lane.b32.xlu0 %v4333, 127
  %v4348 = vpop.permute.xlu0 %4347
  %4349 = vrot.lane.b32.xlu0 %v4334, 127
  %v4350 = vpop.permute.xlu0 %4349
  %4351 = vrot.lane.b32.xlu0 %v4335, 127
  %v4352 = vpop.permute.xlu0 %4351
  %4353 = vrot.lane.b32.xlu0 %v4336, 127
  %v4354 = vpop.permute.xlu0 %4353
  %v4355 = vsel %vm682, %v4338, %v4340
  %v4356 = vsel %vm682, %v4340, %v4342
  %v4357 = vsel %vm682, %v4342, %v4344
  %v4358 = vsel %vm682, %v4344, %v4346
  %v4359 = vsel %vm682, %v4346, %v4348
  %v4360 = vsel %vm682, %v4348, %v4350
  %v4361 = vsel %vm682, %v4350, %v4352
  %v4362 = vsel %vm682, %v4352, %v4354
  %4380 = vrot.lane.b32.xlu0 %v4112, 126
  %v4381 = vpop.permute.xlu0 %4380
  %4382 = vrot.lane.b32.xlu0 %v4113, 126
  %v4383 = vpop.permute.xlu0 %4382
  %4384 = vrot.lane.b32.xlu0 %v4114, 126
  %v4385 = vpop.permute.xlu0 %4384
  %4386 = vrot.lane.b32.xlu0 %v4115, 126
  %v4387 = vpop.permute.xlu0 %4386
  %4388 = vrot.lane.b32.xlu0 %v4116, 126
  %v4389 = vpop.permute.xlu0 %4388
  %4390 = vrot.lane.b32.xlu0 %v4117, 126
  %v4391 = vpop.permute.xlu0 %4390
  %4392 = vrot.lane.b32.xlu0 %v4118, 126
  %v4393 = vpop.permute.xlu0 %4392
  %4394 = vrot.lane.b32.xlu0 %v4119, 126
  %v4395 = vpop.permute.xlu0 %4394
  %4396 = vrot.lane.b32.xlu0 %v4120, 126
  %v4397 = vpop.permute.xlu0 %4396
  %v4398 = vsel %vm727, %v4381, %v4383
  %v4399 = vsel %vm727, %v4383, %v4385
  %v4400 = vsel %vm727, %v4385, %v4387
  %v4401 = vsel %vm727, %v4387, %v4389
  %v4402 = vsel %vm727, %v4389, %v4391
  %v4403 = vsel %vm727, %v4391, %v4393
  %v4404 = vsel %vm727, %v4393, %v4395
  %v4405 = vsel %vm727, %v4395, %v4397
  %v4423 = vrot.slane %v4121, 4
  %v4424 = vrot.slane %v4122, 4
  %v4425 = vrot.slane %v4123, 4
  %v4426 = vrot.slane %v4124, 4
  %v4427 = vrot.slane %v4125, 4
  %v4428 = vrot.slane %v4126, 4
  %v4429 = vrot.slane %v4127, 4
  %v4430 = vrot.slane %v4128, 4
  %v4431 = vrot.slane %v4129, 4
  %4432 = vrot.lane.b32.xlu0 %v4423, 125
  %v4433 = vpop.permute.xlu0 %4432
  %4434 = vrot.lane.b32.xlu0 %v4424, 125
  %v4435 = vpop.permute.xlu0 %4434
  %4436 = vrot.lane.b32.xlu0 %v4425, 125
  %v4437 = vpop.permute.xlu0 %4436
  %4438 = vrot.lane.b32.xlu0 %v4426, 125
  %v4439 = vpop.permute.xlu0 %4438
  %4440 = vrot.lane.b32.xlu0 %v4427, 125
  %v4441 = vpop.permute.xlu0 %4440
  %4442 = vrot.lane.b32.xlu0 %v4428, 125
  %v4443 = vpop.permute.xlu0 %4442
  %4444 = vrot.lane.b32.xlu0 %v4429, 125
  %v4445 = vpop.permute.xlu0 %4444
  %4446 = vrot.lane.b32.xlu0 %v4430, 125
  %v4447 = vpop.permute.xlu0 %4446
  %4448 = vrot.lane.b32.xlu0 %v4431, 125
  %v4449 = vpop.permute.xlu0 %4448
  %v4450 = vsel %vm2594, %v4433, %v4435
  %v4451 = vsel %vm2594, %v4435, %v4437
  %v4452 = vsel %vm2594, %v4437, %v4439
  %v4453 = vsel %vm2594, %v4439, %v4441
  %v4454 = vsel %vm2594, %v4441, %v4443
  %v4455 = vsel %vm2594, %v4443, %v4445
  %v4456 = vsel %vm2594, %v4445, %v4447
  %v4457 = vsel %vm2594, %v4447, %v4449
  %4475 = vrot.lane.b32.xlu0 %v4130, 124
  %v4476 = vpop.permute.xlu0 %4475
  %4477 = vrot.lane.b32.xlu0 %v4131, 124
  %v4478 = vpop.permute.xlu0 %4477
  %4479 = vrot.lane.b32.xlu0 %v4132, 124
  %v4480 = vpop.permute.xlu0 %4479
  %4481 = vrot.lane.b32.xlu0 %v4133, 124
  %v4482 = vpop.permute.xlu0 %4481
  %4483 = vrot.lane.b32.xlu0 %v4134, 124
  %v4484 = vpop.permute.xlu0 %4483
  %4485 = vrot.lane.b32.xlu0 %v4135, 124
  %v4486 = vpop.permute.xlu0 %4485
  %4487 = vrot.lane.b32.xlu0 %v4136, 124
  %v4488 = vpop.permute.xlu0 %4487
  %4489 = vrot.lane.b32.xlu0 %v4137, 124
  %v4490 = vpop.permute.xlu0 %4489
  %4491 = vrot.lane.b32.xlu0 %v4138, 124
  %v4492 = vpop.permute.xlu0 %4491
  %v4493 = vsel %vm2638, %v4476, %v4478
  %v4494 = vsel %vm2638, %v4478, %v4480
  %v4495 = vsel %vm2638, %v4480, %v4482
  %v4496 = vsel %vm2638, %v4482, %v4484
  %v4497 = vsel %vm2638, %v4484, %v4486
  %v4498 = vsel %vm2638, %v4486, %v4488
  %v4499 = vsel %vm2638, %v4488, %v4490
  %v4500 = vsel %vm2638, %v4490, %v4492
  %v4518 = vrot.slane %v4139, 4
  %v4519 = vrot.slane %v4140, 4
  %v4520 = vrot.slane %v4141, 4
  %v4521 = vrot.slane %v4142, 4
  %v4522 = vrot.slane %v4143, 4
  %v4523 = vrot.slane %v4144, 4
  %v4524 = vrot.slane %v4145, 4
  %v4525 = vrot.slane %v4146, 4
  %v4526 = vrot.slane %v4147, 4
  %4527 = vrot.lane.b32.xlu0 %v4518, 112
  %v4528 = vpop.permute.xlu0 %4527
  %4529 = vrot.lane.b32.xlu0 %v4519, 112
  %v4530 = vpop.permute.xlu0 %4529
  %4531 = vrot.lane.b32.xlu0 %v4520, 112
  %v4532 = vpop.permute.xlu0 %4531
  %4533 = vrot.lane.b32.xlu0 %v4521, 112
  %v4534 = vpop.permute.xlu0 %4533
  %4535 = vrot.lane.b32.xlu0 %v4522, 112
  %v4536 = vpop.permute.xlu0 %4535
  %4537 = vrot.lane.b32.xlu0 %v4523, 112
  %v4538 = vpop.permute.xlu0 %4537
  %4539 = vrot.lane.b32.xlu0 %v4524, 112
  %v4540 = vpop.permute.xlu0 %4539
  %4541 = vrot.lane.b32.xlu0 %v4525, 112
  %v4542 = vpop.permute.xlu0 %4541
  %4543 = vrot.lane.b32.xlu0 %v4526, 112
  %v4544 = vpop.permute.xlu0 %4543
  %v4545 = vsel %vm781, %v4528, %v4530
  %v4546 = vsel %vm781, %v4530, %v4532
  %v4547 = vsel %vm781, %v4532, %v4534
  %v4548 = vsel %vm781, %v4534, %v4536
  %v4549 = vsel %vm781, %v4536, %v4538
  %v4550 = vsel %vm781, %v4538, %v4540
  %v4551 = vsel %vm781, %v4540, %v4542
  %v4552 = vsel %vm781, %v4542, %v4544
  %4570 = vrot.lane.b32.xlu0 %v4148, 111
  %v4571 = vpop.permute.xlu0 %4570
  %4572 = vrot.lane.b32.xlu0 %v4149, 111
  %v4573 = vpop.permute.xlu0 %4572
  %4574 = vrot.lane.b32.xlu0 %v4150, 111
  %v4575 = vpop.permute.xlu0 %4574
  %4576 = vrot.lane.b32.xlu0 %v4151, 111
  %v4577 = vpop.permute.xlu0 %4576
  %4578 = vrot.lane.b32.xlu0 %v4152, 111
  %v4579 = vpop.permute.xlu0 %4578
  %4580 = vrot.lane.b32.xlu0 %v4153, 111
  %v4581 = vpop.permute.xlu0 %4580
  %4582 = vrot.lane.b32.xlu0 %v4154, 111
  %v4583 = vpop.permute.xlu0 %4582
  %4584 = vrot.lane.b32.xlu0 %v4155, 111
  %v4585 = vpop.permute.xlu0 %4584
  %4586 = vrot.lane.b32.xlu0 %v4156, 111
  %v4587 = vpop.permute.xlu0 %4586
  %v4588 = vsel %vm826, %v4571, %v4573
  %v4589 = vsel %vm826, %v4573, %v4575
  %v4590 = vsel %vm826, %v4575, %v4577
  %v4591 = vsel %vm826, %v4577, %v4579
  %v4592 = vsel %vm826, %v4579, %v4581
  %v4593 = vsel %vm826, %v4581, %v4583
  %v4594 = vsel %vm826, %v4583, %v4585
  %v4595 = vsel %vm826, %v4585, %v4587
  %v4613 = vrot.slane %v4157, 4
  %v4614 = vrot.slane %v4158, 4
  %v4615 = vrot.slane %v4159, 4
  %v4616 = vrot.slane %v4160, 4
  %v4617 = vrot.slane %v4161, 4
  %v4618 = vrot.slane %v4162, 4
  %v4619 = vrot.slane %v4163, 4
  %v4620 = vrot.slane %v4164, 4
  %v4621 = vrot.slane %v4165, 4
  %4622 = vrot.lane.b32.xlu0 %v4613, 110
  %v4623 = vpop.permute.xlu0 %4622
  %4624 = vrot.lane.b32.xlu0 %v4614, 110
  %v4625 = vpop.permute.xlu0 %4624
  %4626 = vrot.lane.b32.xlu0 %v4615, 110
  %v4627 = vpop.permute.xlu0 %4626
  %4628 = vrot.lane.b32.xlu0 %v4616, 110
  %v4629 = vpop.permute.xlu0 %4628
  %4630 = vrot.lane.b32.xlu0 %v4617, 110
  %v4631 = vpop.permute.xlu0 %4630
  %4632 = vrot.lane.b32.xlu0 %v4618, 110
  %v4633 = vpop.permute.xlu0 %4632
  %4634 = vrot.lane.b32.xlu0 %v4619, 110
  %v4635 = vpop.permute.xlu0 %4634
  %4636 = vrot.lane.b32.xlu0 %v4620, 110
  %v4637 = vpop.permute.xlu0 %4636
  %4638 = vrot.lane.b32.xlu0 %v4621, 110
  %v4639 = vpop.permute.xlu0 %4638
  %v4640 = vsel %vm880, %v4623, %v4625
  %v4641 = vsel %vm880, %v4625, %v4627
  %v4642 = vsel %vm880, %v4627, %v4629
  %v4643 = vsel %vm880, %v4629, %v4631
  %v4644 = vsel %vm880, %v4631, %v4633
  %v4645 = vsel %vm880, %v4633, %v4635
  %v4646 = vsel %vm880, %v4635, %v4637
  %v4647 = vsel %vm880, %v4637, %v4639
  %4665 = vrot.lane.b32.xlu0 %v4166, 109
  %v4666 = vpop.permute.xlu0 %4665
  %4667 = vrot.lane.b32.xlu0 %v4167, 109
  %v4668 = vpop.permute.xlu0 %4667
  %4669 = vrot.lane.b32.xlu0 %v4168, 109
  %v4670 = vpop.permute.xlu0 %4669
  %4671 = vrot.lane.b32.xlu0 %v4169, 109
  %v4672 = vpop.permute.xlu0 %4671
  %4673 = vrot.lane.b32.xlu0 %v4170, 109
  %v4674 = vpop.permute.xlu0 %4673
  %4675 = vrot.lane.b32.xlu0 %v4171, 109
  %v4676 = vpop.permute.xlu0 %4675
  %4677 = vrot.lane.b32.xlu0 %v4172, 109
  %v4678 = vpop.permute.xlu0 %4677
  %4679 = vrot.lane.b32.xlu0 %v4173, 109
  %v4680 = vpop.permute.xlu0 %4679
  %4681 = vrot.lane.b32.xlu0 %v4174, 109
  %v4682 = vpop.permute.xlu0 %4681
  %v4683 = vsel %vm2829, %v4666, %v4668
  %v4684 = vsel %vm2829, %v4668, %v4670
  %v4685 = vsel %vm2829, %v4670, %v4672
  %v4686 = vsel %vm2829, %v4672, %v4674
  %v4687 = vsel %vm2829, %v4674, %v4676
  %v4688 = vsel %vm2829, %v4676, %v4678
  %v4689 = vsel %vm2829, %v4678, %v4680
  %v4690 = vsel %vm2829, %v4680, %v4682
  %v4708 = vrot.slane %v4175, 4
  %v4709 = vrot.slane %v4176, 4
  %v4710 = vrot.slane %v4177, 4
  %v4711 = vrot.slane %v4178, 4
  %v4712 = vrot.slane %v4179, 4
  %v4713 = vrot.slane %v4180, 4
  %v4714 = vrot.slane %v4181, 4
  %v4715 = vrot.slane %v4182, 4
  %v4716 = vrot.slane %v4183, 4
  %4717 = vrot.lane.b32.xlu0 %v4708, 108
  %v4718 = vpop.permute.xlu0 %4717
  %4719 = vrot.lane.b32.xlu0 %v4709, 108
  %v4720 = vpop.permute.xlu0 %4719
  %4721 = vrot.lane.b32.xlu0 %v4710, 108
  %v4722 = vpop.permute.xlu0 %4721
  %4723 = vrot.lane.b32.xlu0 %v4711, 108
  %v4724 = vpop.permute.xlu0 %4723
  %4725 = vrot.lane.b32.xlu0 %v4712, 108
  %v4726 = vpop.permute.xlu0 %4725
  %4727 = vrot.lane.b32.xlu0 %v4713, 108
  %v4728 = vpop.permute.xlu0 %4727
  %4729 = vrot.lane.b32.xlu0 %v4714, 108
  %v4730 = vpop.permute.xlu0 %4729
  %4731 = vrot.lane.b32.xlu0 %v4715, 108
  %v4732 = vpop.permute.xlu0 %4731
  %4733 = vrot.lane.b32.xlu0 %v4716, 108
  %v4734 = vpop.permute.xlu0 %4733
  %v4735 = vsel %vm2882, %v4718, %v4720
  %v4736 = vsel %vm2882, %v4720, %v4722
  %v4737 = vsel %vm2882, %v4722, %v4724
  %v4738 = vsel %vm2882, %v4724, %v4726
  %v4739 = vsel %vm2882, %v4726, %v4728
  %v4740 = vsel %vm2882, %v4728, %v4730
  %v4741 = vsel %vm2882, %v4730, %v4732
  %v4742 = vsel %vm2882, %v4732, %v4734
  %4760 = vrot.lane.b32.xlu0 %v4184, 96
  %v4761 = vpop.permute.xlu0 %4760
  %4762 = vrot.lane.b32.xlu0 %v4185, 96
  %v4763 = vpop.permute.xlu0 %4762
  %4764 = vrot.lane.b32.xlu0 %v4186, 96
  %v4765 = vpop.permute.xlu0 %4764
  %4766 = vrot.lane.b32.xlu0 %v4187, 96
  %v4767 = vpop.permute.xlu0 %4766
  %4768 = vrot.lane.b32.xlu0 %v4188, 96
  %v4769 = vpop.permute.xlu0 %4768
  %4770 = vrot.lane.b32.xlu0 %v4189, 96
  %v4771 = vpop.permute.xlu0 %4770
  %4772 = vrot.lane.b32.xlu0 %v4190, 96
  %v4773 = vpop.permute.xlu0 %4772
  %4774 = vrot.lane.b32.xlu0 %v4191, 96
  %v4775 = vpop.permute.xlu0 %4774
  %4776 = vrot.lane.b32.xlu0 %v4192, 96
  %v4777 = vpop.permute.xlu0 %4776
  %v4778 = vsel %vm925, %v4761, %v4763
  %v4779 = vsel %vm925, %v4763, %v4765
  %v4780 = vsel %vm925, %v4765, %v4767
  %v4781 = vsel %vm925, %v4767, %v4769
  %v4782 = vsel %vm925, %v4769, %v4771
  %v4783 = vsel %vm925, %v4771, %v4773
  %v4784 = vsel %vm925, %v4773, %v4775
  %v4785 = vsel %vm925, %v4775, %v4777
  %v4803 = vrot.slane %v4193, 4
  %v4804 = vrot.slane %v4194, 4
  %v4805 = vrot.slane %v4195, 4
  %v4806 = vrot.slane %v4196, 4
  %v4807 = vrot.slane %v4197, 4
  %v4808 = vrot.slane %v4198, 4
  %v4809 = vrot.slane %v4199, 4
  %v4810 = vrot.slane %v4200, 4
  %v4811 = vrot.slane %v4201, 4
  %4812 = vrot.lane.b32.xlu0 %v4803, 95
  %v4813 = vpop.permute.xlu0 %4812
  %4814 = vrot.lane.b32.xlu0 %v4804, 95
  %v4815 = vpop.permute.xlu0 %4814
  %4816 = vrot.lane.b32.xlu0 %v4805, 95
  %v4817 = vpop.permute.xlu0 %4816
  %4818 = vrot.lane.b32.xlu0 %v4806, 95
  %v4819 = vpop.permute.xlu0 %4818
  %4820 = vrot.lane.b32.xlu0 %v4807, 95
  %v4821 = vpop.permute.xlu0 %4820
  %4822 = vrot.lane.b32.xlu0 %v4808, 95
  %v4823 = vpop.permute.xlu0 %4822
  %4824 = vrot.lane.b32.xlu0 %v4809, 95
  %v4825 = vpop.permute.xlu0 %4824
  %4826 = vrot.lane.b32.xlu0 %v4810, 95
  %v4827 = vpop.permute.xlu0 %4826
  %4828 = vrot.lane.b32.xlu0 %v4811, 95
  %v4829 = vpop.permute.xlu0 %4828
  %v4830 = vsel %vm979, %v4813, %v4815
  %v4831 = vsel %vm979, %v4815, %v4817
  %v4832 = vsel %vm979, %v4817, %v4819
  %v4833 = vsel %vm979, %v4819, %v4821
  %v4834 = vsel %vm979, %v4821, %v4823
  %v4835 = vsel %vm979, %v4823, %v4825
  %v4836 = vsel %vm979, %v4825, %v4827
  %v4837 = vsel %vm979, %v4827, %v4829
  %4855 = vrot.lane.b32.xlu0 %v4202, 94
  %v4856 = vpop.permute.xlu0 %4855
  %4857 = vrot.lane.b32.xlu0 %v4203, 94
  %v4858 = vpop.permute.xlu0 %4857
  %4859 = vrot.lane.b32.xlu0 %v4204, 94
  %v4860 = vpop.permute.xlu0 %4859
  %4861 = vrot.lane.b32.xlu0 %v4205, 94
  %v4862 = vpop.permute.xlu0 %4861
  %4863 = vrot.lane.b32.xlu0 %v4206, 94
  %v4864 = vpop.permute.xlu0 %4863
  %4865 = vrot.lane.b32.xlu0 %v4207, 94
  %v4866 = vpop.permute.xlu0 %4865
  %4867 = vrot.lane.b32.xlu0 %v4208, 94
  %v4868 = vpop.permute.xlu0 %4867
  %4869 = vrot.lane.b32.xlu0 %v4209, 94
  %v4870 = vpop.permute.xlu0 %4869
  %4871 = vrot.lane.b32.xlu0 %v4210, 94
  %v4872 = vpop.permute.xlu0 %4871
  %v4873 = vsel %vm1024, %v4856, %v4858
  %v4874 = vsel %vm1024, %v4858, %v4860
  %v4875 = vsel %vm1024, %v4860, %v4862
  %v4876 = vsel %vm1024, %v4862, %v4864
  %v4877 = vsel %vm1024, %v4864, %v4866
  %v4878 = vsel %vm1024, %v4866, %v4868
  %v4879 = vsel %vm1024, %v4868, %v4870
  %v4880 = vsel %vm1024, %v4870, %v4872
  %v4898 = vrot.slane %v4211, 4
  %v4899 = vrot.slane %v4212, 4
  %v4900 = vrot.slane %v4213, 4
  %v4901 = vrot.slane %v4214, 4
  %v4902 = vrot.slane %v4215, 4
  %v4903 = vrot.slane %v4216, 4
  %v4904 = vrot.slane %v4217, 4
  %v4905 = vrot.slane %v4218, 4
  %v4906 = vrot.slane %v4219, 4
  %4907 = vrot.lane.b32.xlu0 %v4898, 93
  %v4908 = vpop.permute.xlu0 %4907
  %4909 = vrot.lane.b32.xlu0 %v4899, 93
  %v4910 = vpop.permute.xlu0 %4909
  %4911 = vrot.lane.b32.xlu0 %v4900, 93
  %v4912 = vpop.permute.xlu0 %4911
  %4913 = vrot.lane.b32.xlu0 %v4901, 93
  %v4914 = vpop.permute.xlu0 %4913
  %4915 = vrot.lane.b32.xlu0 %v4902, 93
  %v4916 = vpop.permute.xlu0 %4915
  %4917 = vrot.lane.b32.xlu0 %v4903, 93
  %v4918 = vpop.permute.xlu0 %4917
  %4919 = vrot.lane.b32.xlu0 %v4904, 93
  %v4920 = vpop.permute.xlu0 %4919
  %4921 = vrot.lane.b32.xlu0 %v4905, 93
  %v4922 = vpop.permute.xlu0 %4921
  %4923 = vrot.lane.b32.xlu0 %v4906, 93
  %v4924 = vpop.permute.xlu0 %4923
  %v4925 = vsel %vm3073, %v4908, %v4910
  %v4926 = vsel %vm3073, %v4910, %v4912
  %v4927 = vsel %vm3073, %v4912, %v4914
  %v4928 = vsel %vm3073, %v4914, %v4916
  %v4929 = vsel %vm3073, %v4916, %v4918
  %v4930 = vsel %vm3073, %v4918, %v4920
  %v4931 = vsel %vm3073, %v4920, %v4922
  %v4932 = vsel %vm3073, %v4922, %v4924
  %4950 = vrot.lane.b32.xlu0 %v4220, 92
  %v4951 = vpop.permute.xlu0 %4950
  %4952 = vrot.lane.b32.xlu0 %v4221, 92
  %v4953 = vpop.permute.xlu0 %4952
  %4954 = vrot.lane.b32.xlu0 %v4222, 92
  %v4955 = vpop.permute.xlu0 %4954
  %4956 = vrot.lane.b32.xlu0 %v4223, 92
  %v4957 = vpop.permute.xlu0 %4956
  %4958 = vrot.lane.b32.xlu0 %v4224, 92
  %v4959 = vpop.permute.xlu0 %4958
  %4960 = vrot.lane.b32.xlu0 %v4225, 92
  %v4961 = vpop.permute.xlu0 %4960
  %4962 = vrot.lane.b32.xlu0 %v4226, 92
  %v4963 = vpop.permute.xlu0 %4962
  %4964 = vrot.lane.b32.xlu0 %v4227, 92
  %v4965 = vpop.permute.xlu0 %4964
  %4966 = vrot.lane.b32.xlu0 %v4228, 92
  %v4967 = vpop.permute.xlu0 %4966
  %v4968 = vsel %vm3117, %v4951, %v4953
  %v4969 = vsel %vm3117, %v4953, %v4955
  %v4970 = vsel %vm3117, %v4955, %v4957
  %v4971 = vsel %vm3117, %v4957, %v4959
  %v4972 = vsel %vm3117, %v4959, %v4961
  %v4973 = vsel %vm3117, %v4961, %v4963
  %v4974 = vsel %vm3117, %v4963, %v4965
  %v4975 = vsel %vm3117, %v4965, %v4967
  %v4993 = vrot.slane %v4229, 4
  %v4994 = vrot.slane %v4230, 4
  %v4995 = vrot.slane %v4231, 4
  %v4996 = vrot.slane %v4232, 4
  %v4997 = vrot.slane %v4233, 4
  %v4998 = vrot.slane %v4234, 4
  %v4999 = vrot.slane %v4235, 4
  %v5000 = vrot.slane %v4236, 4
  %v5001 = vrot.slane %v4237, 4
  %5002 = vrot.lane.b32.xlu0 %v4993, 80
  %v5003 = vpop.permute.xlu0 %5002
  %5004 = vrot.lane.b32.xlu0 %v4994, 80
  %v5005 = vpop.permute.xlu0 %5004
  %5006 = vrot.lane.b32.xlu0 %v4995, 80
  %v5007 = vpop.permute.xlu0 %5006
  %5008 = vrot.lane.b32.xlu0 %v4996, 80
  %v5009 = vpop.permute.xlu0 %5008
  %5010 = vrot.lane.b32.xlu0 %v4997, 80
  %v5011 = vpop.permute.xlu0 %5010
  %5012 = vrot.lane.b32.xlu0 %v4998, 80
  %v5013 = vpop.permute.xlu0 %5012
  %5014 = vrot.lane.b32.xlu0 %v4999, 80
  %v5015 = vpop.permute.xlu0 %5014
  %5016 = vrot.lane.b32.xlu0 %v5000, 80
  %v5017 = vpop.permute.xlu0 %5016
  %5018 = vrot.lane.b32.xlu0 %v5001, 80
  %v5019 = vpop.permute.xlu0 %5018
  %v5020 = vsel %vm3170, %v5003, %v5005
  %v5021 = vsel %vm3170, %v5005, %v5007
  %v5022 = vsel %vm3170, %v5007, %v5009
  %v5023 = vsel %vm3170, %v5009, %v5011
  %v5024 = vsel %vm3170, %v5011, %v5013
  %v5025 = vsel %vm3170, %v5013, %v5015
  %v5026 = vsel %vm3170, %v5015, %v5017
  %v5027 = vsel %vm3170, %v5017, %v5019
  %v5036 = vsel %vm1033, %v4095, %v4355
  %v5037 = vsel %vm1033, %v4096, %v4356
  %v5038 = vsel %vm1033, %v4097, %v4357
  %v5039 = vsel %vm1033, %v4098, %v4358
  %v5040 = vsel %vm1033, %v4099, %v4359
  %v5041 = vsel %vm1033, %v4100, %v4360
  %v5042 = vsel %vm1033, %v4101, %v4361
  %v5043 = vsel %vm1033, %v4102, %v4362
  %v5044 = vsel %vm1033, %v4398, %v4450
  %v5045 = vsel %vm1033, %v4399, %v4451
  %v5046 = vsel %vm1033, %v4400, %v4452
  %v5047 = vsel %vm1033, %v4401, %v4453
  %v5048 = vsel %vm1033, %v4402, %v4454
  %v5049 = vsel %vm1033, %v4403, %v4455
  %v5050 = vsel %vm1033, %v4404, %v4456
  %v5051 = vsel %vm1033, %v4405, %v4457
  %v5052 = vsel %vm1033, %v4493, %v4545
  %v5053 = vsel %vm1033, %v4494, %v4546
  %v5054 = vsel %vm1033, %v4495, %v4547
  %v5055 = vsel %vm1033, %v4496, %v4548
  %v5056 = vsel %vm1033, %v4497, %v4549
  %v5057 = vsel %vm1033, %v4498, %v4550
  %v5058 = vsel %vm1033, %v4499, %v4551
  %v5059 = vsel %vm1033, %v4500, %v4552
  %v5060 = vsel %vm1033, %v4588, %v4640
  %v5061 = vsel %vm1033, %v4589, %v4641
  %v5062 = vsel %vm1033, %v4590, %v4642
  %v5063 = vsel %vm1033, %v4591, %v4643
  %v5064 = vsel %vm1033, %v4592, %v4644
  %v5065 = vsel %vm1033, %v4593, %v4645
  %v5066 = vsel %vm1033, %v4594, %v4646
  %v5067 = vsel %vm1033, %v4595, %v4647
  %v5068 = vsel %vm1033, %v4683, %v4735
  %v5069 = vsel %vm1033, %v4684, %v4736
  %v5070 = vsel %vm1033, %v4685, %v4737
  %v5071 = vsel %vm1033, %v4686, %v4738
  %v5072 = vsel %vm1033, %v4687, %v4739
  %v5073 = vsel %vm1033, %v4688, %v4740
  %v5074 = vsel %vm1033, %v4689, %v4741
  %v5075 = vsel %vm1033, %v4690, %v4742
  %v5076 = vsel %vm1033, %v4778, %v4830
  %v5077 = vsel %vm1033, %v4779, %v4831
  %v5078 = vsel %vm1033, %v4780, %v4832
  %v5079 = vsel %vm1033, %v4781, %v4833
  %v5080 = vsel %vm1033, %v4782, %v4834
  %v5081 = vsel %vm1033, %v4783, %v4835
  %v5082 = vsel %vm1033, %v4784, %v4836
  %v5083 = vsel %vm1033, %v4785, %v4837
  %v5084 = vsel %vm1033, %v4873, %v4925
  %v5085 = vsel %vm1033, %v4874, %v4926
  %v5086 = vsel %vm1033, %v4875, %v4927
  %v5087 = vsel %vm1033, %v4876, %v4928
  %v5088 = vsel %vm1033, %v4877, %v4929
  %v5089 = vsel %vm1033, %v4878, %v4930
  %v5090 = vsel %vm1033, %v4879, %v4931
  %v5091 = vsel %vm1033, %v4880, %v4932
  %v5092 = vsel %vm1033, %v4968, %v5020
  %v5093 = vsel %vm1033, %v4969, %v5021
  %v5094 = vsel %vm1033, %v4970, %v5022
  %v5095 = vsel %vm1033, %v4971, %v5023
  %v5096 = vsel %vm1033, %v4972, %v5024
  %v5097 = vsel %vm1033, %v4973, %v5025
  %v5098 = vsel %vm1033, %v4974, %v5026
  %v5099 = vsel %vm1033, %v4975, %v5027
  %v5109 = vrot.slane %v4247, 4
  %v5110 = vrot.slane %v4248, 4
  %v5111 = vrot.slane %v4249, 4
  %v5112 = vrot.slane %v4250, 4
  %v5113 = vrot.slane %v4251, 4
  %v5114 = vrot.slane %v4252, 4
  %v5115 = vrot.slane %v4253, 4
  %v5116 = vrot.slane %v4254, 4
  %v5117 = vrot.slane %v4255, 4
  %5118 = vrot.lane.b32.xlu0 %v5109, 127
  %v5119 = vpop.permute.xlu0 %5118
  %5120 = vrot.lane.b32.xlu0 %v5110, 127
  %v5121 = vpop.permute.xlu0 %5120
  %5122 = vrot.lane.b32.xlu0 %v5111, 127
  %v5123 = vpop.permute.xlu0 %5122
  %5124 = vrot.lane.b32.xlu0 %v5112, 127
  %v5125 = vpop.permute.xlu0 %5124
  %5126 = vrot.lane.b32.xlu0 %v5113, 127
  %v5127 = vpop.permute.xlu0 %5126
  %5128 = vrot.lane.b32.xlu0 %v5114, 127
  %v5129 = vpop.permute.xlu0 %5128
  %5130 = vrot.lane.b32.xlu0 %v5115, 127
  %v5131 = vpop.permute.xlu0 %5130
  %5132 = vrot.lane.b32.xlu0 %v5116, 127
  %v5133 = vpop.permute.xlu0 %5132
  %5134 = vrot.lane.b32.xlu0 %v5117, 127
  %v5135 = vpop.permute.xlu0 %5134
  %v5136 = vsel %vm682, %v5119, %v5121
  %v5137 = vsel %vm682, %v5121, %v5123
  %v5138 = vsel %vm682, %v5123, %v5125
  %v5139 = vsel %vm682, %v5125, %v5127
  %v5140 = vsel %vm682, %v5127, %v5129
  %v5141 = vsel %vm682, %v5129, %v5131
  %v5142 = vsel %vm682, %v5131, %v5133
  %v5143 = vsel %vm682, %v5133, %v5135
  %5162 = vrot.lane.b32.xlu0 %v4256, 126
  %v5163 = vpop.permute.xlu0 %5162
  %5164 = vrot.lane.b32.xlu0 %v4257, 126
  %v5165 = vpop.permute.xlu0 %5164
  %5166 = vrot.lane.b32.xlu0 %v4258, 126
  %v5167 = vpop.permute.xlu0 %5166
  %5168 = vrot.lane.b32.xlu0 %v4259, 126
  %v5169 = vpop.permute.xlu0 %5168
  %5170 = vrot.lane.b32.xlu0 %v4260, 126
  %v5171 = vpop.permute.xlu0 %5170
  %5172 = vrot.lane.b32.xlu0 %v4261, 126
  %v5173 = vpop.permute.xlu0 %5172
  %5174 = vrot.lane.b32.xlu0 %v4262, 126
  %v5175 = vpop.permute.xlu0 %5174
  %5176 = vrot.lane.b32.xlu0 %v4263, 126
  %v5177 = vpop.permute.xlu0 %5176
  %5178 = vrot.lane.b32.xlu0 %v4264, 126
  %v5179 = vpop.permute.xlu0 %5178
  %v5180 = vsel %vm727, %v5163, %v5165
  %v5181 = vsel %vm727, %v5165, %v5167
  %v5182 = vsel %vm727, %v5167, %v5169
  %v5183 = vsel %vm727, %v5169, %v5171
  %v5184 = vsel %vm727, %v5171, %v5173
  %v5185 = vsel %vm727, %v5173, %v5175
  %v5186 = vsel %vm727, %v5175, %v5177
  %v5187 = vsel %vm727, %v5177, %v5179
  %v5206 = vrot.slane %v4265, 4
  %v5207 = vrot.slane %v4266, 4
  %v5208 = vrot.slane %v4267, 4
  %v5209 = vrot.slane %v4268, 4
  %v5210 = vrot.slane %v4269, 4
  %v5211 = vrot.slane %v4270, 4
  %v5212 = vrot.slane %v4271, 4
  %v5213 = vrot.slane %v4272, 4
  %v5214 = vrot.slane %v4273, 4
  %5215 = vrot.lane.b32.xlu0 %v5206, 125
  %v5216 = vpop.permute.xlu0 %5215
  %5217 = vrot.lane.b32.xlu0 %v5207, 125
  %v5218 = vpop.permute.xlu0 %5217
  %5219 = vrot.lane.b32.xlu0 %v5208, 125
  %v5220 = vpop.permute.xlu0 %5219
  %5221 = vrot.lane.b32.xlu0 %v5209, 125
  %v5222 = vpop.permute.xlu0 %5221
  %5223 = vrot.lane.b32.xlu0 %v5210, 125
  %v5224 = vpop.permute.xlu0 %5223
  %5225 = vrot.lane.b32.xlu0 %v5211, 125
  %v5226 = vpop.permute.xlu0 %5225
  %5227 = vrot.lane.b32.xlu0 %v5212, 125
  %v5228 = vpop.permute.xlu0 %5227
  %5229 = vrot.lane.b32.xlu0 %v5213, 125
  %v5230 = vpop.permute.xlu0 %5229
  %5231 = vrot.lane.b32.xlu0 %v5214, 125
  %v5232 = vpop.permute.xlu0 %5231
  %v5233 = vsel %vm2594, %v5216, %v5218
  %v5234 = vsel %vm2594, %v5218, %v5220
  %v5235 = vsel %vm2594, %v5220, %v5222
  %v5236 = vsel %vm2594, %v5222, %v5224
  %v5237 = vsel %vm2594, %v5224, %v5226
  %v5238 = vsel %vm2594, %v5226, %v5228
  %v5239 = vsel %vm2594, %v5228, %v5230
  %v5240 = vsel %vm2594, %v5230, %v5232
  %5259 = vrot.lane.b32.xlu0 %v4274, 113
  %v5260 = vpop.permute.xlu0 %5259
  %5261 = vrot.lane.b32.xlu0 %v4275, 113
  %v5262 = vpop.permute.xlu0 %5261
  %5263 = vrot.lane.b32.xlu0 %v4276, 113
  %v5264 = vpop.permute.xlu0 %5263
  %5265 = vrot.lane.b32.xlu0 %v4277, 113
  %v5266 = vpop.permute.xlu0 %5265
  %5267 = vrot.lane.b32.xlu0 %v4278, 113
  %v5268 = vpop.permute.xlu0 %5267
  %5269 = vrot.lane.b32.xlu0 %v4279, 113
  %v5270 = vpop.permute.xlu0 %5269
  %5271 = vrot.lane.b32.xlu0 %v4280, 113
  %v5272 = vpop.permute.xlu0 %5271
  %5273 = vrot.lane.b32.xlu0 %v4281, 113
  %v5274 = vpop.permute.xlu0 %5273
  %5275 = vrot.lane.b32.xlu0 %v4282, 113
  %v5276 = vpop.permute.xlu0 %5275
  %v5277 = vsel %vm3428, %v5260, %v5262
  %v5278 = vsel %vm3428, %v5262, %v5264
  %v5279 = vsel %vm3428, %v5264, %v5266
  %v5280 = vsel %vm3428, %v5266, %v5268
  %v5281 = vsel %vm3428, %v5268, %v5270
  %v5282 = vsel %vm3428, %v5270, %v5272
  %v5283 = vsel %vm3428, %v5272, %v5274
  %v5284 = vsel %vm3428, %v5274, %v5276
  %v5303 = vrot.slane %v4283, 4
  %v5304 = vrot.slane %v4284, 4
  %v5305 = vrot.slane %v4285, 4
  %v5306 = vrot.slane %v4286, 4
  %v5307 = vrot.slane %v4287, 4
  %v5308 = vrot.slane %v4288, 4
  %v5309 = vrot.slane %v4289, 4
  %v5310 = vrot.slane %v4290, 4
  %v5311 = vrot.slane %v4291, 4
  %5312 = vrot.lane.b32.xlu0 %v5303, 112
  %v5313 = vpop.permute.xlu0 %5312
  %5314 = vrot.lane.b32.xlu0 %v5304, 112
  %v5315 = vpop.permute.xlu0 %5314
  %5316 = vrot.lane.b32.xlu0 %v5305, 112
  %v5317 = vpop.permute.xlu0 %5316
  %5318 = vrot.lane.b32.xlu0 %v5306, 112
  %v5319 = vpop.permute.xlu0 %5318
  %5320 = vrot.lane.b32.xlu0 %v5307, 112
  %v5321 = vpop.permute.xlu0 %5320
  %5322 = vrot.lane.b32.xlu0 %v5308, 112
  %v5323 = vpop.permute.xlu0 %5322
  %5324 = vrot.lane.b32.xlu0 %v5309, 112
  %v5325 = vpop.permute.xlu0 %5324
  %5326 = vrot.lane.b32.xlu0 %v5310, 112
  %v5327 = vpop.permute.xlu0 %5326
  %5328 = vrot.lane.b32.xlu0 %v5311, 112
  %v5329 = vpop.permute.xlu0 %5328
  %v5330 = vsel %vm781, %v5313, %v5315
  %v5331 = vsel %vm781, %v5315, %v5317
  %v5332 = vsel %vm781, %v5317, %v5319
  %v5333 = vsel %vm781, %v5319, %v5321
  %v5334 = vsel %vm781, %v5321, %v5323
  %v5335 = vsel %vm781, %v5323, %v5325
  %v5336 = vsel %vm781, %v5325, %v5327
  %v5337 = vsel %vm781, %v5327, %v5329
  %5356 = vrot.lane.b32.xlu0 %v4292, 111
  %v5357 = vpop.permute.xlu0 %5356
  %5358 = vrot.lane.b32.xlu0 %v4293, 111
  %v5359 = vpop.permute.xlu0 %5358
  %5360 = vrot.lane.b32.xlu0 %v4294, 111
  %v5361 = vpop.permute.xlu0 %5360
  %5362 = vrot.lane.b32.xlu0 %v4295, 111
  %v5363 = vpop.permute.xlu0 %5362
  %5364 = vrot.lane.b32.xlu0 %v4296, 111
  %v5365 = vpop.permute.xlu0 %5364
  %5366 = vrot.lane.b32.xlu0 %v4297, 111
  %v5367 = vpop.permute.xlu0 %5366
  %5368 = vrot.lane.b32.xlu0 %v4298, 111
  %v5369 = vpop.permute.xlu0 %5368
  %5370 = vrot.lane.b32.xlu0 %v4299, 111
  %v5371 = vpop.permute.xlu0 %5370
  %5372 = vrot.lane.b32.xlu0 %v4300, 111
  %v5373 = vpop.permute.xlu0 %5372
  %v5374 = vsel %vm826, %v5357, %v5359
  %v5375 = vsel %vm826, %v5359, %v5361
  %v5376 = vsel %vm826, %v5361, %v5363
  %v5377 = vsel %vm826, %v5363, %v5365
  %v5378 = vsel %vm826, %v5365, %v5367
  %v5379 = vsel %vm826, %v5367, %v5369
  %v5380 = vsel %vm826, %v5369, %v5371
  %v5381 = vsel %vm826, %v5371, %v5373
  %v5400 = vrot.slane %v4301, 4
  %v5401 = vrot.slane %v4302, 4
  %v5402 = vrot.slane %v4303, 4
  %v5403 = vrot.slane %v4304, 4
  %v5404 = vrot.slane %v4305, 4
  %v5405 = vrot.slane %v4306, 4
  %v5406 = vrot.slane %v4307, 4
  %v5407 = vrot.slane %v4308, 4
  %v5408 = vrot.slane %v4309, 4
  %5409 = vrot.lane.b32.xlu0 %v5400, 110
  %v5410 = vpop.permute.xlu0 %5409
  %5411 = vrot.lane.b32.xlu0 %v5401, 110
  %v5412 = vpop.permute.xlu0 %5411
  %5413 = vrot.lane.b32.xlu0 %v5402, 110
  %v5414 = vpop.permute.xlu0 %5413
  %5415 = vrot.lane.b32.xlu0 %v5403, 110
  %v5416 = vpop.permute.xlu0 %5415
  %5417 = vrot.lane.b32.xlu0 %v5404, 110
  %v5418 = vpop.permute.xlu0 %5417
  %5419 = vrot.lane.b32.xlu0 %v5405, 110
  %v5420 = vpop.permute.xlu0 %5419
  %5421 = vrot.lane.b32.xlu0 %v5406, 110
  %v5422 = vpop.permute.xlu0 %5421
  %5423 = vrot.lane.b32.xlu0 %v5407, 110
  %v5424 = vpop.permute.xlu0 %5423
  %5425 = vrot.lane.b32.xlu0 %v5408, 110
  %v5426 = vpop.permute.xlu0 %5425
  %v5427 = vsel %vm880, %v5410, %v5412
  %v5428 = vsel %vm880, %v5412, %v5414
  %v5429 = vsel %vm880, %v5414, %v5416
  %v5430 = vsel %vm880, %v5416, %v5418
  %v5431 = vsel %vm880, %v5418, %v5420
  %v5432 = vsel %vm880, %v5420, %v5422
  %v5433 = vsel %vm880, %v5422, %v5424
  %v5434 = vsel %vm880, %v5424, %v5426
  %5453 = vrot.lane.b32.xlu0 %v4310, 109
  %v5454 = vpop.permute.xlu0 %5453
  %5455 = vrot.lane.b32.xlu0 %v4311, 109
  %v5456 = vpop.permute.xlu0 %5455
  %5457 = vrot.lane.b32.xlu0 %v4312, 109
  %v5458 = vpop.permute.xlu0 %5457
  %5459 = vrot.lane.b32.xlu0 %v4313, 109
  %v5460 = vpop.permute.xlu0 %5459
  %5461 = vrot.lane.b32.xlu0 %v4314, 109
  %v5462 = vpop.permute.xlu0 %5461
  %5463 = vrot.lane.b32.xlu0 %v4315, 109
  %v5464 = vpop.permute.xlu0 %5463
  %5465 = vrot.lane.b32.xlu0 %v4316, 109
  %v5466 = vpop.permute.xlu0 %5465
  %5467 = vrot.lane.b32.xlu0 %v4317, 109
  %v5468 = vpop.permute.xlu0 %5467
  %5469 = vrot.lane.b32.xlu0 %v4318, 109
  %v5470 = vpop.permute.xlu0 %5469
  %v5471 = vsel %vm2829, %v5454, %v5456
  %v5472 = vsel %vm2829, %v5456, %v5458
  %v5473 = vsel %vm2829, %v5458, %v5460
  %v5474 = vsel %vm2829, %v5460, %v5462
  %v5475 = vsel %vm2829, %v5462, %v5464
  %v5476 = vsel %vm2829, %v5464, %v5466
  %v5477 = vsel %vm2829, %v5466, %v5468
  %v5478 = vsel %vm2829, %v5468, %v5470
  %v5479 = vsel %vm1033, %v4238, %v5136
  %v5480 = vsel %vm1033, %v4239, %v5137
  %v5481 = vsel %vm1033, %v4240, %v5138
  %v5482 = vsel %vm1033, %v4241, %v5139
  %v5483 = vsel %vm1033, %v4242, %v5140
  %v5484 = vsel %vm1033, %v4243, %v5141
  %v5485 = vsel %vm1033, %v4244, %v5142
  %v5486 = vsel %vm1033, %v4245, %v5143
  %v5487 = vsel %vm1033, %v4246, %v5135
  %v5488 = vsel %vm1033, %v5180, %v5233
  %v5489 = vsel %vm1033, %v5181, %v5234
  %v5490 = vsel %vm1033, %v5182, %v5235
  %v5491 = vsel %vm1033, %v5183, %v5236
  %v5492 = vsel %vm1033, %v5184, %v5237
  %v5493 = vsel %vm1033, %v5185, %v5238
  %v5494 = vsel %vm1033, %v5186, %v5239
  %v5495 = vsel %vm1033, %v5187, %v5240
  %v5496 = vsel %vm1033, %v5179, %v5232
  %v5497 = vsel %vm1033, %v5277, %v5330
  %v5498 = vsel %vm1033, %v5278, %v5331
  %v5499 = vsel %vm1033, %v5279, %v5332
  %v5500 = vsel %vm1033, %v5280, %v5333
  %v5501 = vsel %vm1033, %v5281, %v5334
  %v5502 = vsel %vm1033, %v5282, %v5335
  %v5503 = vsel %vm1033, %v5283, %v5336
  %v5504 = vsel %vm1033, %v5284, %v5337
  %v5505 = vsel %vm1033, %v5276, %v5329
  %v5506 = vsel %vm1033, %v5374, %v5427
  %v5507 = vsel %vm1033, %v5375, %v5428
  %v5508 = vsel %vm1033, %v5376, %v5429
  %v5509 = vsel %vm1033, %v5377, %v5430
  %v5510 = vsel %vm1033, %v5378, %v5431
  %v5511 = vsel %vm1033, %v5379, %v5432
  %v5512 = vsel %vm1033, %v5380, %v5433
  %v5513 = vsel %vm1033, %v5381, %v5434
  %v5514 = vsel %vm1033, %v5373, %v5426
  %5551 = vrot.lane.b32.xlu0 %v5479, 79
  %v5552 = vpop.permute.xlu0 %5551
  %5553 = vrot.lane.b32.xlu0 %v5480, 79
  %v5554 = vpop.permute.xlu0 %5553
  %5555 = vrot.lane.b32.xlu0 %v5481, 79
  %v5556 = vpop.permute.xlu0 %5555
  %5557 = vrot.lane.b32.xlu0 %v5482, 79
  %v5558 = vpop.permute.xlu0 %5557
  %5559 = vrot.lane.b32.xlu0 %v5483, 79
  %v5560 = vpop.permute.xlu0 %5559
  %5561 = vrot.lane.b32.xlu0 %v5484, 79
  %v5562 = vpop.permute.xlu0 %5561
  %5563 = vrot.lane.b32.xlu0 %v5485, 79
  %v5564 = vpop.permute.xlu0 %5563
  %5565 = vrot.lane.b32.xlu0 %v5486, 79
  %v5566 = vpop.permute.xlu0 %5565
  %5567 = vrot.lane.b32.xlu0 %v5487, 79
  %v5568 = vpop.permute.xlu0 %5567
  %5569 = vrot.lane.b32.xlu0 %v5488, 79
  %v5570 = vpop.permute.xlu0 %5569
  %5571 = vrot.lane.b32.xlu0 %v5489, 79
  %v5572 = vpop.permute.xlu0 %5571
  %5573 = vrot.lane.b32.xlu0 %v5490, 79
  %v5574 = vpop.permute.xlu0 %5573
  %5575 = vrot.lane.b32.xlu0 %v5491, 79
  %v5576 = vpop.permute.xlu0 %5575
  %5577 = vrot.lane.b32.xlu0 %v5492, 79
  %v5578 = vpop.permute.xlu0 %5577
  %5579 = vrot.lane.b32.xlu0 %v5493, 79
  %v5580 = vpop.permute.xlu0 %5579
  %5581 = vrot.lane.b32.xlu0 %v5494, 79
  %v5582 = vpop.permute.xlu0 %5581
  %5583 = vrot.lane.b32.xlu0 %v5495, 79
  %v5584 = vpop.permute.xlu0 %5583
  %5585 = vrot.lane.b32.xlu0 %v5496, 79
  %v5586 = vpop.permute.xlu0 %5585
  %5587 = vrot.lane.b32.xlu0 %v5497, 79
  %v5588 = vpop.permute.xlu0 %5587
  %5589 = vrot.lane.b32.xlu0 %v5498, 79
  %v5590 = vpop.permute.xlu0 %5589
  %5591 = vrot.lane.b32.xlu0 %v5499, 79
  %v5592 = vpop.permute.xlu0 %5591
  %5593 = vrot.lane.b32.xlu0 %v5500, 79
  %v5594 = vpop.permute.xlu0 %5593
  %5595 = vrot.lane.b32.xlu0 %v5501, 79
  %v5596 = vpop.permute.xlu0 %5595
  %5597 = vrot.lane.b32.xlu0 %v5502, 79
  %v5598 = vpop.permute.xlu0 %5597
  %5599 = vrot.lane.b32.xlu0 %v5503, 79
  %v5600 = vpop.permute.xlu0 %5599
  %5601 = vrot.lane.b32.xlu0 %v5504, 79
  %v5602 = vpop.permute.xlu0 %5601
  %5603 = vrot.lane.b32.xlu0 %v5505, 79
  %v5604 = vpop.permute.xlu0 %5603
  %5605 = vrot.lane.b32.xlu0 %v5506, 79
  %v5606 = vpop.permute.xlu0 %5605
  %5607 = vrot.lane.b32.xlu0 %v5507, 79
  %v5608 = vpop.permute.xlu0 %5607
  %5609 = vrot.lane.b32.xlu0 %v5508, 79
  %v5610 = vpop.permute.xlu0 %5609
  %5611 = vrot.lane.b32.xlu0 %v5509, 79
  %v5612 = vpop.permute.xlu0 %5611
  %5613 = vrot.lane.b32.xlu0 %v5510, 79
  %v5614 = vpop.permute.xlu0 %5613
  %5615 = vrot.lane.b32.xlu0 %v5511, 79
  %v5616 = vpop.permute.xlu0 %5615
  %5617 = vrot.lane.b32.xlu0 %v5512, 79
  %v5618 = vpop.permute.xlu0 %5617
  %5619 = vrot.lane.b32.xlu0 %v5513, 79
  %v5620 = vpop.permute.xlu0 %5619
  %5621 = vrot.lane.b32.xlu0 %v5514, 79
  %v5622 = vpop.permute.xlu0 %5621
  %5623 = vrot.lane.b32.xlu0 %v5471, 79
  %v5624 = vpop.permute.xlu0 %5623
  %5625 = vrot.lane.b32.xlu0 %v5472, 79
  %v5626 = vpop.permute.xlu0 %5625
  %5627 = vrot.lane.b32.xlu0 %v5473, 79
  %v5628 = vpop.permute.xlu0 %5627
  %5629 = vrot.lane.b32.xlu0 %v5474, 79
  %v5630 = vpop.permute.xlu0 %5629
  %5631 = vrot.lane.b32.xlu0 %v5475, 79
  %v5632 = vpop.permute.xlu0 %5631
  %5633 = vrot.lane.b32.xlu0 %v5476, 79
  %v5634 = vpop.permute.xlu0 %5633
  %5635 = vrot.lane.b32.xlu0 %v5477, 79
  %v5636 = vpop.permute.xlu0 %5635
  %5637 = vrot.lane.b32.xlu0 %v5478, 79
  %v5638 = vpop.permute.xlu0 %5637
  %5639 = vrot.lane.b32.xlu0 %v5470, 79
  %v5640 = vpop.permute.xlu0 %5639
  %v5641 = vsel %vm3793, %v5552, %v5554
  %v5642 = vsel %vm3793, %v5554, %v5556
  %v5643 = vsel %vm3793, %v5556, %v5558
  %v5644 = vsel %vm3793, %v5558, %v5560
  %v5645 = vsel %vm3793, %v5560, %v5562
  %v5646 = vsel %vm3793, %v5562, %v5564
  %v5647 = vsel %vm3793, %v5564, %v5566
  %v5648 = vsel %vm3793, %v5566, %v5568
  %v5649 = vsel %vm3793, %v5570, %v5572
  %v5650 = vsel %vm3793, %v5572, %v5574
  %v5651 = vsel %vm3793, %v5574, %v5576
  %v5652 = vsel %vm3793, %v5576, %v5578
  %v5653 = vsel %vm3793, %v5578, %v5580
  %v5654 = vsel %vm3793, %v5580, %v5582
  %v5655 = vsel %vm3793, %v5582, %v5584
  %v5656 = vsel %vm3793, %v5584, %v5586
  %v5657 = vsel %vm3793, %v5588, %v5590
  %v5658 = vsel %vm3793, %v5590, %v5592
  %v5659 = vsel %vm3793, %v5592, %v5594
  %v5660 = vsel %vm3793, %v5594, %v5596
  %v5661 = vsel %vm3793, %v5596, %v5598
  %v5662 = vsel %vm3793, %v5598, %v5600
  %v5663 = vsel %vm3793, %v5600, %v5602
  %v5664 = vsel %vm3793, %v5602, %v5604
  %v5665 = vsel %vm3793, %v5606, %v5608
  %v5666 = vsel %vm3793, %v5608, %v5610
  %v5667 = vsel %vm3793, %v5610, %v5612
  %v5668 = vsel %vm3793, %v5612, %v5614
  %v5669 = vsel %vm3793, %v5614, %v5616
  %v5670 = vsel %vm3793, %v5616, %v5618
  %v5671 = vsel %vm3793, %v5618, %v5620
  %v5672 = vsel %vm3793, %v5620, %v5622
  %v5673 = vsel %vm3793, %v5624, %v5626
  %v5674 = vsel %vm3793, %v5626, %v5628
  %v5675 = vsel %vm3793, %v5628, %v5630
  %v5676 = vsel %vm3793, %v5630, %v5632
  %v5677 = vsel %vm3793, %v5632, %v5634
  %v5678 = vsel %vm3793, %v5634, %v5636
  %v5679 = vsel %vm3793, %v5636, %v5638
  %v5680 = vsel %vm3793, %v5638, %v5640
  %v5713 = vld [vmem:[%s6] sm:$0xf]
  %v5714 = vld [vmem:[%s7] sm:$0xf]
  %5716 = vset.pattern.permute.xlu0 0
  %5717 = vperm.xlu0 %5716, %v5714
  %v5718 = vpop.permute.xlu0 %5717
  %v5721 = vsel %vm3873, %v5713, 0
  %v5723 = vsel %vm1033, %v5673, 0
  %v5725 = vsel %vm1033, %v5674, 0
  %v5727 = vsel %vm1033, %v5675, 0
  %v5729 = vsel %vm1033, %v5676, 0
  %v5731 = vsel %vm1033, %v5677, 0
  %v5733 = vsel %vm1033, %v5678, 0
  %v5735 = vsel %vm1033, %v5679, 0
  %v5737 = vsel %vm1033, %v5680, 0
  %5739 = vmatpush.msra.mxu0 0.0
  %5740 = vmatpush.msra.mxu0 0.0
  %5741 = vmatpush.msra.mxu0 0.0
  %5742 = vmatpush.msra.mxu0 %v5723
  %5743 = vmatpush.msra.mxu0 %v5665
  %5744 = vmatpush.msra.mxu0 %v5657
  %5745 = vmatpush.msra.mxu0 %v5649
  %5746 = vmatpush.msra.mxu0 %v5641
  %5747 = vmatpush.msra.mxu0 %v5092
  %5748 = vmatpush.msra.mxu0 %v5084
  %5749 = vmatpush.msra.mxu0 %v5076
  %5750 = vmatpush.msra.mxu0 %v5068
  %5751 = vmatpush.msra.mxu0 %v5060
  %5752 = vmatpush.msra.mxu0 %v5052
  %5753 = vmatpush.msra.mxu0 %v5044
  %5754 = vmatpush.msra.mxu0 %v5036
  %5755 = vmatmul.f32.gmra.mxu0 %v5721
  %v5756 = vpop.f32.mrf.mxu0
  %v5757 = vadd.f32 %v5718, %v5756
  %5758 = vdwg.mxu0
  %5759 = vmatpush.msra.mxu0 0.0
  %5760 = vmatpush.msra.mxu0 0.0
  %5761 = vmatpush.msra.mxu0 0.0
  %5762 = vmatpush.msra.mxu0 %v5725
  %5763 = vmatpush.msra.mxu0 %v5666
  %5764 = vmatpush.msra.mxu0 %v5658
  %5765 = vmatpush.msra.mxu0 %v5650
  %5766 = vmatpush.msra.mxu0 %v5642
  %5767 = vmatpush.msra.mxu0 %v5093
  %5768 = vmatpush.msra.mxu0 %v5085
  %5769 = vmatpush.msra.mxu0 %v5077
  %5770 = vmatpush.msra.mxu0 %v5069
  %5771 = vmatpush.msra.mxu0 %v5061
  %5772 = vmatpush.msra.mxu0 %v5053
  %5773 = vmatpush.msra.mxu0 %v5045
  %5774 = vmatpush.msra.mxu0 %v5037
  %5775 = vmatmul.f32.gmra.mxu0 %v5721
  %v5776 = vpop.f32.mrf.mxu0
  %v5777 = vadd.f32 %v5718, %v5776
  %5778 = vdwg.mxu0
  %5779 = vmatpush.msra.mxu0 0.0
  %5780 = vmatpush.msra.mxu0 0.0
  %5781 = vmatpush.msra.mxu0 0.0
  %5782 = vmatpush.msra.mxu0 %v5727
  %5783 = vmatpush.msra.mxu0 %v5667
  %5784 = vmatpush.msra.mxu0 %v5659
  %5785 = vmatpush.msra.mxu0 %v5651
  %5786 = vmatpush.msra.mxu0 %v5643
  %5787 = vmatpush.msra.mxu0 %v5094
  %5788 = vmatpush.msra.mxu0 %v5086
  %5789 = vmatpush.msra.mxu0 %v5078
  %5790 = vmatpush.msra.mxu0 %v5070
  %5791 = vmatpush.msra.mxu0 %v5062
  %5792 = vmatpush.msra.mxu0 %v5054
  %5793 = vmatpush.msra.mxu0 %v5046
  %5794 = vmatpush.msra.mxu0 %v5038
  %5795 = vmatmul.f32.gmra.mxu0 %v5721
  %v5796 = vpop.f32.mrf.mxu0
  %v5797 = vadd.f32 %v5718, %v5796
  %5798 = vdwg.mxu0
  %5799 = vmatpush.msra.mxu0 0.0
  %5800 = vmatpush.msra.mxu0 0.0
  %5801 = vmatpush.msra.mxu0 0.0
  %5802 = vmatpush.msra.mxu0 %v5729
  %5803 = vmatpush.msra.mxu0 %v5668
  %5804 = vmatpush.msra.mxu0 %v5660
  %5805 = vmatpush.msra.mxu0 %v5652
  %5806 = vmatpush.msra.mxu0 %v5644
  %5807 = vmatpush.msra.mxu0 %v5095
  %5808 = vmatpush.msra.mxu0 %v5087
  %5809 = vmatpush.msra.mxu0 %v5079
  %5810 = vmatpush.msra.mxu0 %v5071
  %5811 = vmatpush.msra.mxu0 %v5063
  %5812 = vmatpush.msra.mxu0 %v5055
  %5813 = vmatpush.msra.mxu0 %v5047
  %5814 = vmatpush.msra.mxu0 %v5039
  %5815 = vmatmul.f32.gmra.mxu0 %v5721
  %v5816 = vpop.f32.mrf.mxu0
  %v5817 = vadd.f32 %v5718, %v5816
  %5818 = vdwg.mxu0
  %5819 = vmatpush.msra.mxu0 0.0
  %5820 = vmatpush.msra.mxu0 0.0
  %5821 = vmatpush.msra.mxu0 0.0
  %5822 = vmatpush.msra.mxu0 %v5731
  %5823 = vmatpush.msra.mxu0 %v5669
  %5824 = vmatpush.msra.mxu0 %v5661
  %5825 = vmatpush.msra.mxu0 %v5653
  %5826 = vmatpush.msra.mxu0 %v5645
  %5827 = vmatpush.msra.mxu0 %v5096
  %5828 = vmatpush.msra.mxu0 %v5088
  %5829 = vmatpush.msra.mxu0 %v5080
  %5830 = vmatpush.msra.mxu0 %v5072
  %5831 = vmatpush.msra.mxu0 %v5064
  %5832 = vmatpush.msra.mxu0 %v5056
  %5833 = vmatpush.msra.mxu0 %v5048
  %5834 = vmatpush.msra.mxu0 %v5040
  %5835 = vmatmul.f32.gmra.mxu0 %v5721
  %v5836 = vpop.f32.mrf.mxu0
  %v5837 = vadd.f32 %v5718, %v5836
  %5838 = vdwg.mxu0
  %5839 = vmatpush.msra.mxu0 0.0
  %5840 = vmatpush.msra.mxu0 0.0
  %5841 = vmatpush.msra.mxu0 0.0
  %5842 = vmatpush.msra.mxu0 %v5733
  %5843 = vmatpush.msra.mxu0 %v5670
  %5844 = vmatpush.msra.mxu0 %v5662
  %5845 = vmatpush.msra.mxu0 %v5654
  %5846 = vmatpush.msra.mxu0 %v5646
  %5847 = vmatpush.msra.mxu0 %v5097
  %5848 = vmatpush.msra.mxu0 %v5089
  %5849 = vmatpush.msra.mxu0 %v5081
  %5850 = vmatpush.msra.mxu0 %v5073
  %5851 = vmatpush.msra.mxu0 %v5065
  %5852 = vmatpush.msra.mxu0 %v5057
  %5853 = vmatpush.msra.mxu0 %v5049
  %5854 = vmatpush.msra.mxu0 %v5041
  %5855 = vmatmul.f32.gmra.mxu0 %v5721
  %v5856 = vpop.f32.mrf.mxu0
  %v5857 = vadd.f32 %v5718, %v5856
  %5858 = vdwg.mxu0
  %5859 = vmatpush.msra.mxu0 0.0
  %5860 = vmatpush.msra.mxu0 0.0
  %5861 = vmatpush.msra.mxu0 0.0
  %5862 = vmatpush.msra.mxu0 %v5735
  %5863 = vmatpush.msra.mxu0 %v5671
  %5864 = vmatpush.msra.mxu0 %v5663
  %5865 = vmatpush.msra.mxu0 %v5655
  %5866 = vmatpush.msra.mxu0 %v5647
  %5867 = vmatpush.msra.mxu0 %v5098
  %5868 = vmatpush.msra.mxu0 %v5090
  %5869 = vmatpush.msra.mxu0 %v5082
  %5870 = vmatpush.msra.mxu0 %v5074
  %5871 = vmatpush.msra.mxu0 %v5066
  %5872 = vmatpush.msra.mxu0 %v5058
  %5873 = vmatpush.msra.mxu0 %v5050
  %5874 = vmatpush.msra.mxu0 %v5042
  %5875 = vmatmul.f32.gmra.mxu0 %v5721
  %v5876 = vpop.f32.mrf.mxu0
  %v5877 = vadd.f32 %v5718, %v5876
  %5878 = vdwg.mxu0
  %5879 = vmatpush.msra.mxu0 0.0
  %5880 = vmatpush.msra.mxu0 0.0
  %5881 = vmatpush.msra.mxu0 0.0
  %5882 = vmatpush.msra.mxu0 %v5737
  %5883 = vmatpush.msra.mxu0 %v5672
  %5884 = vmatpush.msra.mxu0 %v5664
  %5885 = vmatpush.msra.mxu0 %v5656
  %5886 = vmatpush.msra.mxu0 %v5648
  %5887 = vmatpush.msra.mxu0 %v5099
  %5888 = vmatpush.msra.mxu0 %v5091
  %5889 = vmatpush.msra.mxu0 %v5083
  %5890 = vmatpush.msra.mxu0 %v5075
  %5891 = vmatpush.msra.mxu0 %v5067
  %5892 = vmatpush.msra.mxu0 %v5059
  %5893 = vmatpush.msra.mxu0 %v5051
  %5894 = vmatpush.msra.mxu0 %v5043
  %5895 = vmatmul.f32.gmra.mxu0 %v5721
  %v5896 = vpop.f32.mrf.mxu0
  %v5897 = vadd.f32 %v5718, %v5896
  %5898 = vdwg.mxu0
  %5907 = vrot.lane.b32.xlu0 %v5757, 34
  %v5908 = vpop.permute.xlu0 %5907
  %5909 = vrot.lane.b32.xlu0 %v5777, 34
  %v5910 = vpop.permute.xlu0 %5909
  %5911 = vrot.lane.b32.xlu0 %v5797, 34
  %v5912 = vpop.permute.xlu0 %5911
  %5913 = vrot.lane.b32.xlu0 %v5817, 34
  %v5914 = vpop.permute.xlu0 %5913
  %5915 = vrot.lane.b32.xlu0 %v5837, 34
  %v5916 = vpop.permute.xlu0 %5915
  %5917 = vrot.lane.b32.xlu0 %v5857, 34
  %v5918 = vpop.permute.xlu0 %5917
  %5919 = vrot.lane.b32.xlu0 %v5877, 34
  %v5920 = vpop.permute.xlu0 %5919
  %5921 = vrot.lane.b32.xlu0 %v5897, 34
  %v5922 = vpop.permute.xlu0 %5921
  %v5923 = vsel %vm106, %v5908, %v5910
  %v5924 = vsel %vm106, %v5910, %v5912
  %v5925 = vsel %vm106, %v5912, %v5914
  %v5926 = vsel %vm106, %v5914, %v5916
  %v5927 = vsel %vm106, %v5916, %v5918
  %v5928 = vsel %vm106, %v5918, %v5920
  %v5929 = vsel %vm106, %v5920, %v5922
  %v5939 = vsel %vm106, 0.0, %v5908
  %v5940 = vsel %vm106, %v5922, 0.0
  %v5941 = vmul.f32 %v5939, %v142
  %v5942 = vmul.f32 %v5923, %v158
  %v5943 = vmul.f32 %v5924, %v159
  %v5944 = vmul.f32 %v5925, %v160
  %v5945 = vmul.f32 %v5926, %v161
  %v5946 = vmul.f32 %v5927, %v162
  %v5947 = vmul.f32 %v5928, %v163
  %v5948 = vmul.f32 %v5929, %v164
  %v5949 = vmul.f32 %v5940, %v156
  %v5950 = vmul.f32 %v5939, %v200
  %v5951 = vmul.f32 %v5923, %v216
  %v5952 = vmul.f32 %v5924, %v217
  %v5953 = vmul.f32 %v5925, %v218
  %v5954 = vmul.f32 %v5926, %v219
  %v5955 = vmul.f32 %v5927, %v220
  %v5956 = vmul.f32 %v5928, %v221
  %v5957 = vmul.f32 %v5929, %v222
  %v5958 = vmul.f32 %v5940, %v214
  %v5959 = vmul.f32 %v5939, %v258
  %v5960 = vmul.f32 %v5923, %v274
  %v5961 = vmul.f32 %v5924, %v275
  %v5962 = vmul.f32 %v5925, %v276
  %v5963 = vmul.f32 %v5926, %v277
  %v5964 = vmul.f32 %v5927, %v278
  %v5965 = vmul.f32 %v5928, %v279
  %v5966 = vmul.f32 %v5929, %v280
  %v5967 = vmul.f32 %v5940, %v272
  %v5968 = vmul.f32 %v5939, %v316
  %v5969 = vmul.f32 %v5923, %v332
  %v5970 = vmul.f32 %v5924, %v333
  %v5971 = vmul.f32 %v5925, %v334
  %v5972 = vmul.f32 %v5926, %v335
  %v5973 = vmul.f32 %v5927, %v336
  %v5974 = vmul.f32 %v5928, %v337
  %v5975 = vmul.f32 %v5929, %v338
  %v5976 = vmul.f32 %v5940, %v330
  %v5977 = vmul.f32 %v5939, %v374
  %v5978 = vmul.f32 %v5923, %v389
  %v5979 = vmul.f32 %v5924, %v390
  %v5980 = vmul.f32 %v5925, %v391
  %v5981 = vmul.f32 %v5926, %v392
  %v5982 = vmul.f32 %v5927, %v393
  %v5983 = vmul.f32 %v5928, %v394
  %v5984 = vmul.f32 %v5929, %v395
  %v5985 = vmul.f32 %v5940, %v388
  %v5986 = vmul.f32 %v5939, %v431
  %v5987 = vmul.f32 %v5923, %v447
  %v5988 = vmul.f32 %v5924, %v448
  %v5989 = vmul.f32 %v5925, %v449
  %v5990 = vmul.f32 %v5926, %v450
  %v5991 = vmul.f32 %v5927, %v451
  %v5992 = vmul.f32 %v5928, %v452
  %v5993 = vmul.f32 %v5929, %v453
  %v5994 = vmul.f32 %v5940, %v445
  %v5995 = vmul.f32 %v5939, %v489
  %v5996 = vmul.f32 %v5923, %v505
  %v5997 = vmul.f32 %v5924, %v506
  %v5998 = vmul.f32 %v5925, %v507
  %v5999 = vmul.f32 %v5926, %v508
  %v6000 = vmul.f32 %v5927, %v509
  %v6001 = vmul.f32 %v5928, %v510
  %v6002 = vmul.f32 %v5929, %v511
  %v6003 = vmul.f32 %v5940, %v503
  %v6004 = vmul.f32 %v5939, %v547
  %v6005 = vmul.f32 %v5923, %v563
  %v6006 = vmul.f32 %v5924, %v564
  %v6007 = vmul.f32 %v5925, %v565
  %v6008 = vmul.f32 %v5926, %v566
  %v6009 = vmul.f32 %v5927, %v567
  %v6010 = vmul.f32 %v5928, %v568
  %v6011 = vmul.f32 %v5929, %v569
  %v6012 = vmul.f32 %v5940, %v561
  %v6013 = vmul.f32 %v5939, %v605
  %v6014 = vmul.f32 %v5923, %v621
  %v6015 = vmul.f32 %v5924, %v622
  %v6016 = vmul.f32 %v5925, %v623
  %v6017 = vmul.f32 %v5926, %v624
  %v6018 = vmul.f32 %v5927, %v625
  %v6019 = vmul.f32 %v5928, %v626
  %v6020 = vmul.f32 %v5929, %v627
  %v6021 = vmul.f32 %v5940, %v619
  %v6031 = vrot.slane %v5950, 4
  %v6032 = vrot.slane %v5951, 4
  %v6033 = vrot.slane %v5952, 4
  %v6034 = vrot.slane %v5953, 4
  %v6035 = vrot.slane %v5954, 4
  %v6036 = vrot.slane %v5955, 4
  %v6037 = vrot.slane %v5956, 4
  %v6038 = vrot.slane %v5957, 4
  %v6039 = vrot.slane %v5958, 4
  %6040 = vrot.lane.b32.xlu0 %v6031, 127
  %v6041 = vpop.permute.xlu0 %6040
  %6042 = vrot.lane.b32.xlu0 %v6032, 127
  %v6043 = vpop.permute.xlu0 %6042
  %6044 = vrot.lane.b32.xlu0 %v6033, 127
  %v6045 = vpop.permute.xlu0 %6044
  %6046 = vrot.lane.b32.xlu0 %v6034, 127
  %v6047 = vpop.permute.xlu0 %6046
  %6048 = vrot.lane.b32.xlu0 %v6035, 127
  %v6049 = vpop.permute.xlu0 %6048
  %6050 = vrot.lane.b32.xlu0 %v6036, 127
  %v6051 = vpop.permute.xlu0 %6050
  %6052 = vrot.lane.b32.xlu0 %v6037, 127
  %v6053 = vpop.permute.xlu0 %6052
  %6054 = vrot.lane.b32.xlu0 %v6038, 127
  %v6055 = vpop.permute.xlu0 %6054
  %6056 = vrot.lane.b32.xlu0 %v6039, 127
  %v6057 = vpop.permute.xlu0 %6056
  %v6058 = vsel %vm682, %v6041, %v6043
  %v6059 = vsel %vm682, %v6043, %v6045
  %v6060 = vsel %vm682, %v6045, %v6047
  %v6061 = vsel %vm682, %v6047, %v6049
  %v6062 = vsel %vm682, %v6049, %v6051
  %v6063 = vsel %vm682, %v6051, %v6053
  %v6064 = vsel %vm682, %v6053, %v6055
  %v6065 = vsel %vm682, %v6055, %v6057
  %6084 = vrot.lane.b32.xlu0 %v5959, 126
  %v6085 = vpop.permute.xlu0 %6084
  %6086 = vrot.lane.b32.xlu0 %v5960, 126
  %v6087 = vpop.permute.xlu0 %6086
  %6088 = vrot.lane.b32.xlu0 %v5961, 126
  %v6089 = vpop.permute.xlu0 %6088
  %6090 = vrot.lane.b32.xlu0 %v5962, 126
  %v6091 = vpop.permute.xlu0 %6090
  %6092 = vrot.lane.b32.xlu0 %v5963, 126
  %v6093 = vpop.permute.xlu0 %6092
  %6094 = vrot.lane.b32.xlu0 %v5964, 126
  %v6095 = vpop.permute.xlu0 %6094
  %6096 = vrot.lane.b32.xlu0 %v5965, 126
  %v6097 = vpop.permute.xlu0 %6096
  %6098 = vrot.lane.b32.xlu0 %v5966, 126
  %v6099 = vpop.permute.xlu0 %6098
  %6100 = vrot.lane.b32.xlu0 %v5967, 126
  %v6101 = vpop.permute.xlu0 %6100
  %v6102 = vsel %vm727, %v6085, %v6087
  %v6103 = vsel %vm727, %v6087, %v6089
  %v6104 = vsel %vm727, %v6089, %v6091
  %v6105 = vsel %vm727, %v6091, %v6093
  %v6106 = vsel %vm727, %v6093, %v6095
  %v6107 = vsel %vm727, %v6095, %v6097
  %v6108 = vsel %vm727, %v6097, %v6099
  %v6109 = vsel %vm727, %v6099, %v6101
  %v6128 = vrot.slane %v5968, 4
  %v6129 = vrot.slane %v5969, 4
  %v6130 = vrot.slane %v5970, 4
  %v6131 = vrot.slane %v5971, 4
  %v6132 = vrot.slane %v5972, 4
  %v6133 = vrot.slane %v5973, 4
  %v6134 = vrot.slane %v5974, 4
  %v6135 = vrot.slane %v5975, 4
  %v6136 = vrot.slane %v5976, 4
  %6137 = vrot.lane.b32.xlu0 %v6128, 112
  %v6138 = vpop.permute.xlu0 %6137
  %6139 = vrot.lane.b32.xlu0 %v6129, 112
  %v6140 = vpop.permute.xlu0 %6139
  %6141 = vrot.lane.b32.xlu0 %v6130, 112
  %v6142 = vpop.permute.xlu0 %6141
  %6143 = vrot.lane.b32.xlu0 %v6131, 112
  %v6144 = vpop.permute.xlu0 %6143
  %6145 = vrot.lane.b32.xlu0 %v6132, 112
  %v6146 = vpop.permute.xlu0 %6145
  %6147 = vrot.lane.b32.xlu0 %v6133, 112
  %v6148 = vpop.permute.xlu0 %6147
  %6149 = vrot.lane.b32.xlu0 %v6134, 112
  %v6150 = vpop.permute.xlu0 %6149
  %6151 = vrot.lane.b32.xlu0 %v6135, 112
  %v6152 = vpop.permute.xlu0 %6151
  %6153 = vrot.lane.b32.xlu0 %v6136, 112
  %v6154 = vpop.permute.xlu0 %6153
  %v6155 = vsel %vm781, %v6138, %v6140
  %v6156 = vsel %vm781, %v6140, %v6142
  %v6157 = vsel %vm781, %v6142, %v6144
  %v6158 = vsel %vm781, %v6144, %v6146
  %v6159 = vsel %vm781, %v6146, %v6148
  %v6160 = vsel %vm781, %v6148, %v6150
  %v6161 = vsel %vm781, %v6150, %v6152
  %v6162 = vsel %vm781, %v6152, %v6154
  %6181 = vrot.lane.b32.xlu0 %v5977, 111
  %v6182 = vpop.permute.xlu0 %6181
  %6183 = vrot.lane.b32.xlu0 %v5978, 111
  %v6184 = vpop.permute.xlu0 %6183
  %6185 = vrot.lane.b32.xlu0 %v5979, 111
  %v6186 = vpop.permute.xlu0 %6185
  %6187 = vrot.lane.b32.xlu0 %v5980, 111
  %v6188 = vpop.permute.xlu0 %6187
  %6189 = vrot.lane.b32.xlu0 %v5981, 111
  %v6190 = vpop.permute.xlu0 %6189
  %6191 = vrot.lane.b32.xlu0 %v5982, 111
  %v6192 = vpop.permute.xlu0 %6191
  %6193 = vrot.lane.b32.xlu0 %v5983, 111
  %v6194 = vpop.permute.xlu0 %6193
  %6195 = vrot.lane.b32.xlu0 %v5984, 111
  %v6196 = vpop.permute.xlu0 %6195
  %6197 = vrot.lane.b32.xlu0 %v5985, 111
  %v6198 = vpop.permute.xlu0 %6197
  %v6199 = vsel %vm826, %v6182, %v6184
  %v6200 = vsel %vm826, %v6184, %v6186
  %v6201 = vsel %vm826, %v6186, %v6188
  %v6202 = vsel %vm826, %v6188, %v6190
  %v6203 = vsel %vm826, %v6190, %v6192
  %v6204 = vsel %vm826, %v6192, %v6194
  %v6205 = vsel %vm826, %v6194, %v6196
  %v6206 = vsel %vm826, %v6196, %v6198
  %v6225 = vrot.slane %v5986, 4
  %v6226 = vrot.slane %v5987, 4
  %v6227 = vrot.slane %v5988, 4
  %v6228 = vrot.slane %v5989, 4
  %v6229 = vrot.slane %v5990, 4
  %v6230 = vrot.slane %v5991, 4
  %v6231 = vrot.slane %v5992, 4
  %v6232 = vrot.slane %v5993, 4
  %v6233 = vrot.slane %v5994, 4
  %6234 = vrot.lane.b32.xlu0 %v6225, 110
  %v6235 = vpop.permute.xlu0 %6234
  %6236 = vrot.lane.b32.xlu0 %v6226, 110
  %v6237 = vpop.permute.xlu0 %6236
  %6238 = vrot.lane.b32.xlu0 %v6227, 110
  %v6239 = vpop.permute.xlu0 %6238
  %6240 = vrot.lane.b32.xlu0 %v6228, 110
  %v6241 = vpop.permute.xlu0 %6240
  %6242 = vrot.lane.b32.xlu0 %v6229, 110
  %v6243 = vpop.permute.xlu0 %6242
  %6244 = vrot.lane.b32.xlu0 %v6230, 110
  %v6245 = vpop.permute.xlu0 %6244
  %6246 = vrot.lane.b32.xlu0 %v6231, 110
  %v6247 = vpop.permute.xlu0 %6246
  %6248 = vrot.lane.b32.xlu0 %v6232, 110
  %v6249 = vpop.permute.xlu0 %6248
  %6250 = vrot.lane.b32.xlu0 %v6233, 110
  %v6251 = vpop.permute.xlu0 %6250
  %v6252 = vsel %vm880, %v6235, %v6237
  %v6253 = vsel %vm880, %v6237, %v6239
  %v6254 = vsel %vm880, %v6239, %v6241
  %v6255 = vsel %vm880, %v6241, %v6243
  %v6256 = vsel %vm880, %v6243, %v6245
  %v6257 = vsel %vm880, %v6245, %v6247
  %v6258 = vsel %vm880, %v6247, %v6249
  %v6259 = vsel %vm880, %v6249, %v6251
  %6278 = vrot.lane.b32.xlu0 %v5995, 96
  %v6279 = vpop.permute.xlu0 %6278
  %6280 = vrot.lane.b32.xlu0 %v5996, 96
  %v6281 = vpop.permute.xlu0 %6280
  %6282 = vrot.lane.b32.xlu0 %v5997, 96
  %v6283 = vpop.permute.xlu0 %6282
  %6284 = vrot.lane.b32.xlu0 %v5998, 96
  %v6285 = vpop.permute.xlu0 %6284
  %6286 = vrot.lane.b32.xlu0 %v5999, 96
  %v6287 = vpop.permute.xlu0 %6286
  %6288 = vrot.lane.b32.xlu0 %v6000, 96
  %v6289 = vpop.permute.xlu0 %6288
  %6290 = vrot.lane.b32.xlu0 %v6001, 96
  %v6291 = vpop.permute.xlu0 %6290
  %6292 = vrot.lane.b32.xlu0 %v6002, 96
  %v6293 = vpop.permute.xlu0 %6292
  %6294 = vrot.lane.b32.xlu0 %v6003, 96
  %v6295 = vpop.permute.xlu0 %6294
  %v6296 = vsel %vm925, %v6279, %v6281
  %v6297 = vsel %vm925, %v6281, %v6283
  %v6298 = vsel %vm925, %v6283, %v6285
  %v6299 = vsel %vm925, %v6285, %v6287
  %v6300 = vsel %vm925, %v6287, %v6289
  %v6301 = vsel %vm925, %v6289, %v6291
  %v6302 = vsel %vm925, %v6291, %v6293
  %v6303 = vsel %vm925, %v6293, %v6295
  %v6322 = vrot.slane %v6004, 4
  %v6323 = vrot.slane %v6005, 4
  %v6324 = vrot.slane %v6006, 4
  %v6325 = vrot.slane %v6007, 4
  %v6326 = vrot.slane %v6008, 4
  %v6327 = vrot.slane %v6009, 4
  %v6328 = vrot.slane %v6010, 4
  %v6329 = vrot.slane %v6011, 4
  %v6330 = vrot.slane %v6012, 4
  %6331 = vrot.lane.b32.xlu0 %v6322, 95
  %v6332 = vpop.permute.xlu0 %6331
  %6333 = vrot.lane.b32.xlu0 %v6323, 95
  %v6334 = vpop.permute.xlu0 %6333
  %6335 = vrot.lane.b32.xlu0 %v6324, 95
  %v6336 = vpop.permute.xlu0 %6335
  %6337 = vrot.lane.b32.xlu0 %v6325, 95
  %v6338 = vpop.permute.xlu0 %6337
  %6339 = vrot.lane.b32.xlu0 %v6326, 95
  %v6340 = vpop.permute.xlu0 %6339
  %6341 = vrot.lane.b32.xlu0 %v6327, 95
  %v6342 = vpop.permute.xlu0 %6341
  %6343 = vrot.lane.b32.xlu0 %v6328, 95
  %v6344 = vpop.permute.xlu0 %6343
  %6345 = vrot.lane.b32.xlu0 %v6329, 95
  %v6346 = vpop.permute.xlu0 %6345
  %6347 = vrot.lane.b32.xlu0 %v6330, 95
  %v6348 = vpop.permute.xlu0 %6347
  %v6349 = vsel %vm979, %v6332, %v6334
  %v6350 = vsel %vm979, %v6334, %v6336
  %v6351 = vsel %vm979, %v6336, %v6338
  %v6352 = vsel %vm979, %v6338, %v6340
  %v6353 = vsel %vm979, %v6340, %v6342
  %v6354 = vsel %vm979, %v6342, %v6344
  %v6355 = vsel %vm979, %v6344, %v6346
  %v6356 = vsel %vm979, %v6346, %v6348
  %6375 = vrot.lane.b32.xlu0 %v6013, 94
  %v6376 = vpop.permute.xlu0 %6375
  %6377 = vrot.lane.b32.xlu0 %v6014, 94
  %v6378 = vpop.permute.xlu0 %6377
  %6379 = vrot.lane.b32.xlu0 %v6015, 94
  %v6380 = vpop.permute.xlu0 %6379
  %6381 = vrot.lane.b32.xlu0 %v6016, 94
  %v6382 = vpop.permute.xlu0 %6381
  %6383 = vrot.lane.b32.xlu0 %v6017, 94
  %v6384 = vpop.permute.xlu0 %6383
  %6385 = vrot.lane.b32.xlu0 %v6018, 94
  %v6386 = vpop.permute.xlu0 %6385
  %6387 = vrot.lane.b32.xlu0 %v6019, 94
  %v6388 = vpop.permute.xlu0 %6387
  %6389 = vrot.lane.b32.xlu0 %v6020, 94
  %v6390 = vpop.permute.xlu0 %6389
  %6391 = vrot.lane.b32.xlu0 %v6021, 94
  %v6392 = vpop.permute.xlu0 %6391
  %v6393 = vsel %vm1024, %v6376, %v6378
  %v6394 = vsel %vm1024, %v6378, %v6380
  %v6395 = vsel %vm1024, %v6380, %v6382
  %v6396 = vsel %vm1024, %v6382, %v6384
  %v6397 = vsel %vm1024, %v6384, %v6386
  %v6398 = vsel %vm1024, %v6386, %v6388
  %v6399 = vsel %vm1024, %v6388, %v6390
  %v6400 = vsel %vm1024, %v6390, %v6392
  %v6401 = vsel %vm1033, %v5941, %v6058
  %v6402 = vsel %vm1033, %v5942, %v6059
  %v6403 = vsel %vm1033, %v5943, %v6060
  %v6404 = vsel %vm1033, %v5944, %v6061
  %v6405 = vsel %vm1033, %v5945, %v6062
  %v6406 = vsel %vm1033, %v5946, %v6063
  %v6407 = vsel %vm1033, %v5947, %v6064
  %v6408 = vsel %vm1033, %v5948, %v6065
  %v6409 = vsel %vm1033, %v5949, %v6057
  %v6410 = vsel %vm1033, %v6102, %v6155
  %v6411 = vsel %vm1033, %v6103, %v6156
  %v6412 = vsel %vm1033, %v6104, %v6157
  %v6413 = vsel %vm1033, %v6105, %v6158
  %v6414 = vsel %vm1033, %v6106, %v6159
  %v6415 = vsel %vm1033, %v6107, %v6160
  %v6416 = vsel %vm1033, %v6108, %v6161
  %v6417 = vsel %vm1033, %v6109, %v6162
  %v6418 = vsel %vm1033, %v6101, %v6154
  %v6419 = vsel %vm1033, %v6199, %v6252
  %v6420 = vsel %vm1033, %v6200, %v6253
  %v6421 = vsel %vm1033, %v6201, %v6254
  %v6422 = vsel %vm1033, %v6202, %v6255
  %v6423 = vsel %vm1033, %v6203, %v6256
  %v6424 = vsel %vm1033, %v6204, %v6257
  %v6425 = vsel %vm1033, %v6205, %v6258
  %v6426 = vsel %vm1033, %v6206, %v6259
  %v6427 = vsel %vm1033, %v6198, %v6251
  %v6428 = vsel %vm1033, %v6296, %v6349
  %v6429 = vsel %vm1033, %v6297, %v6350
  %v6430 = vsel %vm1033, %v6298, %v6351
  %v6431 = vsel %vm1033, %v6299, %v6352
  %v6432 = vsel %vm1033, %v6300, %v6353
  %v6433 = vsel %vm1033, %v6301, %v6354
  %v6434 = vsel %vm1033, %v6302, %v6355
  %v6435 = vsel %vm1033, %v6303, %v6356
  %v6436 = vsel %vm1033, %v6295, %v6348
  %v6437 = vld [vmem:[%s8] sm:$0xff]
  %v6438 = vld [vmem:[%s9] sm:$0xff]
  %6440 = vset.pattern.permute.xlu0 0
  %6441 = vperm.xlu0 %6440, %v6438
  %v6442 = vpop.permute.xlu0 %6441
  %6480 = vrot.lane.b32.xlu0 %v6401, 111
  %v6481 = vpop.permute.xlu0 %6480
  %6482 = vrot.lane.b32.xlu0 %v6402, 111
  %v6483 = vpop.permute.xlu0 %6482
  %6484 = vrot.lane.b32.xlu0 %v6403, 111
  %v6485 = vpop.permute.xlu0 %6484
  %6486 = vrot.lane.b32.xlu0 %v6404, 111
  %v6487 = vpop.permute.xlu0 %6486
  %6488 = vrot.lane.b32.xlu0 %v6405, 111
  %v6489 = vpop.permute.xlu0 %6488
  %6490 = vrot.lane.b32.xlu0 %v6406, 111
  %v6491 = vpop.permute.xlu0 %6490
  %6492 = vrot.lane.b32.xlu0 %v6407, 111
  %v6493 = vpop.permute.xlu0 %6492
  %6494 = vrot.lane.b32.xlu0 %v6408, 111
  %v6495 = vpop.permute.xlu0 %6494
  %6496 = vrot.lane.b32.xlu0 %v6409, 111
  %v6497 = vpop.permute.xlu0 %6496
  %6498 = vrot.lane.b32.xlu0 %v6410, 111
  %v6499 = vpop.permute.xlu0 %6498
  %6500 = vrot.lane.b32.xlu0 %v6411, 111
  %v6501 = vpop.permute.xlu0 %6500
  %6502 = vrot.lane.b32.xlu0 %v6412, 111
  %v6503 = vpop.permute.xlu0 %6502
  %6504 = vrot.lane.b32.xlu0 %v6413, 111
  %v6505 = vpop.permute.xlu0 %6504
  %6506 = vrot.lane.b32.xlu0 %v6414, 111
  %v6507 = vpop.permute.xlu0 %6506
  %6508 = vrot.lane.b32.xlu0 %v6415, 111
  %v6509 = vpop.permute.xlu0 %6508
  %6510 = vrot.lane.b32.xlu0 %v6416, 111
  %v6511 = vpop.permute.xlu0 %6510
  %6512 = vrot.lane.b32.xlu0 %v6417, 111
  %v6513 = vpop.permute.xlu0 %6512
  %6514 = vrot.lane.b32.xlu0 %v6418, 111
  %v6515 = vpop.permute.xlu0 %6514
  %6516 = vrot.lane.b32.xlu0 %v6419, 111
  %v6517 = vpop.permute.xlu0 %6516
  %6518 = vrot.lane.b32.xlu0 %v6420, 111
  %v6519 = vpop.permute.xlu0 %6518
  %6520 = vrot.lane.b32.xlu0 %v6421, 111
  %v6521 = vpop.permute.xlu0 %6520
  %6522 = vrot.lane.b32.xlu0 %v6422, 111
  %v6523 = vpop.permute.xlu0 %6522
  %6524 = vrot.lane.b32.xlu0 %v6423, 111
  %v6525 = vpop.permute.xlu0 %6524
  %6526 = vrot.lane.b32.xlu0 %v6424, 111
  %v6527 = vpop.permute.xlu0 %6526
  %6528 = vrot.lane.b32.xlu0 %v6425, 111
  %v6529 = vpop.permute.xlu0 %6528
  %6530 = vrot.lane.b32.xlu0 %v6426, 111
  %v6531 = vpop.permute.xlu0 %6530
  %6532 = vrot.lane.b32.xlu0 %v6427, 111
  %v6533 = vpop.permute.xlu0 %6532
  %6534 = vrot.lane.b32.xlu0 %v6428, 111
  %v6535 = vpop.permute.xlu0 %6534
  %6536 = vrot.lane.b32.xlu0 %v6429, 111
  %v6537 = vpop.permute.xlu0 %6536
  %6538 = vrot.lane.b32.xlu0 %v6430, 111
  %v6539 = vpop.permute.xlu0 %6538
  %6540 = vrot.lane.b32.xlu0 %v6431, 111
  %v6541 = vpop.permute.xlu0 %6540
  %6542 = vrot.lane.b32.xlu0 %v6432, 111
  %v6543 = vpop.permute.xlu0 %6542
  %6544 = vrot.lane.b32.xlu0 %v6433, 111
  %v6545 = vpop.permute.xlu0 %6544
  %6546 = vrot.lane.b32.xlu0 %v6434, 111
  %v6547 = vpop.permute.xlu0 %6546
  %6548 = vrot.lane.b32.xlu0 %v6435, 111
  %v6549 = vpop.permute.xlu0 %6548
  %6550 = vrot.lane.b32.xlu0 %v6436, 111
  %v6551 = vpop.permute.xlu0 %6550
  %6552 = vrot.lane.b32.xlu0 %v6393, 111
  %v6553 = vpop.permute.xlu0 %6552
  %6554 = vrot.lane.b32.xlu0 %v6394, 111
  %v6555 = vpop.permute.xlu0 %6554
  %6556 = vrot.lane.b32.xlu0 %v6395, 111
  %v6557 = vpop.permute.xlu0 %6556
  %6558 = vrot.lane.b32.xlu0 %v6396, 111
  %v6559 = vpop.permute.xlu0 %6558
  %6560 = vrot.lane.b32.xlu0 %v6397, 111
  %v6561 = vpop.permute.xlu0 %6560
  %6562 = vrot.lane.b32.xlu0 %v6398, 111
  %v6563 = vpop.permute.xlu0 %6562
  %6564 = vrot.lane.b32.xlu0 %v6399, 111
  %v6565 = vpop.permute.xlu0 %6564
  %6566 = vrot.lane.b32.xlu0 %v6400, 111
  %v6567 = vpop.permute.xlu0 %6566
  %6568 = vrot.lane.b32.xlu0 %v6392, 111
  %v6569 = vpop.permute.xlu0 %6568
  %v6570 = vsel %vm826, %v6481, %v6483
  %v6571 = vsel %vm826, %v6483, %v6485
  %v6572 = vsel %vm826, %v6485, %v6487
  %v6573 = vsel %vm826, %v6487, %v6489
  %v6574 = vsel %vm826, %v6489, %v6491
  %v6575 = vsel %vm826, %v6491, %v6493
  %v6576 = vsel %vm826, %v6493, %v6495
  %v6577 = vsel %vm826, %v6495, %v6497
  %v6578 = vsel %vm826, %v6499, %v6501
  %v6579 = vsel %vm826, %v6501, %v6503
  %v6580 = vsel %vm826, %v6503, %v6505
  %v6581 = vsel %vm826, %v6505, %v6507
  %v6582 = vsel %vm826, %v6507, %v6509
  %v6583 = vsel %vm826, %v6509, %v6511
  %v6584 = vsel %vm826, %v6511, %v6513
  %v6585 = vsel %vm826, %v6513, %v6515
  %v6586 = vsel %vm826, %v6517, %v6519
  %v6587 = vsel %vm826, %v6519, %v6521
  %v6588 = vsel %vm826, %v6521, %v6523
  %v6589 = vsel %vm826, %v6523, %v6525
  %v6590 = vsel %vm826, %v6525, %v6527
  %v6591 = vsel %vm826, %v6527, %v6529
  %v6592 = vsel %vm826, %v6529, %v6531
  %v6593 = vsel %vm826, %v6531, %v6533
  %v6594 = vsel %vm826, %v6535, %v6537
  %v6595 = vsel %vm826, %v6537, %v6539
  %v6596 = vsel %vm826, %v6539, %v6541
  %v6597 = vsel %vm826, %v6541, %v6543
  %v6598 = vsel %vm826, %v6543, %v6545
  %v6599 = vsel %vm826, %v6545, %v6547
  %v6600 = vsel %vm826, %v6547, %v6549
  %v6601 = vsel %vm826, %v6549, %v6551
  %v6602 = vsel %vm826, %v6553, %v6555
  %v6603 = vsel %vm826, %v6555, %v6557
  %v6604 = vsel %vm826, %v6557, %v6559
  %v6605 = vsel %vm826, %v6559, %v6561
  %v6606 = vsel %vm826, %v6561, %v6563
  %v6607 = vsel %vm826, %v6563, %v6565
  %v6608 = vsel %vm826, %v6565, %v6567
  %v6609 = vsel %vm826, %v6567, %v6569
  %v6643 = vsel %vm1275, %v6437, 0
  %v6645 = vsel %vm1033, %v6602, 0
  %v6647 = vsel %vm1033, %v6603, 0
  %v6649 = vsel %vm1033, %v6604, 0
  %v6651 = vsel %vm1033, %v6605, 0
  %v6653 = vsel %vm1033, %v6606, 0
  %v6655 = vsel %vm1033, %v6607, 0
  %v6657 = vsel %vm1033, %v6608, 0
  %v6659 = vsel %vm1033, %v6609, 0
  %6661 = vmatpush.msra.mxu0 0.0
  %6662 = vmatpush.msra.mxu0 0.0
  %6663 = vmatpush.msra.mxu0 0.0
  %6664 = vmatpush.msra.mxu0 0.0
  %6665 = vmatpush.msra.mxu0 0.0
  %6666 = vmatpush.msra.mxu0 0.0
  %6667 = vmatpush.msra.mxu0 0.0
  %6668 = vmatpush.msra.mxu0 0.0
  %6669 = vmatpush.msra.mxu0 0.0
  %6670 = vmatpush.msra.mxu0 0.0
  %6671 = vmatpush.msra.mxu0 0.0
  %6672 = vmatpush.msra.mxu0 %v6645
  %6673 = vmatpush.msra.mxu0 %v6594
  %6674 = vmatpush.msra.mxu0 %v6586
  %6675 = vmatpush.msra.mxu0 %v6578
  %6676 = vmatpush.msra.mxu0 %v6570
  %6677 = vmatmul.f32.gmra.mxu0 %v6643
  %v6678 = vpop.f32.mrf.mxu0
  %v6679 = vadd.f32 %v6442, %v6678
  %6680 = vdwg.mxu0
  %6681 = vmatpush.msra.mxu0 0.0
  %6682 = vmatpush.msra.mxu0 0.0
  %6683 = vmatpush.msra.mxu0 0.0
  %6684 = vmatpush.msra.mxu0 0.0
  %6685 = vmatpush.msra.mxu0 0.0
  %6686 = vmatpush.msra.mxu0 0.0
  %6687 = vmatpush.msra.mxu0 0.0
  %6688 = vmatpush.msra.mxu0 0.0
  %6689 = vmatpush.msra.mxu0 0.0
  %6690 = vmatpush.msra.mxu0 0.0
  %6691 = vmatpush.msra.mxu0 0.0
  %6692 = vmatpush.msra.mxu0 %v6647
  %6693 = vmatpush.msra.mxu0 %v6595
  %6694 = vmatpush.msra.mxu0 %v6587
  %6695 = vmatpush.msra.mxu0 %v6579
  %6696 = vmatpush.msra.mxu0 %v6571
  %6697 = vmatmul.f32.gmra.mxu0 %v6643
  %v6698 = vpop.f32.mrf.mxu0
  %v6699 = vadd.f32 %v6442, %v6698
  %6700 = vdwg.mxu0
  %6701 = vmatpush.msra.mxu0 0.0
  %6702 = vmatpush.msra.mxu0 0.0
  %6703 = vmatpush.msra.mxu0 0.0
  %6704 = vmatpush.msra.mxu0 0.0
  %6705 = vmatpush.msra.mxu0 0.0
  %6706 = vmatpush.msra.mxu0 0.0
  %6707 = vmatpush.msra.mxu0 0.0
  %6708 = vmatpush.msra.mxu0 0.0
  %6709 = vmatpush.msra.mxu0 0.0
  %6710 = vmatpush.msra.mxu0 0.0
  %6711 = vmatpush.msra.mxu0 0.0
  %6712 = vmatpush.msra.mxu0 %v6649
  %6713 = vmatpush.msra.mxu0 %v6596
  %6714 = vmatpush.msra.mxu0 %v6588
  %6715 = vmatpush.msra.mxu0 %v6580
  %6716 = vmatpush.msra.mxu0 %v6572
  %6717 = vmatmul.f32.gmra.mxu0 %v6643
  %v6718 = vpop.f32.mrf.mxu0
  %v6719 = vadd.f32 %v6442, %v6718
  %6720 = vdwg.mxu0
  %6721 = vmatpush.msra.mxu0 0.0
  %6722 = vmatpush.msra.mxu0 0.0
  %6723 = vmatpush.msra.mxu0 0.0
  %6724 = vmatpush.msra.mxu0 0.0
  %6725 = vmatpush.msra.mxu0 0.0
  %6726 = vmatpush.msra.mxu0 0.0
  %6727 = vmatpush.msra.mxu0 0.0
  %6728 = vmatpush.msra.mxu0 0.0
  %6729 = vmatpush.msra.mxu0 0.0
  %6730 = vmatpush.msra.mxu0 0.0
  %6731 = vmatpush.msra.mxu0 0.0
  %6732 = vmatpush.msra.mxu0 %v6651
  %6733 = vmatpush.msra.mxu0 %v6597
  %6734 = vmatpush.msra.mxu0 %v6589
  %6735 = vmatpush.msra.mxu0 %v6581
  %6736 = vmatpush.msra.mxu0 %v6573
  %6737 = vmatmul.f32.gmra.mxu0 %v6643
  %v6738 = vpop.f32.mrf.mxu0
  %v6739 = vadd.f32 %v6442, %v6738
  %6740 = vdwg.mxu0
  %6741 = vmatpush.msra.mxu0 0.0
  %6742 = vmatpush.msra.mxu0 0.0
  %6743 = vmatpush.msra.mxu0 0.0
  %6744 = vmatpush.msra.mxu0 0.0
  %6745 = vmatpush.msra.mxu0 0.0
  %6746 = vmatpush.msra.mxu0 0.0
  %6747 = vmatpush.msra.mxu0 0.0
  %6748 = vmatpush.msra.mxu0 0.0
  %6749 = vmatpush.msra.mxu0 0.0
  %6750 = vmatpush.msra.mxu0 0.0
  %6751 = vmatpush.msra.mxu0 0.0
  %6752 = vmatpush.msra.mxu0 %v6653
  %6753 = vmatpush.msra.mxu0 %v6598
  %6754 = vmatpush.msra.mxu0 %v6590
  %6755 = vmatpush.msra.mxu0 %v6582
  %6756 = vmatpush.msra.mxu0 %v6574
  %6757 = vmatmul.f32.gmra.mxu0 %v6643
  %v6758 = vpop.f32.mrf.mxu0
  %v6759 = vadd.f32 %v6442, %v6758
  %6760 = vdwg.mxu0
  %6761 = vmatpush.msra.mxu0 0.0
  %6762 = vmatpush.msra.mxu0 0.0
  %6763 = vmatpush.msra.mxu0 0.0
  %6764 = vmatpush.msra.mxu0 0.0
  %6765 = vmatpush.msra.mxu0 0.0
  %6766 = vmatpush.msra.mxu0 0.0
  %6767 = vmatpush.msra.mxu0 0.0
  %6768 = vmatpush.msra.mxu0 0.0
  %6769 = vmatpush.msra.mxu0 0.0
  %6770 = vmatpush.msra.mxu0 0.0
  %6771 = vmatpush.msra.mxu0 0.0
  %6772 = vmatpush.msra.mxu0 %v6655
  %6773 = vmatpush.msra.mxu0 %v6599
  %6774 = vmatpush.msra.mxu0 %v6591
  %6775 = vmatpush.msra.mxu0 %v6583
  %6776 = vmatpush.msra.mxu0 %v6575
  %6777 = vmatmul.f32.gmra.mxu0 %v6643
  %v6778 = vpop.f32.mrf.mxu0
  %v6779 = vadd.f32 %v6442, %v6778
  %6780 = vdwg.mxu0
  %6781 = vmatpush.msra.mxu0 0.0
  %6782 = vmatpush.msra.mxu0 0.0
  %6783 = vmatpush.msra.mxu0 0.0
  %6784 = vmatpush.msra.mxu0 0.0
  %6785 = vmatpush.msra.mxu0 0.0
  %6786 = vmatpush.msra.mxu0 0.0
  %6787 = vmatpush.msra.mxu0 0.0
  %6788 = vmatpush.msra.mxu0 0.0
  %6789 = vmatpush.msra.mxu0 0.0
  %6790 = vmatpush.msra.mxu0 0.0
  %6791 = vmatpush.msra.mxu0 0.0
  %6792 = vmatpush.msra.mxu0 %v6657
  %6793 = vmatpush.msra.mxu0 %v6600
  %6794 = vmatpush.msra.mxu0 %v6592
  %6795 = vmatpush.msra.mxu0 %v6584
  %6796 = vmatpush.msra.mxu0 %v6576
  %6797 = vmatmul.f32.gmra.mxu0 %v6643
  %v6798 = vpop.f32.mrf.mxu0
  %v6799 = vadd.f32 %v6442, %v6798
  %6800 = vdwg.mxu0
  %6801 = vmatpush.msra.mxu0 0.0
  %6802 = vmatpush.msra.mxu0 0.0
  %6803 = vmatpush.msra.mxu0 0.0
  %6804 = vmatpush.msra.mxu0 0.0
  %6805 = vmatpush.msra.mxu0 0.0
  %6806 = vmatpush.msra.mxu0 0.0
  %6807 = vmatpush.msra.mxu0 0.0
  %6808 = vmatpush.msra.mxu0 0.0
  %6809 = vmatpush.msra.mxu0 0.0
  %6810 = vmatpush.msra.mxu0 0.0
  %6811 = vmatpush.msra.mxu0 0.0
  %6812 = vmatpush.msra.mxu0 %v6659
  %6813 = vmatpush.msra.mxu0 %v6601
  %6814 = vmatpush.msra.mxu0 %v6593
  %6815 = vmatpush.msra.mxu0 %v6585
  %6816 = vmatpush.msra.mxu0 %v6577
  %6817 = vmatmul.f32.gmra.mxu0 %v6643
  %v6818 = vpop.f32.mrf.mxu0
  %v6819 = vadd.f32 %v6442, %v6818
  %6820 = vdwg.mxu0
  %6821 = vst [vmem:[%s10] sm:$0xff] %v6679
  %6822 = vst [vmem:[%s10 + $0x8] sm:$0xff] %v6699
  %6823 = vst [vmem:[%s10 + $0x10] sm:$0xff] %v6719
  %6824 = vst [vmem:[%s10 + $0x18] sm:$0xff] %v6739
  %6825 = vst [vmem:[%s10 + $0x20] sm:$0xff] %v6759
  %6826 = vst [vmem:[%s10 + $0x28] sm:$0xff] %v6779
  %6827 = vst [vmem:[%s10 + $0x30] sm:$0xff] %v6799
  %6828 = vst [vmem:[%s10 + $0x38] sm:$0xff] %v6819
  // Predicated region
  $region42: #{stacked_convs_block_ri_forward.1} parent=0 // pred_check
    _
  $region43: #{stacked_convs_block_ri_forward.1} parent=0 // pred_check_branch
    %6830 = sbr.rel (0) target = $region45
  $region44: #{stacked_convs_block_ri_forward.1} parent=0 // pred_region
    _
  $region45: #{stacked_convs_block_ri_forward.1} parent=0 // pred_fallthru
    _
  // Predicated region
  $region46: #{stacked_convs_block_ri_forward.1} parent=0 // pred_check
    _
  $region47: #{stacked_convs_block_ri_forward.1} parent=0 // pred_check_branch
    %6832 = sbr.rel (0) target = $region49
  $region48: #{stacked_convs_block_ri_forward.1} parent=0 // pred_region
    _
  $region49: #{stacked_convs_block_ri_forward.1} parent=0 // pred_fallthru
    _

</llo_original>
